<compile_context>
chip_gen: v6e
topology: v6e:2x2x1
jax: 0.10.0
libtpu: 0.0.40
codegen_flags: <defaults>
</compile_context>

<pallas_src>
import functools

import jax
import jax.numpy as jnp
from jax import lax
from jax.experimental import pallas as pl
from jax.experimental.pallas import tpu as pltpu


# ---------------------------------------------------------------------------
# Fused Pallas kernel
# ---------------------------------------------------------------------------

def _bottleneck_kernel(xc_ref, xt_ref, xb_ref, w1_ref, b1_ref, w2_ref, b2_ref,
                       w3_ref, b3_ref, o_ref, p1_ref, *, th, w, d, planes, cout, cdt):
    # xc_ref : (1, th, w, cin)      interior x rows of this tile
    # xt_ref : (1, d,  w, cin)      x rows just above the tile (clamped at image top)
    # xb_ref : (1, d,  w, cin)      x rows just below the tile (clamped at image bottom)
    # w1_ref : (cin, planes)   b1_ref : (1, planes)     (bn scale folded into w)
    # w2_ref : (3, 3, planes, planes)  b2_ref : (1, planes)
    # w3_ref : (planes, cout)  b3_ref : (1, cout)
    # o_ref  : (1, th, w, cout)
    # p1_ref : (th + 2d, w + 2d, planes) f32 scratch = zero-padded out1 tile
    i = pl.program_id(1)
    nt = pl.num_programs(1)
    cin = xc_ref.shape[-1]

    def conv1(rows, x):
        # relu(bn1(conv1(x))) for `rows` rows of x, result in f32.
        y = jnp.dot(x.reshape(rows * w, cin).astype(cdt), w1_ref[...],
                    preferred_element_type=jnp.float32)
        y = jnp.maximum(y + b1_ref[...], 0.0)
        return y.reshape(rows, w, planes)

    # Zero the padded scratch: supplies the conv2 zero padding (left/right columns
    # and the top/bottom image-boundary rows).
    p1_ref[...] = jnp.zeros(p1_ref.shape, p1_ref.dtype)

    # out1 for the interior rows of this tile.
    xc = xc_ref[0]                                        # (th, w, cin)
    p1_ref[d:d + th, d:d + w, :] = conv1(th, xc)

    # out1 for the d-row halos above / below (recomputed from x; skipped at the
    # image boundary where the scratch stays zero).
    @pl.when(i > 0)
    def _():
        p1_ref[0:d, d:d + w, :] = conv1(d, xt_ref[0])

    @pl.when(i < nt - 1)
    def _():
        p1_ref[th + d:th + 2 * d, d:d + w, :] = conv1(d, xb_ref[0])

    # conv2 (3x3, dilated) as 9 shifted-tap matmuls over the padded out1 scratch,
    # slicing the ref per tap so only one tap is live at a time.
    m = th * w
    acc = jnp.zeros((m, planes), jnp.float32)
    for kh in range(3):
        for kw in range(3):
            xs = p1_ref[kh * d:kh * d + th, kw * d:kw * d + w, :]
            acc = acc + jnp.dot(xs.reshape(m, planes).astype(cdt), w2_ref[kh, kw],
                                preferred_element_type=jnp.float32)
    out2 = jnp.maximum(acc + b2_ref[...], 0.0)

    # conv3 (1x1) + bn3 + residual add + relu.
    y = jnp.dot(out2.astype(cdt), w3_ref[...], preferred_element_type=jnp.float32)
    y = y + b3_ref[...] + xc.reshape(m, cin).astype(jnp.float32)
    y = jnp.maximum(y, 0.0)
    o_ref[...] = y.reshape(1, th, w, cout).astype(o_ref.dtype)


# ---------------------------------------------------------------------------
# Helpers
# ---------------------------------------------------------------------------

def _fold_bn(bn, eps=1e-5):
    gamma, beta, mean, var = bn
    scale = gamma / jnp.sqrt(var + eps)
    bias = beta - mean * scale
    return scale, bias


def _pick_tile_h(H, W, cin, d, tile_budget_bytes=2 * 1024 * 1024):
    """Largest row-tile that divides H, is a multiple of d and keeps the x tile
    under a per-buffer VMEM budget (so double-buffering fits v7x's 64 MiB)."""
    per_row = max(W * cin * 4, 1)
    best = None
    for th in range(d, H + 1):
        if H % th != 0 or th % d != 0:
            continue
        if th * per_row > tile_budget_bytes:
            if best is None:
                best = th
            break
        best = th
    return best if best is not None else H


# ---------------------------------------------------------------------------
# Bottleneck forward (Pallas)
# ---------------------------------------------------------------------------

def bottleneck_forward_nhwc(x_nhwc, params, dilation=1, tile_h=None, use_bf16=True):
    N, H, W, Cin = x_nhwc.shape
    planes = params["w1"].shape[0]
    Cout = 4 * planes
    assert Cin == Cout, "residual add requires inplanes == 4*planes when downsample=None"
    d = int(dilation)
    assert 1 <= d <= H

    if tile_h is None:
        tile_h = _pick_tile_h(H, W, Cin, d)
    assert H % tile_h == 0 and (tile_h % d == 0 or tile_h == H), \
        "tile_h must divide H and be a multiple of dilation (or equal H)"
    n_tiles = H // tile_h

    # Fold inference-mode BN into the conv weights (scale) + a per-channel bias;
    # cast matmul operands to bf16 (f32 accumulation / epilogue stays in-kernel).
    s1, b1 = _fold_bn(params["bn1"])
    s2, b2 = _fold_bn(params["bn2"])
    s3, b3 = _fold_bn(params["bn3"])
    cdt = jnp.bfloat16 if use_bf16 else x_nhwc.dtype
    w1 = (params["w1"][:, :, 0, 0].T * s1).astype(cdt)                  # (Cin, planes)
    w2 = (jnp.transpose(params["w2"], (2, 3, 1, 0)) * s2).astype(cdt)   # (3,3,p,p) HWIO
    w3 = (params["w3"][:, :, 0, 0].T * s3).astype(cdt)                  # (planes, Cout)
    b1 = b1.reshape(1, planes).astype(jnp.float32)
    b2 = b2.reshape(1, planes).astype(jnp.float32)
    b3 = b3.reshape(1, Cout).astype(jnp.float32)

    rpb = max(tile_h // d, 1)                 # d-row blocks per row tile
    last_d_block = (H + d - 1) // d - 1       # clamp target for the bottom halo

    def xc_map(n, i):
        return (n, i, 0, 0)

    def xt_map(n, i):
        return (n, jnp.maximum(i * rpb - 1, 0), 0, 0)

    def xb_map(n, i):
        return (n, jnp.minimum((i + 1) * rpb, last_d_block), 0, 0)

    kernel = functools.partial(_bottleneck_kernel, th=tile_h, w=W, d=d,
                               planes=planes, cout=Cout, cdt=cdt)

    flops = 2 * N * H * W * (Cin * planes + 9 * planes * planes + planes * Cout)
    bytes_accessed = (int(x_nhwc.size) * x_nhwc.dtype.itemsize * 2
                      + N * H * W * Cout * x_nhwc.dtype.itemsize
                      + int(w1.size + w2.size + w3.size) * w1.dtype.itemsize)

    grid_spec = pltpu.PrefetchScalarGridSpec(
        num_scalar_prefetch=0,
        grid=(N, n_tiles),
        in_specs=[
            pl.BlockSpec((1, tile_h, W, Cin), xc_map),     # interior rows
            pl.BlockSpec((1, d, W, Cin), xt_map),          # top halo rows
            pl.BlockSpec((1, d, W, Cin), xb_map),          # bottom halo rows
            pl.BlockSpec(w1.shape, lambda n, i: (0, 0)),
            pl.BlockSpec(b1.shape, lambda n, i: (0, 0)),
            pl.BlockSpec(w2.shape, lambda n, i: (0, 0, 0, 0)),
            pl.BlockSpec(b2.shape, lambda n, i: (0, 0)),
            pl.BlockSpec(w3.shape, lambda n, i: (0, 0)),
            pl.BlockSpec(b3.shape, lambda n, i: (0, 0)),
        ],
        out_specs=pl.BlockSpec((1, tile_h, W, Cout), xc_map),
        scratch_shapes=[pltpu.VMEM((tile_h + 2 * d, W + 2 * d, planes), jnp.float32)],
    )

    return pl.pallas_call(
        kernel,
        out_shape=jax.ShapeDtypeStruct((N, H, W, Cout), x_nhwc.dtype),
        grid_spec=grid_spec,
        compiler_params=pltpu.CompilerParams(
            dimension_semantics=("parallel", "parallel"),
            vmem_limit_bytes=32 * 1024 * 1024),
        cost_estimate=pl.CostEstimate(flops=flops, transcendentals=0,
                                      bytes_accessed=bytes_accessed),
    )(x_nhwc, x_nhwc, x_nhwc, w1, b1, w2, b2, w3, b3)


def bottleneck_forward(x_nchw, params, dilation=1, tile_h=None, use_bf16=True):
    # NOTE: for best performance keep the whole network in NHWC and call
    # bottleneck_forward_nhwc directly — these two transposes are extra HBM passes.
    x_nhwc = jnp.transpose(x_nchw, (0, 2, 3, 1))
    out = bottleneck_forward_nhwc(x_nhwc, params, dilation=dilation,
                                  tile_h=tile_h, use_bf16=use_bf16)
    return jnp.transpose(out, (0, 3, 1, 2))


# ---------------------------------------------------------------------------
# Parameter construction (deterministic, matching the PyTorch module's shapes)
# ---------------------------------------------------------------------------

def make_params(key, inplanes, planes):
    ks = jax.random.split(key, 16)

    def conv_w(k, cout, cin, kh, kw):
        fan_in = cin * kh * kw
        return jax.random.normal(k, (cout, cin, kh, kw), jnp.float32) / jnp.sqrt(fan_in)

    def bn_params(k0, k1, k2, k3, c):
        gamma = 0.5 + jax.random.uniform(k0, (c,), jnp.float32)
        beta = 0.1 * jax.random.normal(k1, (c,), jnp.float32)
        mean = 0.1 * jax.random.normal(k2, (c,), jnp.float32)
        var = 0.5 + jax.random.uniform(k3, (c,), jnp.float32)
        return gamma, beta, mean, var

    p = {}
    p["w1"] = conv_w(ks[0], planes, inplanes, 1, 1)            # (planes, inplanes, 1, 1)
    p["bn1"] = bn_params(ks[1], ks[2], ks[3], ks[4], planes)
    p["w2"] = conv_w(ks[5], planes, planes, 3, 3)              # (planes, planes, 3, 3)
    p["bn2"] = bn_params(ks[6], ks[7], ks[8], ks[9], planes)
    p["w3"] = conv_w(ks[10], planes * 4, planes, 1, 1)         # (4*planes, planes, 1, 1)
    p["bn3"] = bn_params(ks[11], ks[12], ks[13], ks[14], planes * 4)
    return p


# ---------------------------------------------------------------------------
# Pure-JAX reference (matches PyTorch eval-mode semantics) for verification
# ---------------------------------------------------------------------------

def _ref_bn(x, bn, eps=1e-5):
    gamma, beta, mean, var = bn
    inv = gamma / jnp.sqrt(var + eps)
    return (x - mean[None, :, None, None]) * inv[None, :, None, None] \
        + beta[None, :, None, None]


def bottleneck_reference(x, params, dilation=1):
    dn = ("NCHW", "OIHW", "NCHW")
    d = dilation
    out = lax.conv_general_dilated(x, params["w1"], (1, 1), ((0, 0), (0, 0)),
                                   dimension_numbers=dn)
    out = jax.nn.relu(_ref_bn(out, params["bn1"]))
    out = lax.conv_general_dilated(out, params["w2"], (1, 1), ((d, d), (d, d)),
                                   rhs_dilation=(d, d), dimension_numbers=dn)
    out = jax.nn.relu(_ref_bn(out, params["bn2"]))
    out = lax.conv_general_dilated(out, params["w3"], (1, 1), ((0, 0), (0, 0)),
                                   dimension_numbers=dn)
    out = _ref_bn(out, params["bn3"])
    return jax.nn.relu(out + x)


# ---------------------------------------------------------------------------
# Main
# ---------------------------------------------------------------------------

if __name__ == "__main__":
    key = jax.random.PRNGKey(0)
    k_x, k_p = jax.random.split(key)

    N, planes, H, W = 2, 4, 16, 16
    inplanes = planes * 4              # 16, required for downsample=None residual
    dilation = 2
    tile_h = 8                         # 2 row tiles per image -> exercises the halo path

    x = jax.random.normal(k_x, (N, inplanes, H, W), jnp.float32)
    params = make_params(k_p, inplanes, planes)

    ref = bottleneck_reference(x, params, dilation=dilation)

    # f32 matmul path: must match the XLA reference tightly.
    out_f32 = bottleneck_forward(x, params, dilation=dilation, tile_h=tile_h,
                                 use_bf16=False)
    # bf16 matmul path (production config): f32 accumulation, looser tolerance.
    out_bf16 = bottleneck_forward(x, params, dilation=dilation, tile_h=tile_h,
                                  use_bf16=True)
    jax.block_until_ready((ref, out_f32, out_bf16))

    assert out_f32.shape == out_bf16.shape == ref.shape == (N, inplanes, H, W)
    assert jnp.allclose(out_f32, ref, rtol=1e-4, atol=1e-4), \
        f"f32 max abs err {jnp.max(jnp.abs(out_f32 - ref))}"
    assert jnp.allclose(out_bf16, ref, rtol=5e-2, atol=1e-1), \
        f"bf16 max abs err {jnp.max(jnp.abs(out_bf16 - ref))}"

    print("KERNEL_OK")
</pallas_src>

<mosaic_0001>
module attributes {stable_mosaic.version = 11 : i64} {
  func.func @_bottleneck_kernel(%arg0: i32, %arg1: i32, %arg2: memref<1x8x16x16xf32, #tpu.memory_space<vmem>>, %arg3: memref<1x2x16x16xf32, #tpu.memory_space<vmem>>, %arg4: memref<1x2x16x16xf32, #tpu.memory_space<vmem>>, %arg5: memref<16x4xf32, #tpu.memory_space<vmem>>, %arg6: memref<1x4xf32, #tpu.memory_space<vmem>>, %arg7: memref<3x3x4x4xf32, #tpu.memory_space<vmem>>, %arg8: memref<1x4xf32, #tpu.memory_space<vmem>>, %arg9: memref<4x16xf32, #tpu.memory_space<vmem>>, %arg10: memref<1x16xf32, #tpu.memory_space<vmem>>, %arg11: memref<1x8x16x16xf32, #tpu.memory_space<vmem>>, %arg12: memref<12x20x4xf32, #tpu.memory_space<vmem>>) attributes {dimension_semantics = [#tpu.dimension_semantics<parallel>, #tpu.dimension_semantics<parallel>], iteration_bounds = array<i64: 2, 2>, scalar_prefetch = 0 : i64, scratch_operands = 1 : i64, tpu.core_type = #tpu.core_type<tc>, window_params = [{transform_indices = @transform_0, window_bounds = array<i64: 1, 8, 16, 16>}, {transform_indices = @transform_1, window_bounds = array<i64: 1, 2, 16, 16>}, {transform_indices = @transform_2, window_bounds = array<i64: 1, 2, 16, 16>}, {pipeline_mode = #tpu.pipeline_mode<synchronous>, transform_indices = @transform_3, window_bounds = array<i64: 16, 4>}, {pipeline_mode = #tpu.pipeline_mode<synchronous>, transform_indices = @transform_4, window_bounds = array<i64: 1, 4>}, {pipeline_mode = #tpu.pipeline_mode<synchronous>, transform_indices = @transform_5, window_bounds = array<i64: 3, 3, 4, 4>}, {pipeline_mode = #tpu.pipeline_mode<synchronous>, transform_indices = @transform_6, window_bounds = array<i64: 1, 4>}, {pipeline_mode = #tpu.pipeline_mode<synchronous>, transform_indices = @transform_7, window_bounds = array<i64: 4, 16>}, {pipeline_mode = #tpu.pipeline_mode<synchronous>, transform_indices = @transform_8, window_bounds = array<i64: 1, 16>}, {transform_indices = @transform_9, window_bounds = array<i64: 1, 8, 16, 16>}]} {
    %cst = arith.constant 0.000000e+00 : f32
    %0 = vector.broadcast %cst : f32 to vector<12x20x4xf32>
    %c0 = arith.constant 0 : index
    %c0_0 = arith.constant 0 : index
    %c0_1 = arith.constant 0 : index
    %1 = vector.load %arg12[%c0, %c0_0, %c0_1] : memref<12x20x4xf32, #tpu.memory_space<vmem>>, vector<12x20x4xf32>
    tpu.vector_store %arg12[%c0, %c0_0, %c0_1], %0 {strides = array<i32>} : memref<12x20x4xf32, #tpu.memory_space<vmem>>, vector<12x20x4xf32>,
    %c0_2 = arith.constant 0 : index
    %c0_3 = arith.constant 0 : index
    %c0_4 = arith.constant 0 : index
    %c0_5 = arith.constant 0 : index
    %2 = vector.load %arg2[%c0_2, %c0_3, %c0_4, %c0_5] : memref<1x8x16x16xf32, #tpu.memory_space<vmem>>, vector<1x8x16x16xf32>
    %3 = vector.shape_cast %2 : vector<1x8x16x16xf32> to vector<8x16x16xf32>
    %4 = vector.shape_cast %3 : vector<8x16x16xf32> to vector<128x16xf32>
    %c0_6 = arith.constant 0 : index
    %c0_7 = arith.constant 0 : index
    %5 = vector.load %arg5[%c0_6, %c0_7] : memref<16x4xf32, #tpu.memory_space<vmem>>, vector<16x4xf32>
    %cst_8 = arith.constant dense<0.000000e+00> : vector<128x4xf32>
    %6 = tpu.matmul %4, %5, %cst_8 {dimension_numbers = #tpu.dot_dimension_numbers<[1], [0], [0], [1], [0, 0, 1, 1], [], []>} : vector<128x16xf32>, vector<16x4xf32>, vector<128x4xf32> -> vector<128x4xf32>
    %c0_9 = arith.constant 0 : index
    %c0_10 = arith.constant 0 : index
    %7 = vector.load %arg6[%c0_9, %c0_10] : memref<1x4xf32, #tpu.memory_space<vmem>>, vector<1x4xf32>
    %8 = vector.broadcast %7 : vector<1x4xf32> to vector<128x4xf32>
    %9 = arith.addf %6, %8 : vector<128x4xf32>
    %cst_11 = arith.constant 0.000000e+00 : f32
    %10 = vector.broadcast %cst_11 : f32 to vector<128x4xf32>
    %11 = arith.maximumf %9, %10 : vector<128x4xf32>
    %12 = vector.shape_cast %11 : vector<128x4xf32> to vector<8x16x4xf32>
    %c2 = arith.constant 2 : index
    %c2_12 = arith.constant 2 : index
    %c0_13 = arith.constant 0 : index
    %13 = vector.load %arg12[%c2, %c2_12, %c0_13] : memref<12x20x4xf32, #tpu.memory_space<vmem>>, vector<8x16x4xf32>
    tpu.vector_store %arg12[%c2, %c2_12, %c0_13], %12 {strides = array<i32>} : memref<12x20x4xf32, #tpu.memory_space<vmem>>, vector<8x16x4xf32>,
    %c0_i32 = arith.constant 0 : i32
    %14 = arith.cmpi sgt, %arg1, %c0_i32 : i32
    %15 = arith.extui %14 : i1 to i32
    %c0_i32_14 = arith.constant 0 : i32
    %16 = arith.cmpi ne, %15, %c0_i32_14 : i32
    scf.if %16 {
      %c0_100 = arith.constant 0 : index
      %c0_101 = arith.constant 0 : index
      %c0_102 = arith.constant 0 : index
      %c0_103 = arith.constant 0 : index
      %91 = vector.load %arg3[%c0_100, %c0_101, %c0_102, %c0_103] : memref<1x2x16x16xf32, #tpu.memory_space<vmem>>, vector<1x2x16x16xf32>
      %92 = vector.shape_cast %91 : vector<1x2x16x16xf32> to vector<2x16x16xf32>
      %93 = vector.shape_cast %92 : vector<2x16x16xf32> to vector<32x16xf32>
      %c0_104 = arith.constant 0 : index
      %c0_105 = arith.constant 0 : index
      %94 = vector.load %arg5[%c0_104, %c0_105] : memref<16x4xf32, #tpu.memory_space<vmem>>, vector<16x4xf32>
      %cst_106 = arith.constant dense<0.000000e+00> : vector<32x4xf32>
      %95 = tpu.matmul %93, %94, %cst_106 {dimension_numbers = #tpu.dot_dimension_numbers<[1], [0], [0], [1], [0, 0, 1, 1], [], []>} : vector<32x16xf32>, vector<16x4xf32>, vector<32x4xf32> -> vector<32x4xf32>
      %c0_107 = arith.constant 0 : index
      %c0_108 = arith.constant 0 : index
      %96 = vector.load %arg6[%c0_107, %c0_108] : memref<1x4xf32, #tpu.memory_space<vmem>>, vector<1x4xf32>
      %97 = vector.broadcast %96 : vector<1x4xf32> to vector<32x4xf32>
      %98 = arith.addf %95, %97 : vector<32x4xf32>
      %cst_109 = arith.constant 0.000000e+00 : f32
      %99 = vector.broadcast %cst_109 : f32 to vector<32x4xf32>
      %100 = arith.maximumf %98, %99 : vector<32x4xf32>
      %101 = vector.shape_cast %100 : vector<32x4xf32> to vector<2x16x4xf32>
      %c0_110 = arith.constant 0 : index
      %c2_111 = arith.constant 2 : index
      %c0_112 = arith.constant 0 : index
      %102 = vector.load %arg12[%c0_110, %c2_111, %c0_112] : memref<12x20x4xf32, #tpu.memory_space<vmem>>, vector<2x16x4xf32>
      tpu.vector_store %arg12[%c0_110, %c2_111, %c0_112], %101 {strides = array<i32>} : memref<12x20x4xf32, #tpu.memory_space<vmem>>, vector<2x16x4xf32>,
    } else {
    }
    %c1_i32 = arith.constant 1 : i32
    %17 = arith.cmpi slt, %arg1, %c1_i32 : i32
    %18 = arith.extui %17 : i1 to i32
    %c0_i32_15 = arith.constant 0 : i32
    %19 = arith.cmpi ne, %18, %c0_i32_15 : i32
    scf.if %19 {
      %c0_100 = arith.constant 0 : index
      %c0_101 = arith.constant 0 : index
      %c0_102 = arith.constant 0 : index
      %c0_103 = arith.constant 0 : index
      %91 = vector.load %arg4[%c0_100, %c0_101, %c0_102, %c0_103] : memref<1x2x16x16xf32, #tpu.memory_space<vmem>>, vector<1x2x16x16xf32>
      %92 = vector.shape_cast %91 : vector<1x2x16x16xf32> to vector<2x16x16xf32>
      %93 = vector.shape_cast %92 : vector<2x16x16xf32> to vector<32x16xf32>
      %c0_104 = arith.constant 0 : index
      %c0_105 = arith.constant 0 : index
      %94 = vector.load %arg5[%c0_104, %c0_105] : memref<16x4xf32, #tpu.memory_space<vmem>>, vector<16x4xf32>
      %cst_106 = arith.constant dense<0.000000e+00> : vector<32x4xf32>
      %95 = tpu.matmul %93, %94, %cst_106 {dimension_numbers = #tpu.dot_dimension_numbers<[1], [0], [0], [1], [0, 0, 1, 1], [], []>} : vector<32x16xf32>, vector<16x4xf32>, vector<32x4xf32> -> vector<32x4xf32>
      %c0_107 = arith.constant 0 : index
      %c0_108 = arith.constant 0 : index
      %96 = vector.load %arg6[%c0_107, %c0_108] : memref<1x4xf32, #tpu.memory_space<vmem>>, vector<1x4xf32>
      %97 = vector.broadcast %96 : vector<1x4xf32> to vector<32x4xf32>
      %98 = arith.addf %95, %97 : vector<32x4xf32>
      %cst_109 = arith.constant 0.000000e+00 : f32
      %99 = vector.broadcast %cst_109 : f32 to vector<32x4xf32>
      %100 = arith.maximumf %98, %99 : vector<32x4xf32>
      %101 = vector.shape_cast %100 : vector<32x4xf32> to vector<2x16x4xf32>
      %c10 = arith.constant 10 : index
      %c2_110 = arith.constant 2 : index
      %c0_111 = arith.constant 0 : index
      %102 = vector.load %arg12[%c10, %c2_110, %c0_111] : memref<12x20x4xf32, #tpu.memory_space<vmem>>, vector<2x16x4xf32>
      tpu.vector_store %arg12[%c10, %c2_110, %c0_111], %101 {strides = array<i32>} : memref<12x20x4xf32, #tpu.memory_space<vmem>>, vector<2x16x4xf32>,
    } else {
    }
    %cst_16 = arith.constant 0.000000e+00 : f32
    %20 = vector.broadcast %cst_16 : f32 to vector<128x4xf32>
    %c0_17 = arith.constant 0 : index
    %c0_18 = arith.constant 0 : index
    %c0_19 = arith.constant 0 : index
    %21 = vector.load %arg12[%c0_17, %c0_18, %c0_19] : memref<12x20x4xf32, #tpu.memory_space<vmem>>, vector<8x16x4xf32>
    %22 = vector.shape_cast %21 : vector<8x16x4xf32> to vector<128x4xf32>
    %c0_20 = arith.constant 0 : index
    %c0_21 = arith.constant 0 : index
    %c0_22 = arith.constant 0 : index
    %c0_23 = arith.constant 0 : index
    %23 = vector.load %arg7[%c0_20, %c0_21, %c0_22, %c0_23] : memref<3x3x4x4xf32, #tpu.memory_space<vmem>>, vector<1x1x4x4xf32>
    %24 = vector.shape_cast %23 : vector<1x1x4x4xf32> to vector<4x4xf32>
    %cst_24 = arith.constant dense<0.000000e+00> : vector<128x4xf32>
    %25 = tpu.matmul %22, %24, %cst_24 {dimension_numbers = #tpu.dot_dimension_numbers<[1], [0], [0], [1], [0, 0, 1, 1], [], []>} : vector<128x4xf32>, vector<4x4xf32>, vector<128x4xf32> -> vector<128x4xf32>
    %26 = arith.addf %20, %25 : vector<128x4xf32>
    %c0_25 = arith.constant 0 : index
    %c2_26 = arith.constant 2 : index
    %c0_27 = arith.constant 0 : index
    %27 = vector.load %arg12[%c0_25, %c2_26, %c0_27] : memref<12x20x4xf32, #tpu.memory_space<vmem>>, vector<8x16x4xf32>
    %28 = vector.shape_cast %27 : vector<8x16x4xf32> to vector<128x4xf32>
    %c0_28 = arith.constant 0 : index
    %c1 = arith.constant 1 : index
    %c0_29 = arith.constant 0 : index
    %c0_30 = arith.constant 0 : index
    %29 = vector.load %arg7[%c0_28, %c1, %c0_29, %c0_30] : memref<3x3x4x4xf32, #tpu.memory_space<vmem>>, vector<1x1x4x4xf32>
    %30 = vector.shape_cast %29 : vector<1x1x4x4xf32> to vector<4x4xf32>
    %cst_31 = arith.constant dense<0.000000e+00> : vector<128x4xf32>
    %31 = tpu.matmul %28, %30, %cst_31 {dimension_numbers = #tpu.dot_dimension_numbers<[1], [0], [0], [1], [0, 0, 1, 1], [], []>} : vector<128x4xf32>, vector<4x4xf32>, vector<128x4xf32> -> vector<128x4xf32>
    %32 = arith.addf %26, %31 : vector<128x4xf32>
    %c0_32 = arith.constant 0 : index
    %c4 = arith.constant 4 : index
    %c0_33 = arith.constant 0 : index
    %33 = vector.load %arg12[%c0_32, %c4, %c0_33] : memref<12x20x4xf32, #tpu.memory_space<vmem>>, vector<8x16x4xf32>
    %34 = vector.shape_cast %33 : vector<8x16x4xf32> to vector<128x4xf32>
    %c0_34 = arith.constant 0 : index
    %c2_35 = arith.constant 2 : index
    %c0_36 = arith.constant 0 : index
    %c0_37 = arith.constant 0 : index
    %35 = vector.load %arg7[%c0_34, %c2_35, %c0_36, %c0_37] : memref<3x3x4x4xf32, #tpu.memory_space<vmem>>, vector<1x1x4x4xf32>
    %36 = vector.shape_cast %35 : vector<1x1x4x4xf32> to vector<4x4xf32>
    %cst_38 = arith.constant dense<0.000000e+00> : vector<128x4xf32>
    %37 = tpu.matmul %34, %36, %cst_38 {dimension_numbers = #tpu.dot_dimension_numbers<[1], [0], [0], [1], [0, 0, 1, 1], [], []>} : vector<128x4xf32>, vector<4x4xf32>, vector<128x4xf32> -> vector<128x4xf32>
    %38 = arith.addf %32, %37 : vector<128x4xf32>
    %c2_39 = arith.constant 2 : index
    %c0_40 = arith.constant 0 : index
    %c0_41 = arith.constant 0 : index
    %39 = vector.load %arg12[%c2_39, %c0_40, %c0_41] : memref<12x20x4xf32, #tpu.memory_space<vmem>>, vector<8x16x4xf32>
    %40 = vector.shape_cast %39 : vector<8x16x4xf32> to vector<128x4xf32>
    %c1_42 = arith.constant 1 : index
    %c0_43 = arith.constant 0 : index
    %c0_44 = arith.constant 0 : index
    %c0_45 = arith.constant 0 : index
    %41 = vector.load %arg7[%c1_42, %c0_43, %c0_44, %c0_45] : memref<3x3x4x4xf32, #tpu.memory_space<vmem>>, vector<1x1x4x4xf32>
    %42 = vector.shape_cast %41 : vector<1x1x4x4xf32> to vector<4x4xf32>
    %cst_46 = arith.constant dense<0.000000e+00> : vector<128x4xf32>
    %43 = tpu.matmul %40, %42, %cst_46 {dimension_numbers = #tpu.dot_dimension_numbers<[1], [0], [0], [1], [0, 0, 1, 1], [], []>} : vector<128x4xf32>, vector<4x4xf32>, vector<128x4xf32> -> vector<128x4xf32>
    %44 = arith.addf %38, %43 : vector<128x4xf32>
    %c2_47 = arith.constant 2 : index
    %c2_48 = arith.constant 2 : index
    %c0_49 = arith.constant 0 : index
    %45 = vector.load %arg12[%c2_47, %c2_48, %c0_49] : memref<12x20x4xf32, #tpu.memory_space<vmem>>, vector<8x16x4xf32>
    %46 = vector.shape_cast %45 : vector<8x16x4xf32> to vector<128x4xf32>
    %c1_50 = arith.constant 1 : index
    %c1_51 = arith.constant 1 : index
    %c0_52 = arith.constant 0 : index
    %c0_53 = arith.constant 0 : index
    %47 = vector.load %arg7[%c1_50, %c1_51, %c0_52, %c0_53] : memref<3x3x4x4xf32, #tpu.memory_space<vmem>>, vector<1x1x4x4xf32>
    %48 = vector.shape_cast %47 : vector<1x1x4x4xf32> to vector<4x4xf32>
    %cst_54 = arith.constant dense<0.000000e+00> : vector<128x4xf32>
    %49 = tpu.matmul %46, %48, %cst_54 {dimension_numbers = #tpu.dot_dimension_numbers<[1], [0], [0], [1], [0, 0, 1, 1], [], []>} : vector<128x4xf32>, vector<4x4xf32>, vector<128x4xf32> -> vector<128x4xf32>
    %50 = arith.addf %44, %49 : vector<128x4xf32>
    %c2_55 = arith.constant 2 : index
    %c4_56 = arith.constant 4 : index
    %c0_57 = arith.constant 0 : index
    %51 = vector.load %arg12[%c2_55, %c4_56, %c0_57] : memref<12x20x4xf32, #tpu.memory_space<vmem>>, vector<8x16x4xf32>
    %52 = vector.shape_cast %51 : vector<8x16x4xf32> to vector<128x4xf32>
    %c1_58 = arith.constant 1 : index
    %c2_59 = arith.constant 2 : index
    %c0_60 = arith.constant 0 : index
    %c0_61 = arith.constant 0 : index
    %53 = vector.load %arg7[%c1_58, %c2_59, %c0_60, %c0_61] : memref<3x3x4x4xf32, #tpu.memory_space<vmem>>, vector<1x1x4x4xf32>
    %54 = vector.shape_cast %53 : vector<1x1x4x4xf32> to vector<4x4xf32>
    %cst_62 = arith.constant dense<0.000000e+00> : vector<128x4xf32>
    %55 = tpu.matmul %52, %54, %cst_62 {dimension_numbers = #tpu.dot_dimension_numbers<[1], [0], [0], [1], [0, 0, 1, 1], [], []>} : vector<128x4xf32>, vector<4x4xf32>, vector<128x4xf32> -> vector<128x4xf32>
    %56 = arith.addf %50, %55 : vector<128x4xf32>
    %c4_63 = arith.constant 4 : index
    %c0_64 = arith.constant 0 : index
    %c0_65 = arith.constant 0 : index
    %57 = vector.load %arg12[%c4_63, %c0_64, %c0_65] : memref<12x20x4xf32, #tpu.memory_space<vmem>>, vector<8x16x4xf32>
    %58 = vector.shape_cast %57 : vector<8x16x4xf32> to vector<128x4xf32>
    %c2_66 = arith.constant 2 : index
    %c0_67 = arith.constant 0 : index
    %c0_68 = arith.constant 0 : index
    %c0_69 = arith.constant 0 : index
    %59 = vector.load %arg7[%c2_66, %c0_67, %c0_68, %c0_69] : memref<3x3x4x4xf32, #tpu.memory_space<vmem>>, vector<1x1x4x4xf32>
    %60 = vector.shape_cast %59 : vector<1x1x4x4xf32> to vector<4x4xf32>
    %cst_70 = arith.constant dense<0.000000e+00> : vector<128x4xf32>
    %61 = tpu.matmul %58, %60, %cst_70 {dimension_numbers = #tpu.dot_dimension_numbers<[1], [0], [0], [1], [0, 0, 1, 1], [], []>} : vector<128x4xf32>, vector<4x4xf32>, vector<128x4xf32> -> vector<128x4xf32>
    %62 = arith.addf %56, %61 : vector<128x4xf32>
    %c4_71 = arith.constant 4 : index
    %c2_72 = arith.constant 2 : index
    %c0_73 = arith.constant 0 : index
    %63 = vector.load %arg12[%c4_71, %c2_72, %c0_73] : memref<12x20x4xf32, #tpu.memory_space<vmem>>, vector<8x16x4xf32>
    %64 = vector.shape_cast %63 : vector<8x16x4xf32> to vector<128x4xf32>
    %c2_74 = arith.constant 2 : index
    %c1_75 = arith.constant 1 : index
    %c0_76 = arith.constant 0 : index
    %c0_77 = arith.constant 0 : index
    %65 = vector.load %arg7[%c2_74, %c1_75, %c0_76, %c0_77] : memref<3x3x4x4xf32, #tpu.memory_space<vmem>>, vector<1x1x4x4xf32>
    %66 = vector.shape_cast %65 : vector<1x1x4x4xf32> to vector<4x4xf32>
    %cst_78 = arith.constant dense<0.000000e+00> : vector<128x4xf32>
    %67 = tpu.matmul %64, %66, %cst_78 {dimension_numbers = #tpu.dot_dimension_numbers<[1], [0], [0], [1], [0, 0, 1, 1], [], []>} : vector<128x4xf32>, vector<4x4xf32>, vector<128x4xf32> -> vector<128x4xf32>
    %68 = arith.addf %62, %67 : vector<128x4xf32>
    %c4_79 = arith.constant 4 : index
    %c4_80 = arith.constant 4 : index
    %c0_81 = arith.constant 0 : index
    %69 = vector.load %arg12[%c4_79, %c4_80, %c0_81] : memref<12x20x4xf32, #tpu.memory_space<vmem>>, vector<8x16x4xf32>
    %70 = vector.shape_cast %69 : vector<8x16x4xf32> to vector<128x4xf32>
    %c2_82 = arith.constant 2 : index
    %c2_83 = arith.constant 2 : index
    %c0_84 = arith.constant 0 : index
    %c0_85 = arith.constant 0 : index
    %71 = vector.load %arg7[%c2_82, %c2_83, %c0_84, %c0_85] : memref<3x3x4x4xf32, #tpu.memory_space<vmem>>, vector<1x1x4x4xf32>
    %72 = vector.shape_cast %71 : vector<1x1x4x4xf32> to vector<4x4xf32>
    %cst_86 = arith.constant dense<0.000000e+00> : vector<128x4xf32>
    %73 = tpu.matmul %70, %72, %cst_86 {dimension_numbers = #tpu.dot_dimension_numbers<[1], [0], [0], [1], [0, 0, 1, 1], [], []>} : vector<128x4xf32>, vector<4x4xf32>, vector<128x4xf32> -> vector<128x4xf32>
    %74 = arith.addf %68, %73 : vector<128x4xf32>
    %c0_87 = arith.constant 0 : index
    %c0_88 = arith.constant 0 : index
    %75 = vector.load %arg8[%c0_87, %c0_88] : memref<1x4xf32, #tpu.memory_space<vmem>>, vector<1x4xf32>
    %76 = vector.broadcast %75 : vector<1x4xf32> to vector<128x4xf32>
    %77 = arith.addf %74, %76 : vector<128x4xf32>
    %cst_89 = arith.constant 0.000000e+00 : f32
    %78 = vector.broadcast %cst_89 : f32 to vector<128x4xf32>
    %79 = arith.maximumf %77, %78 : vector<128x4xf32>
    %c0_90 = arith.constant 0 : index
    %c0_91 = arith.constant 0 : index
    %80 = vector.load %arg9[%c0_90, %c0_91] : memref<4x16xf32, #tpu.memory_space<vmem>>, vector<4x16xf32>
    %cst_92 = arith.constant dense<0.000000e+00> : vector<128x16xf32>
    %81 = tpu.matmul %79, %80, %cst_92 {dimension_numbers = #tpu.dot_dimension_numbers<[1], [0], [0], [1], [0, 0, 1, 1], [], []>} : vector<128x4xf32>, vector<4x16xf32>, vector<128x16xf32> -> vector<128x16xf32>
    %c0_93 = arith.constant 0 : index
    %c0_94 = arith.constant 0 : index
    %82 = vector.load %arg10[%c0_93, %c0_94] : memref<1x16xf32, #tpu.memory_space<vmem>>, vector<1x16xf32>
    %83 = vector.broadcast %82 : vector<1x16xf32> to vector<128x16xf32>
    %84 = arith.addf %81, %83 : vector<128x16xf32>
    %85 = vector.shape_cast %3 : vector<8x16x16xf32> to vector<128x16xf32>
    %86 = arith.addf %84, %85 : vector<128x16xf32>
    %cst_95 = arith.constant 0.000000e+00 : f32
    %87 = vector.broadcast %cst_95 : f32 to vector<128x16xf32>
    %88 = arith.maximumf %86, %87 : vector<128x16xf32>
    %89 = vector.shape_cast %88 : vector<128x16xf32> to vector<1x8x16x16xf32>
    %c0_96 = arith.constant 0 : index
    %c0_97 = arith.constant 0 : index
    %c0_98 = arith.constant 0 : index
    %c0_99 = arith.constant 0 : index
    %90 = vector.load %arg11[%c0_96, %c0_97, %c0_98, %c0_99] : memref<1x8x16x16xf32, #tpu.memory_space<vmem>>, vector<1x8x16x16xf32>
    tpu.vector_store %arg11[%c0_96, %c0_97, %c0_98, %c0_99], %89 {strides = array<i32>} : memref<1x8x16x16xf32, #tpu.memory_space<vmem>>, vector<1x8x16x16xf32>,
    return
  }
  func.func @transform_0(%arg0: i32, %arg1: i32) -> (i32, i32, i32, i32) {
    %c0_i32 = arith.constant 0 : i32
    %c0_i32_0 = arith.constant 0 : i32
    %c0_i32_1 = arith.constant 0 : i32
    return %arg0, %arg1, %c0_i32, %c0_i32_0 : i32, i32, i32, i32
  }
  func.func @transform_1(%arg0: i32, %arg1: i32) -> (i32, i32, i32, i32) {
    %c4_i32 = arith.constant 4 : i32
    %0 = arith.muli %arg1, %c4_i32 : i32
    %c1_i32 = arith.constant 1 : i32
    %1 = arith.subi %0, %c1_i32 : i32
    %c0_i32 = arith.constant 0 : i32
    %2 = arith.maxsi %1, %c0_i32 : i32
    %c0_i32_0 = arith.constant 0 : i32
    %c0_i32_1 = arith.constant 0 : i32
    %c0_i32_2 = arith.constant 0 : i32
    return %arg0, %2, %c0_i32_0, %c0_i32_1 : i32, i32, i32, i32
  }
  func.func @transform_2(%arg0: i32, %arg1: i32) -> (i32, i32, i32, i32) {
    %c1_i32 = arith.constant 1 : i32
    %0 = arith.addi %arg1, %c1_i32 : i32
    %c4_i32 = arith.constant 4 : i32
    %1 = arith.muli %0, %c4_i32 : i32
    %c7_i32 = arith.constant 7 : i32
    %2 = arith.minsi %1, %c7_i32 : i32
    %c0_i32 = arith.constant 0 : i32
    %c0_i32_0 = arith.constant 0 : i32
    %c0_i32_1 = arith.constant 0 : i32
    return %arg0, %2, %c0_i32, %c0_i32_0 : i32, i32, i32, i32
  }
  func.func @transform_3(%arg0: i32, %arg1: i32) -> (i32, i32) {
    %c0_i32 = arith.constant 0 : i32
    %c0_i32_0 = arith.constant 0 : i32
    %c0_i32_1 = arith.constant 0 : i32
    return %c0_i32, %c0_i32_0 : i32, i32
  }
  func.func @transform_4(%arg0: i32, %arg1: i32) -> (i32, i32) {
    %c0_i32 = arith.constant 0 : i32
    %c0_i32_0 = arith.constant 0 : i32
    %c0_i32_1 = arith.constant 0 : i32
    return %c0_i32, %c0_i32_0 : i32, i32
  }
  func.func @transform_5(%arg0: i32, %arg1: i32) -> (i32, i32, i32, i32) {
    %c0_i32 = arith.constant 0 : i32
    %c0_i32_0 = arith.constant 0 : i32
    %c0_i32_1 = arith.constant 0 : i32
    %c0_i32_2 = arith.constant 0 : i32
    %c0_i32_3 = arith.constant 0 : i32
    return %c0_i32, %c0_i32_0, %c0_i32_1, %c0_i32_2 : i32, i32, i32, i32
  }
  func.func @transform_6(%arg0: i32, %arg1: i32) -> (i32, i32) {
    %c0_i32 = arith.constant 0 : i32
    %c0_i32_0 = arith.constant 0 : i32
    %c0_i32_1 = arith.constant 0 : i32
    return %c0_i32, %c0_i32_0 : i32, i32
  }
  func.func @transform_7(%arg0: i32, %arg1: i32) -> (i32, i32) {
    %c0_i32 = arith.constant 0 : i32
    %c0_i32_0 = arith.constant 0 : i32
    %c0_i32_1 = arith.constant 0 : i32
    return %c0_i32, %c0_i32_0 : i32, i32
  }
  func.func @transform_8(%arg0: i32, %arg1: i32) -> (i32, i32) {
    %c0_i32 = arith.constant 0 : i32
    %c0_i32_0 = arith.constant 0 : i32
    %c0_i32_1 = arith.constant 0 : i32
    return %c0_i32, %c0_i32_0 : i32, i32
  }
  func.func @transform_9(%arg0: i32, %arg1: i32) -> (i32, i32, i32, i32) {
    %c0_i32 = arith.constant 0 : i32
    %c0_i32_0 = arith.constant 0 : i32
    %c0_i32_1 = arith.constant 0 : i32
    return %arg0, %arg1, %c0_i32, %c0_i32_0 : i32, i32, i32, i32
  }
}

</mosaic_0001>

<llo_original>
// kernel: tpu_custom_call.1
$region0: #{tpu_custom_call.1}
  #allocation0 [shape = 'u32[]', space=smem, size = 0x4, offset = 0x4, fixed_abs, tag = 'smem constant byte address 0x4 - core index']
  #allocation1 [shape = 'u32[144,128]{1,0:T(1,128)}', space=vmem, size = 0x12000, scoped, tag = 'internal scratch']
  #allocation2 [shape = 'f32[12,20,4]{2,1,0:T(8,128)}', space=vmem, size = 0x24000, scoped, tag = 'scratch operand']
  %s0 = inlined_call_operand.hbm [shape: f32[2,16,16,16], index: 0, kind: input, shape index: {}]
  %s1 = inlined_call_operand.hbm [shape: f32[2,16,16,16], index: 1, kind: input, shape index: {}]
  %s2 = inlined_call_operand.hbm [shape: f32[2,16,16,16], index: 2, kind: input, shape index: {}]
  %s3 = inlined_call_operand.vmem [shape: f32[16,4], index: 3, kind: input, shape index: {}]
  %s4 = inlined_call_operand.vmem [shape: f32[1,4], index: 4, kind: input, shape index: {}]
  %s5 = inlined_call_operand.hbm [shape: f32[3,3,4,4], index: 5, kind: input, shape index: {}]
  %s6 = inlined_call_operand.vmem [shape: f32[1,4], index: 6, kind: input, shape index: {}]
  %s7 = inlined_call_operand.vmem [shape: f32[4,16], index: 7, kind: input, shape index: {}]
  %s8 = inlined_call_operand.vmem [shape: f32[1,16], index: 8, kind: input, shape index: {}]
  %s9 = inlined_call_operand.hbm [shape: f32[2,16,16,16], index: 9, kind: output, shape index: {}]
  %s10 = sld [smem:[#allocation0]]
  $region93: #{tpu_custom_call.1} parent=0
    _
  %s12 = ssub.s32 1, %s10
  %s13 = scalar_select 0, %s12, %s10
  $region1: #{tpu_custom_call.1} parent=0
    #allocation3 [shape = 'u8[131072]{0}', space=vmem, size = 0x20000, scoped, tag = 'input window, operand 0']
    #allocation4 [shape = 's32[2]{0}', space=sflag, size = 0x8, scoped, tag = 'scoped memory for tpu_custom_call.1']
    #allocation5 [shape = 's32[2]{0}', space=sflag, size = 0x8, scoped, tag = 'scoped memory for tpu_custom_call.1']
    #allocation6 [shape = 'u8[32768]{0}', space=vmem, size = 0x8000, scoped, tag = 'input window, operand 1']
    #allocation7 [shape = 's32[2]{0}', space=sflag, size = 0x8, scoped, tag = 'scoped memory for tpu_custom_call.1']
    #allocation8 [shape = 'u8[32768]{0}', space=vmem, size = 0x8000, scoped, tag = 'input window, operand 2']
    #allocation9 [shape = 'u8[18432]{0}', space=vmem, size = 0x4800, scoped, tag = 'input window, operand 5, single buffered']
    #allocation10 [shape = 's32[1]{0}', space=sflag, size = 0x4, scoped, tag = 'scoped memory for tpu_custom_call.1']
    #allocation11 [shape = 'u8[131072]{0}', space=vmem, size = 0x20000, scoped, tag = 'output window, operand 0']
    %14 = vsyncpa [#allocation4], 0
    %s15 = scalar_lea.sflag [#allocation4], 1
    %16 = vsyncpa %s15, 0
    %17 = vsyncpa [#allocation7], 0
    %s18 = scalar_lea.sflag [#allocation7], 1
    %19 = vsyncpa %s18, 0
    %20 = vsyncpa [#allocation10], 0
    %21 = vsyncpa [#allocation5], 0
    %s22 = scalar_lea.sflag [#allocation5], 1
    %23 = vsyncpa %s22, 0
    loop: start=0, step=1, limit=6
    $region2: #{tpu_custom_call.1} parent=1 // loop_pre_header
      _
    $region3: #{tpu_custom_call.1} parent=1 // loop_header
      %s25 = sphi 0, %s29
      %p26 = scmp.ge.s32.totalorder %s25, 6
      %s32 = sphi 0, %s44
      %s33 = sphi 0, %s40
      %s34 = sphi 0, %s32
      %s35 = sphi 0, %s33
      %s36 = sphi 0, %s34
      %s37 = sphi 0, %s35
      %s49 = sphi 0, %s51
      %s52 = sphi 0, %s49
      %s53 = sphi 0, %s52
      %s69 = sphi 0, %s53
      %s85 = sphi 0, %s87
      %s88 = sphi 0, %s85
      %s89 = sphi 0, %s88
      %s105 = sphi 0, %s89
      %s121 = sphi 0, %s123
      %s124 = sphi 0, %s121
      %s125 = sphi 0, %s124
      %s141 = sphi 0, %s125
      %s145 = sphi 0, %s145
      %s147 = sphi 0, %s145
      %s148 = sphi 0, %s147
      %s162 = sphi 0, %s148
      %s166 = sphi 0, %s166
      %s168 = sphi 0, %s166
      %s169 = sphi 0, %s168
      %s183 = sphi 0, %s169
      %s187 = sphi 0, %s187
      %s189 = sphi 0, %s187
      %s190 = sphi 0, %s189
      %s204 = sphi 0, %s190
      %s208 = sphi 0, %s208
      %s210 = sphi 0, %s208
      %s211 = sphi 0, %s210
      %s225 = sphi 0, %s211
      %s229 = sphi 0, %s229
      %s231 = sphi 0, %s229
      %s232 = sphi 0, %s231
      %s246 = sphi 0, %s232
      %s250 = sphi 0, %s250
      %s252 = sphi 0, %s250
      %s253 = sphi 0, %s252
      %s267 = sphi 0, %s253
      %s275 = sphi 0, %s277
      %s278 = sphi 0, %s275
      %s279 = sphi 0, %s278
      %s295 = sphi 0, %s279
    $region4: #{tpu_custom_call.1} parent=1 // loop_header_branch
      %28 = sbr.rel (%p26) target = $region8
    $region5: #{tpu_custom_call.1} parent=1 // loop_body
      %s30 = ssub.s32 %s25, 1
      %s31 = ssub.s32 %s25, 2
      %s38 = sadd.s32 1, %s33
      %p39 = scmp.ge.s32.totalorder %s38, 2
      %s40 = scalar_select %p39, 0, %s38
      %s41 = sadd.s32 1, %s32
      %s42 = scalar_select %p39, %s41, %s32
      %p43 = scmp.ge.s32.totalorder %s42, 2
      %s44 = scalar_select %p43, 0, %s42
      %s45 = ssub.s32 %s32, %s44
      %s46 = ssub.s32 %s33, %s40
      %s47 = sor.u32 %s45, %s46
      %p48 = scmp.eq.s32.totalorder %s47, 0
      %s50 = sadd.s32 %s49, 1
      %s51 = scalar_select %p48, %s49, %s50
      %p54 = pneg %p48
      %p55 = scmp.eq.s32.totalorder %s25, 3
      %p56 = por %p54, %p55
      %p57 = scmp.ne.s32.totalorder %s49, %s52
      %p58 = scmp.eq.s32.totalorder %s25, 0
      %p59 = por %p57, %p58
      %p60 = scmp.ne.s32.totalorder %s49, %s52
      %p61 = scmp.eq.s32.totalorder %s30, 3
      %p62 = por %p60, %p61
      %p63 = scmp.ne.s32.totalorder %s52, %s53
      %p64 = scmp.eq.s32.totalorder %s30, 0
      %p65 = por %p63, %p64
      %p66 = scmp.ne.s32.totalorder %s52, %s53
      %p67 = scmp.eq.s32.totalorder %s31, 3
      %p68 = por %p66, %p67
      %p70 = scmp.ne.s32.totalorder %s53, %s69
      %p71 = scmp.eq.s32.totalorder %s31, 0
      %p72 = por %p70, %p71
      %s73 = smul.u32 %s33, 4
      %s74 = ssub.s32 %s73, 1
      %p75 = scmp.gt.s32.totalorder %s74, 0
      %s76 = scalar_select %p75, %s74, 0
      %s77 = smul.u32 %s40, 4
      %s78 = ssub.s32 %s77, 1
      %p79 = scmp.gt.s32.totalorder %s78, 0
      %s80 = scalar_select %p79, %s78, 0
      %s81 = ssub.s32 %s32, %s44
      %s82 = ssub.s32 %s76, %s80
      %s83 = sor.u32 %s81, %s82
      %p84 = scmp.eq.s32.totalorder %s83, 0
      %s86 = sadd.s32 %s85, 1
      %s87 = scalar_select %p84, %s85, %s86
      %p90 = pneg %p84
      %p91 = scmp.eq.s32.totalorder %s25, 3
      %p92 = por %p90, %p91
      %p93 = scmp.ne.s32.totalorder %s85, %s88
      %p94 = scmp.eq.s32.totalorder %s25, 0
      %p95 = por %p93, %p94
      %p96 = scmp.ne.s32.totalorder %s85, %s88
      %p97 = scmp.eq.s32.totalorder %s30, 3
      %p98 = por %p96, %p97
      %p99 = scmp.ne.s32.totalorder %s88, %s89
      %p100 = scmp.eq.s32.totalorder %s30, 0
      %p101 = por %p99, %p100
      %p102 = scmp.ne.s32.totalorder %s88, %s89
      %p103 = scmp.eq.s32.totalorder %s31, 3
      %p104 = por %p102, %p103
      %p106 = scmp.ne.s32.totalorder %s89, %s105
      %p107 = scmp.eq.s32.totalorder %s31, 0
      %p108 = por %p106, %p107
      %s109 = sadd.s32 %s33, 1
      %s110 = smul.u32 %s109, 4
      %p111 = scmp.lt.s32.totalorder %s110, 7
      %s112 = scalar_select %p111, %s110, 7
      %s113 = sadd.s32 %s40, 1
      %s114 = smul.u32 %s113, 4
      %p115 = scmp.lt.s32.totalorder %s114, 7
      %s116 = scalar_select %p115, %s114, 7
      %s117 = ssub.s32 %s32, %s44
      %s118 = ssub.s32 %s112, %s116
      %s119 = sor.u32 %s117, %s118
      %p120 = scmp.eq.s32.totalorder %s119, 0
      %s122 = sadd.s32 %s121, 1
      %s123 = scalar_select %p120, %s121, %s122
      %p126 = pneg %p120
      %p127 = scmp.eq.s32.totalorder %s25, 3
      %p128 = por %p126, %p127
      %p129 = scmp.ne.s32.totalorder %s121, %s124
      %p130 = scmp.eq.s32.totalorder %s25, 0
      %p131 = por %p129, %p130
      %p132 = scmp.ne.s32.totalorder %s121, %s124
      %p133 = scmp.eq.s32.totalorder %s30, 3
      %p134 = por %p132, %p133
      %p135 = scmp.ne.s32.totalorder %s124, %s125
      %p136 = scmp.eq.s32.totalorder %s30, 0
      %p137 = por %p135, %p136
      %p138 = scmp.ne.s32.totalorder %s124, %s125
      %p139 = scmp.eq.s32.totalorder %s31, 3
      %p140 = por %p138, %p139
      %p142 = scmp.ne.s32.totalorder %s125, %s141
      %p143 = scmp.eq.s32.totalorder %s31, 0
      %p144 = por %p142, %p143
      %s146 = sadd.s32 %s145, 1
      %p149 = scmp.eq.s32.totalorder %s25, 3
      %p150 = scmp.ne.s32.totalorder %s145, %s147
      %p151 = scmp.eq.s32.totalorder %s25, 0
      %p152 = por %p150, %p151
      %p153 = scmp.ne.s32.totalorder %s145, %s147
      %p154 = scmp.eq.s32.totalorder %s30, 3
      %p155 = por %p153, %p154
      %p156 = scmp.ne.s32.totalorder %s147, %s148
      %p157 = scmp.eq.s32.totalorder %s30, 0
      %p158 = por %p156, %p157
      %p159 = scmp.ne.s32.totalorder %s147, %s148
      %p160 = scmp.eq.s32.totalorder %s31, 3
      %p161 = por %p159, %p160
      %p163 = scmp.ne.s32.totalorder %s148, %s162
      %p164 = scmp.eq.s32.totalorder %s31, 0
      %p165 = por %p163, %p164
      %s167 = sadd.s32 %s166, 1
      %p170 = scmp.eq.s32.totalorder %s25, 3
      %p171 = scmp.ne.s32.totalorder %s166, %s168
      %p172 = scmp.eq.s32.totalorder %s25, 0
      %p173 = por %p171, %p172
      %p174 = scmp.ne.s32.totalorder %s166, %s168
      %p175 = scmp.eq.s32.totalorder %s30, 3
      %p176 = por %p174, %p175
      %p177 = scmp.ne.s32.totalorder %s168, %s169
      %p178 = scmp.eq.s32.totalorder %s30, 0
      %p179 = por %p177, %p178
      %p180 = scmp.ne.s32.totalorder %s168, %s169
      %p181 = scmp.eq.s32.totalorder %s31, 3
      %p182 = por %p180, %p181
      %p184 = scmp.ne.s32.totalorder %s169, %s183
      %p185 = scmp.eq.s32.totalorder %s31, 0
      %p186 = por %p184, %p185
      %s188 = sadd.s32 %s187, 1
      %p191 = scmp.eq.s32.totalorder %s25, 3
      %p192 = scmp.ne.s32.totalorder %s187, %s189
      %p193 = scmp.eq.s32.totalorder %s25, 0
      %p194 = por %p192, %p193
      %p195 = scmp.ne.s32.totalorder %s187, %s189
      %p196 = scmp.eq.s32.totalorder %s30, 3
      %p197 = por %p195, %p196
      %p198 = scmp.ne.s32.totalorder %s189, %s190
      %p199 = scmp.eq.s32.totalorder %s30, 0
      %p200 = por %p198, %p199
      %p201 = scmp.ne.s32.totalorder %s189, %s190
      %p202 = scmp.eq.s32.totalorder %s31, 3
      %p203 = por %p201, %p202
      %p205 = scmp.ne.s32.totalorder %s190, %s204
      %p206 = scmp.eq.s32.totalorder %s31, 0
      %p207 = por %p205, %p206
      %s209 = sadd.s32 %s208, 1
      %p212 = scmp.eq.s32.totalorder %s25, 3
      %p213 = scmp.ne.s32.totalorder %s208, %s210
      %p214 = scmp.eq.s32.totalorder %s25, 0
      %p215 = por %p213, %p214
      %p216 = scmp.ne.s32.totalorder %s208, %s210
      %p217 = scmp.eq.s32.totalorder %s30, 3
      %p218 = por %p216, %p217
      %p219 = scmp.ne.s32.totalorder %s210, %s211
      %p220 = scmp.eq.s32.totalorder %s30, 0
      %p221 = por %p219, %p220
      %p222 = scmp.ne.s32.totalorder %s210, %s211
      %p223 = scmp.eq.s32.totalorder %s31, 3
      %p224 = por %p222, %p223
      %p226 = scmp.ne.s32.totalorder %s211, %s225
      %p227 = scmp.eq.s32.totalorder %s31, 0
      %p228 = por %p226, %p227
      %s230 = sadd.s32 %s229, 1
      %p233 = scmp.eq.s32.totalorder %s25, 3
      %p234 = scmp.ne.s32.totalorder %s229, %s231
      %p235 = scmp.eq.s32.totalorder %s25, 0
      %p236 = por %p234, %p235
      %p237 = scmp.ne.s32.totalorder %s229, %s231
      %p238 = scmp.eq.s32.totalorder %s30, 3
      %p239 = por %p237, %p238
      %p240 = scmp.ne.s32.totalorder %s231, %s232
      %p241 = scmp.eq.s32.totalorder %s30, 0
      %p242 = por %p240, %p241
      %p243 = scmp.ne.s32.totalorder %s231, %s232
      %p244 = scmp.eq.s32.totalorder %s31, 3
      %p245 = por %p243, %p244
      %p247 = scmp.ne.s32.totalorder %s232, %s246
      %p248 = scmp.eq.s32.totalorder %s31, 0
      %p249 = por %p247, %p248
      %s251 = sadd.s32 %s250, 1
      %p254 = scmp.eq.s32.totalorder %s25, 3
      %p255 = scmp.ne.s32.totalorder %s250, %s252
      %p256 = scmp.eq.s32.totalorder %s25, 0
      %p257 = por %p255, %p256
      %p258 = scmp.ne.s32.totalorder %s250, %s252
      %p259 = scmp.eq.s32.totalorder %s30, 3
      %p260 = por %p258, %p259
      %p261 = scmp.ne.s32.totalorder %s252, %s253
      %p262 = scmp.eq.s32.totalorder %s30, 0
      %p263 = por %p261, %p262
      %p264 = scmp.ne.s32.totalorder %s252, %s253
      %p265 = scmp.eq.s32.totalorder %s31, 3
      %p266 = por %p264, %p265
      %p268 = scmp.ne.s32.totalorder %s253, %s267
      %p269 = scmp.eq.s32.totalorder %s31, 0
      %p270 = por %p268, %p269
      %s271 = ssub.s32 %s32, %s44
      %s272 = ssub.s32 %s33, %s40
      %s273 = sor.u32 %s271, %s272
      %p274 = scmp.eq.s32.totalorder %s273, 0
      %s276 = sadd.s32 %s275, 1
      %s277 = scalar_select %p274, %s275, %s276
      %p280 = pneg %p274
      %p281 = scmp.eq.s32.totalorder %s25, 3
      %p282 = por %p280, %p281
      %p283 = scmp.ne.s32.totalorder %s275, %s278
      %p284 = scmp.eq.s32.totalorder %s25, 0
      %p285 = por %p283, %p284
      %p286 = scmp.ne.s32.totalorder %s275, %s278
      %p287 = scmp.eq.s32.totalorder %s30, 3
      %p288 = por %p286, %p287
      %p289 = scmp.ne.s32.totalorder %s278, %s279
      %p290 = scmp.eq.s32.totalorder %s30, 0
      %p291 = por %p289, %p290
      %p292 = scmp.ne.s32.totalorder %s278, %s279
      %p293 = scmp.eq.s32.totalorder %s31, 3
      %p294 = por %p292, %p293
      %p296 = scmp.ne.s32.totalorder %s279, %s295
      %p297 = scmp.eq.s32.totalorder %s31, 0
      %p298 = por %p296, %p297
      %p299 = scmp.le.s32.totalorder 1, %s25
      %p300 = scmp.lt.s32.totalorder %s25, 5
      %p301 = pnand %p299, %p300
      %p302 = pneg %p301
      // Predicated region
      $region9: #{tpu_custom_call.1} parent=5 // pred_check
        _
      $region10: #{tpu_custom_call.1} parent=5 // pred_check_branch
        %304 = sbr.rel (%p301) target = $region12
      $region11: #{tpu_custom_call.1} parent=5 // pred_region
        %s305 = ssub.s32 %s25, 1
        // Predicated region
        $region13: #{tpu_custom_call.1} parent=11 // pred_check
          %p306 = pneg %p158
        $region14: #{tpu_custom_call.1} parent=11 // pred_check_branch
          %308 = sbr.rel (%p306) target = $region16
        $region15: #{tpu_custom_call.1} parent=11 // pred_region
          _
        $region16: #{tpu_custom_call.1} parent=11 // pred_fallthru
          _
        // Predicated region
        $region17: #{tpu_custom_call.1} parent=11 // pred_check
          %p309 = pneg %p179
        $region18: #{tpu_custom_call.1} parent=11 // pred_check_branch
          %311 = sbr.rel (%p309) target = $region20
        $region19: #{tpu_custom_call.1} parent=11 // pred_region
          _
        $region20: #{tpu_custom_call.1} parent=11 // pred_fallthru
          _
        // Predicated region
        $region21: #{tpu_custom_call.1} parent=11 // pred_check
          %p312 = pneg %p200
        $region22: #{tpu_custom_call.1} parent=11 // pred_check_branch
          %314 = sbr.rel (%p312) target = $region24
        $region23: #{tpu_custom_call.1} parent=11 // pred_region
          %s316 = ssub.s32 576, 576
          %317 = vsyncadd [#allocation10], %s316
          %s318 = sshll.u32 [#allocation9], 4
          %s319 = int_to_ptr.vmem [resolvable:$true] %s318
          %324 = dma.hbm_to_vmem [thread:$0]  %s5, 576, %s319, [#allocation10], 64, 64, 4
        $region24: #{tpu_custom_call.1} parent=11 // pred_fallthru
          _
        // Predicated region
        $region25: #{tpu_custom_call.1} parent=11 // pred_check
          %p325 = pneg %p221
        $region26: #{tpu_custom_call.1} parent=11 // pred_check_branch
          %327 = sbr.rel (%p325) target = $region28
        $region27: #{tpu_custom_call.1} parent=11 // pred_region
          _
        $region28: #{tpu_custom_call.1} parent=11 // pred_fallthru
          _
        // Predicated region
        $region29: #{tpu_custom_call.1} parent=11 // pred_check
          %p328 = pneg %p242
        $region30: #{tpu_custom_call.1} parent=11 // pred_check_branch
          %330 = sbr.rel (%p328) target = $region32
        $region31: #{tpu_custom_call.1} parent=11 // pred_region
          _
        $region32: #{tpu_custom_call.1} parent=11 // pred_fallthru
          _
        // Predicated region
        $region33: #{tpu_custom_call.1} parent=11 // pred_check
          %p331 = pneg %p263
        $region34: #{tpu_custom_call.1} parent=11 // pred_check_branch
          %333 = sbr.rel (%p331) target = $region36
        $region35: #{tpu_custom_call.1} parent=11 // pred_region
          _
        $region36: #{tpu_custom_call.1} parent=11 // pred_fallthru
          _
      $region12: #{tpu_custom_call.1} parent=5 // pred_fallthru
        _
      %p334 = scmp.lt.s32.totalorder %s25, 4
      // Predicated region
      $region37: #{tpu_custom_call.1} parent=5 // pred_check
        %p335 = pneg %p334
      $region38: #{tpu_custom_call.1} parent=5 // pred_check_branch
        %337 = sbr.rel (%p335) target = $region40
      $region39: #{tpu_custom_call.1} parent=5 // pred_region
        // Predicated region
        $region41: #{tpu_custom_call.1} parent=39 // pred_check
          %p338 = pneg %p59
        $region42: #{tpu_custom_call.1} parent=39 // pred_check_branch
          %340 = sbr.rel (%p338) target = $region44
        $region43: #{tpu_custom_call.1} parent=39 // pred_region
          %s341 = sand.u32 %s49, 1
          %s342 = scalar_lea.sflag [#allocation4], %s341
          %s343 = sand.u32 %s49, 1
          %s344 = smul.addr %s343, 128
          %s345 = scalar_lea.vmem [#allocation3], %s344
          %s346 = smul.u32 8, %s33
          %s348 = ssub.s32 2048, 2048
          %349 = vsyncadd %s342, %s348
          %s350 = smul.addr %s346, 2
          %s351 = smul.addr %s32, 32
          %s352 = sadd.s32 %s350, %s351
          %s353 = smul.addr %s352, 128
          %s354 = scalar_lea.hbm %s0, %s353
          %s355 = sshll.u32 %s345, 4
          %s356 = int_to_ptr.vmem [resolvable:$true] %s355
          %361 = dma.hbm_to_vmem [thread:$0]  %s354, 2048, %s356, %s342, 128, 128, 8
        $region44: #{tpu_custom_call.1} parent=39 // pred_fallthru
          _
        // Predicated region
        $region45: #{tpu_custom_call.1} parent=39 // pred_check
          %p362 = pneg %p95
        $region46: #{tpu_custom_call.1} parent=39 // pred_check_branch
          %364 = sbr.rel (%p362) target = $region48
        $region47: #{tpu_custom_call.1} parent=39 // pred_region
          %s365 = sand.u32 %s25, 1
          %s366 = scalar_lea.sflag [#allocation7], %s365
          %s367 = sand.u32 %s85, 1
          %s368 = smul.addr %s367, 32
          %s369 = scalar_lea.vmem [#allocation6], %s368
          %s370 = smul.u32 %s33, 4
          %s371 = ssub.s32 %s370, 1
          %p372 = scmp.gt.s32.totalorder %s371, 0
          %s373 = scalar_select %p372, %s371, 0
          %s374 = smul.u32 2, %s373
          %s376 = ssub.s32 512, 512
          %377 = vsyncadd %s366, %s376
          %s378 = smul.addr %s374, 2
          %s379 = smul.addr %s32, 32
          %s380 = sadd.s32 %s378, %s379
          %s381 = smul.addr %s380, 128
          %s382 = scalar_lea.hbm %s1, %s381
          %s383 = sshll.u32 %s369, 4
          %s384 = int_to_ptr.vmem [resolvable:$true] %s383
          %389 = dma.hbm_to_vmem [thread:$0]  %s382, 512, %s384, %s366, 128, 128, 8
        $region48: #{tpu_custom_call.1} parent=39 // pred_fallthru
          _
        // Predicated region
        $region49: #{tpu_custom_call.1} parent=39 // pred_check
          %p390 = pneg %p131
        $region50: #{tpu_custom_call.1} parent=39 // pred_check_branch
          %392 = sbr.rel (%p390) target = $region52
        $region51: #{tpu_custom_call.1} parent=39 // pred_region
          %s393 = sand.u32 %s25, 1
          %s394 = scalar_lea.sflag [#allocation7], %s393
          %s395 = sand.u32 %s121, 1
          %s396 = smul.addr %s395, 32
          %s397 = scalar_lea.vmem [#allocation8], %s396
          %s398 = sadd.s32 %s33, 1
          %s399 = smul.u32 %s398, 4
          %p400 = scmp.lt.s32.totalorder %s399, 7
          %s401 = scalar_select %p400, %s399, 7
          %s402 = smul.u32 2, %s401
          %s404 = ssub.s32 512, 512
          %405 = vsyncadd %s394, %s404
          %s406 = smul.addr %s402, 2
          %s407 = smul.addr %s32, 32
          %s408 = sadd.s32 %s406, %s407
          %s409 = smul.addr %s408, 128
          %s410 = scalar_lea.hbm %s2, %s409
          %s411 = sshll.u32 %s397, 4
          %s412 = int_to_ptr.vmem [resolvable:$true] %s411
          %417 = dma.hbm_to_vmem [thread:$0]  %s410, 512, %s412, %s394, 128, 128, 8
        $region52: #{tpu_custom_call.1} parent=39 // pred_fallthru
          _
      $region40: #{tpu_custom_call.1} parent=5 // pred_fallthru
        _
      %p418 = scmp.le.s32.totalorder 1, %s25
      %p419 = scmp.lt.s32.totalorder %s25, 5
      %p420 = pnand %p418, %p419
      %p421 = pneg %p420
      // Predicated region
      $region53: #{tpu_custom_call.1} parent=5 // pred_check
        _
      $region54: #{tpu_custom_call.1} parent=5 // pred_check_branch
        %423 = sbr.rel (%p420) target = $region56
      $region55: #{tpu_custom_call.1} parent=5 // pred_region
        %s424 = ssub.s32 %s25, 1
        %s425 = sand.u32 %s52, 1
        %s426 = scalar_lea.sflag [#allocation4], %s425
        %s427 = sand.u32 %s52, 1
        %s428 = smul.addr %s427, 128
        %s429 = scalar_lea.vmem [#allocation3], %s428
        // Predicated region
        $region57: #{tpu_custom_call.1} parent=55 // pred_check
          %p430 = pneg %p65
        $region58: #{tpu_custom_call.1} parent=55 // pred_check_branch
          %432 = sbr.rel (%p430) target = $region60
        $region59: #{tpu_custom_call.1} parent=55 // pred_region
          %433 = dma.done %s426, 2048
        $region60: #{tpu_custom_call.1} parent=55 // pred_fallthru
          _
        %s434 = sand.u32 %s30, 1
        %s435 = scalar_lea.sflag [#allocation7], %s434
        %s436 = sand.u32 %s88, 1
        %s437 = smul.addr %s436, 32
        %s438 = scalar_lea.vmem [#allocation6], %s437
        // Predicated region
        $region61: #{tpu_custom_call.1} parent=55 // pred_check
          %p439 = pneg %p101
        $region62: #{tpu_custom_call.1} parent=55 // pred_check_branch
          %441 = sbr.rel (%p439) target = $region64
        $region63: #{tpu_custom_call.1} parent=55 // pred_region
          %442 = dma.done %s435, 512
        $region64: #{tpu_custom_call.1} parent=55 // pred_fallthru
          _
        %s443 = sand.u32 %s30, 1
        %s444 = scalar_lea.sflag [#allocation7], %s443
        %s445 = sand.u32 %s124, 1
        %s446 = smul.addr %s445, 32
        %s447 = scalar_lea.vmem [#allocation8], %s446
        // Predicated region
        $region65: #{tpu_custom_call.1} parent=55 // pred_check
          %p448 = pneg %p137
        $region66: #{tpu_custom_call.1} parent=55 // pred_check_branch
          %450 = sbr.rel (%p448) target = $region68
        $region67: #{tpu_custom_call.1} parent=55 // pred_region
          %451 = dma.done %s444, 512
        $region68: #{tpu_custom_call.1} parent=55 // pred_fallthru
          _
        // Predicated region
        $region69: #{tpu_custom_call.1} parent=55 // pred_check
          %p452 = pneg %p200
        $region70: #{tpu_custom_call.1} parent=55 // pred_check_branch
          %454 = sbr.rel (%p452) target = $region72
        $region71: #{tpu_custom_call.1} parent=55 // pred_region
          %455 = dma.done [#allocation10], 576
        $region72: #{tpu_custom_call.1} parent=55 // pred_fallthru
          _
        %s456 = sand.u32 %s52, 1
        %s457 = scalar_lea.sflag [#allocation4], %s456
        %s458 = sand.u32 %s52, 1
        %s459 = smul.addr %s458, 128
        %s460 = scalar_lea.vmem [#allocation3], %s459
        %p461 = pneg %p65
        %p462 = pneg %p62
        %s463 = sand.u32 %s30, 1
        %s464 = scalar_lea.sflag [#allocation7], %s463
        %s465 = sand.u32 %s88, 1
        %s466 = smul.addr %s465, 32
        %s467 = scalar_lea.vmem [#allocation6], %s466
        %p468 = pneg %p101
        %p469 = pneg %p98
        %s470 = sand.u32 %s30, 1
        %s471 = scalar_lea.sflag [#allocation7], %s470
        %s472 = sand.u32 %s124, 1
        %s473 = smul.addr %s472, 32
        %s474 = scalar_lea.vmem [#allocation8], %s473
        %p475 = pneg %p137
        %p476 = pneg %p134
        %p477 = pneg %p158
        %p478 = pneg %p155
        %p479 = pneg %p179
        %p480 = pneg %p176
        %p481 = pneg %p200
        %p482 = pneg %p197
        %p483 = pneg %p221
        %p484 = pneg %p218
        %p485 = pneg %p242
        %p486 = pneg %p239
        %p487 = pneg %p263
        %p488 = pneg %p260
        %p489 = pneg %p291
        %p490 = pneg %p288
        %s491 = sand.u32 %s278, 1
        %s492 = scalar_lea.sflag [#allocation5], %s491
        %s493 = sand.u32 %s278, 1
        %s494 = smul.addr %s493, 128
        %s495 = scalar_lea.vmem [#allocation11], %s494
        %s496 = smul.u32 8, %s35
        %s497 = smul.u32 %s35, 4
        %s498 = ssub.s32 %s497, 1
        %p499 = scmp.gt.s32.totalorder %s498, 0
        %s500 = scalar_select %p499, %s498, 0
        %s501 = smul.u32 2, %s500
        %s502 = sadd.s32 %s35, 1
        %s503 = smul.u32 %s502, 4
        %p504 = scmp.lt.s32.totalorder %s503, 7
        %s505 = scalar_select %p504, %s503, 7
        %s506 = smul.u32 2, %s505
        %s507 = smul.u32 8, %s35
        %vm508 = vcmask 31744
        %509 = vst.msk [vmem:[#allocation2] sm:$0xff] %vm508, 0.0
        %510 = vst.msk [vmem:[#allocation2 + $0x8] sm:$0xff] %vm508, 0.0
        %vm511 = vcmask 27648
        %512 = vst.msk [vmem:[#allocation2 + $0x10] sm:$0xf] %vm511, 0.0
        %513 = vst.msk [vmem:[#allocation2 + $0x18] sm:$0xff] %vm508, 0.0
        %514 = vst.msk [vmem:[#allocation2 + $0x20] sm:$0xff] %vm508, 0.0
        %515 = vst.msk [vmem:[#allocation2 + $0x28] sm:$0xf] %vm511, 0.0
        %516 = vst.msk [vmem:[#allocation2 + $0x30] sm:$0xff] %vm508, 0.0
        %517 = vst.msk [vmem:[#allocation2 + $0x38] sm:$0xff] %vm508, 0.0
        %518 = vst.msk [vmem:[#allocation2 + $0x40] sm:$0xf] %vm511, 0.0
        %519 = vst.msk [vmem:[#allocation2 + $0x48] sm:$0xff] %vm508, 0.0
        %520 = vst.msk [vmem:[#allocation2 + $0x50] sm:$0xff] %vm508, 0.0
        %521 = vst.msk [vmem:[#allocation2 + $0x58] sm:$0xf] %vm511, 0.0
        %522 = vst.msk [vmem:[#allocation2 + $0x60] sm:$0xff] %vm508, 0.0
        %523 = vst.msk [vmem:[#allocation2 + $0x68] sm:$0xff] %vm508, 0.0
        %524 = vst.msk [vmem:[#allocation2 + $0x70] sm:$0xf] %vm511, 0.0
        %525 = vst.msk [vmem:[#allocation2 + $0x78] sm:$0xff] %vm508, 0.0
        %526 = vst.msk [vmem:[#allocation2 + $0x80] sm:$0xff] %vm508, 0.0
        %527 = vst.msk [vmem:[#allocation2 + $0x88] sm:$0xf] %vm511, 0.0
        %528 = vst.msk [vmem:[#allocation2 + $0x90] sm:$0xff] %vm508, 0.0
        %529 = vst.msk [vmem:[#allocation2 + $0x98] sm:$0xff] %vm508, 0.0
        %530 = vst.msk [vmem:[#allocation2 + $0xa0] sm:$0xf] %vm511, 0.0
        %531 = vst.msk [vmem:[#allocation2 + $0xa8] sm:$0xff] %vm508, 0.0
        %532 = vst.msk [vmem:[#allocation2 + $0xb0] sm:$0xff] %vm508, 0.0
        %533 = vst.msk [vmem:[#allocation2 + $0xb8] sm:$0xf] %vm511, 0.0
        %534 = vst.msk [vmem:[#allocation2 + $0xc0] sm:$0xff] %vm508, 0.0
        %535 = vst.msk [vmem:[#allocation2 + $0xc8] sm:$0xff] %vm508, 0.0
        %536 = vst.msk [vmem:[#allocation2 + $0xd0] sm:$0xf] %vm511, 0.0
        %537 = vst.msk [vmem:[#allocation2 + $0xd8] sm:$0xff] %vm508, 0.0
        %538 = vst.msk [vmem:[#allocation2 + $0xe0] sm:$0xff] %vm508, 0.0
        %539 = vst.msk [vmem:[#allocation2 + $0xe8] sm:$0xf] %vm511, 0.0
        %540 = vst.msk [vmem:[#allocation2 + $0xf0] sm:$0xff] %vm508, 0.0
        %541 = vst.msk [vmem:[#allocation2 + $0xf8] sm:$0xff] %vm508, 0.0
        %542 = vst.msk [vmem:[#allocation2 + $0x100] sm:$0xf] %vm511, 0.0
        %543 = vst.msk [vmem:[#allocation2 + $0x108] sm:$0xff] %vm508, 0.0
        %544 = vst.msk [vmem:[#allocation2 + $0x110] sm:$0xff] %vm508, 0.0
        %545 = vst.msk [vmem:[#allocation2 + $0x118] sm:$0xf] %vm511, 0.0
        %v546 = vld [vmem:[%s429] sm:$0xff]
        %v547 = vld [vmem:[%s429 + $0x8] sm:$0xff]
        %v548 = vld [vmem:[%s429 + $0x10] sm:$0xff]
        %v549 = vld [vmem:[%s429 + $0x18] sm:$0xff]
        %v550 = vld [vmem:[%s429 + $0x20] sm:$0xff]
        %v551 = vld [vmem:[%s429 + $0x28] sm:$0xff]
        %v552 = vld [vmem:[%s429 + $0x30] sm:$0xff]
        %v553 = vld [vmem:[%s429 + $0x38] sm:$0xff]
        %v554 = vld [vmem:[%s429 + $0x40] sm:$0xff]
        %v555 = vld [vmem:[%s429 + $0x48] sm:$0xff]
        %v556 = vld [vmem:[%s429 + $0x50] sm:$0xff]
        %v557 = vld [vmem:[%s429 + $0x58] sm:$0xff]
        %v558 = vld [vmem:[%s429 + $0x60] sm:$0xff]
        %v559 = vld [vmem:[%s429 + $0x68] sm:$0xff]
        %v560 = vld [vmem:[%s429 + $0x70] sm:$0xff]
        %v561 = vld [vmem:[%s429 + $0x78] sm:$0xff]
        %v562 = vld [vmem:[%s3] sm:$0xff]
        %v563 = vld [vmem:[%s3 + $0x8] sm:$0xff]
        %v564 = vld [vmem:[%s4] sm:$0x1]
        %v566 = vlaneseq
        %v567 = vshrl.u32 %v566, 7
        %v568 = vsub.s32 0, %v567
        %v569 = vrot.slane %v564, %v568
        %vm571 = vcmask 130048
        %v573 = vsel %vm571, %v546, 0
        %v576 = vsel %vm571, %v547, 0
        %v579 = vsel %vm571, %v548, 0
        %v582 = vsel %vm571, %v549, 0
        %v585 = vsel %vm571, %v550, 0
        %v588 = vsel %vm571, %v551, 0
        %v591 = vsel %vm571, %v552, 0
        %v594 = vsel %vm571, %v553, 0
        %v597 = vsel %vm571, %v554, 0
        %v600 = vsel %vm571, %v555, 0
        %v603 = vsel %vm571, %v556, 0
        %v606 = vsel %vm571, %v557, 0
        %v609 = vsel %vm571, %v558, 0
        %v612 = vsel %vm571, %v559, 0
        %v615 = vsel %vm571, %v560, 0
        %v618 = vsel %vm571, %v561, 0
        %620 = vmatprep.subr.mxu0 0.0
        %621 = vmatpush1.msra.mxu0 0.0
        %622 = vmatprep.subr.mxu0 0.0
        %623 = vmatpush1.msra.mxu0 0.0
        %624 = vmatprep.subr.mxu0 0.0
        %625 = vmatpush1.msra.mxu0 0.0
        %626 = vmatprep.subr.mxu0 0.0
        %627 = vmatpush1.msra.mxu0 0.0
        %628 = vmatprep.subr.mxu0 0.0
        %629 = vmatpush1.msra.mxu0 0.0
        %630 = vmatprep.subr.mxu0 0.0
        %631 = vmatpush1.msra.mxu0 0.0
        %632 = vmatprep.subr.mxu0 0.0
        %633 = vmatpush1.msra.mxu0 0.0
        %634 = vmatprep.subr.mxu0 0.0
        %635 = vmatpush1.msra.mxu0 0.0
        %636 = vmatprep.subr.mxu0 0.0
        %637 = vmatpush1.msra.mxu0 0.0
        %638 = vmatprep.subr.mxu0 0.0
        %639 = vmatpush1.msra.mxu0 0.0
        %640 = vmatprep.subr.mxu0 0.0
        %641 = vmatpush1.msra.mxu0 0.0
        %642 = vmatprep.subr.mxu0 0.0
        %643 = vmatpush1.msra.mxu0 0.0
        %644 = vmatprep.subr.mxu0 0.0
        %645 = vmatpush1.msra.mxu0 0.0
        %646 = vmatprep.subr.mxu0 0.0
        %647 = vmatpush1.msra.mxu0 0.0
        %648 = vmatprep.subr.mxu0 0.0
        %649 = vmatpush1.msra.mxu0 %v563
        %650 = vmatprep.subr.mxu0 0.0
        %651 = vmatpush1.msra.mxu0 %v562
        %652 = vmatprep.subr.mxu0 0.0
        %653 = vmatpush2.msra.mxu0 0.0
        %654 = vmatprep.subr.mxu0 0.0
        %655 = vmatpush2.msra.mxu0 0.0
        %656 = vmatprep.subr.mxu0 0.0
        %657 = vmatpush2.msra.mxu0 0.0
        %658 = vmatprep.subr.mxu0 0.0
        %659 = vmatpush2.msra.mxu0 0.0
        %660 = vmatprep.subr.mxu0 0.0
        %661 = vmatpush2.msra.mxu0 0.0
        %662 = vmatprep.subr.mxu0 0.0
        %663 = vmatpush2.msra.mxu0 0.0
        %664 = vmatprep.subr.mxu0 0.0
        %665 = vmatpush2.msra.mxu0 0.0
        %666 = vmatprep.subr.mxu0 0.0
        %667 = vmatpush2.msra.mxu0 0.0
        %668 = vmatprep.subr.mxu0 0.0
        %669 = vmatpush2.msra.mxu0 0.0
        %670 = vmatprep.subr.mxu0 0.0
        %671 = vmatpush2.msra.mxu0 0.0
        %672 = vmatprep.subr.mxu0 0.0
        %673 = vmatpush2.msra.mxu0 0.0
        %674 = vmatprep.subr.mxu0 0.0
        %675 = vmatpush2.msra.mxu0 0.0
        %676 = vmatprep.subr.mxu0 0.0
        %677 = vmatpush2.msra.mxu0 0.0
        %678 = vmatprep.subr.mxu0 0.0
        %679 = vmatpush2.msra.mxu0 0.0
        %680 = vmatprep.subr.mxu0 0.0
        %681 = vmatpush2.msra.mxu0 0.0
        %682 = vmatprep.subr.mxu0 0.0
        %683 = vmatpush2.msra.mxu0 0.0
        %684 = vmatprep.mubr.f32.mxu0 0.0
        %685 = vmatmul.mubr.f32.gmra.mxu0 %v573
        %v686 = vpop.f32.mrf.mxu0
        %v687 = vadd.f32 %v569, %v686
        %v688 = vpop.f32.mrf.mxu0
        %689 = vmatprep.mubr.f32.mxu0 0.0
        %690 = vmatmul.mubr.f32.gmra.mxu0 %v576
        %v691 = vpop.f32.mrf.mxu0
        %v692 = vadd.f32 %v569, %v691
        %v693 = vpop.f32.mrf.mxu0
        %694 = vmatprep.mubr.f32.mxu0 0.0
        %695 = vmatmul.mubr.f32.gmra.mxu0 %v579
        %v696 = vpop.f32.mrf.mxu0
        %v697 = vadd.f32 %v569, %v696
        %v698 = vpop.f32.mrf.mxu0
        %699 = vmatprep.mubr.f32.mxu0 0.0
        %700 = vmatmul.mubr.f32.gmra.mxu0 %v582
        %v701 = vpop.f32.mrf.mxu0
        %v702 = vadd.f32 %v569, %v701
        %v703 = vpop.f32.mrf.mxu0
        %704 = vmatprep.mubr.f32.mxu0 0.0
        %705 = vmatmul.mubr.f32.gmra.mxu0 %v585
        %v706 = vpop.f32.mrf.mxu0
        %v707 = vadd.f32 %v569, %v706
        %v708 = vpop.f32.mrf.mxu0
        %709 = vmatprep.mubr.f32.mxu0 0.0
        %710 = vmatmul.mubr.f32.gmra.mxu0 %v588
        %v711 = vpop.f32.mrf.mxu0
        %v712 = vadd.f32 %v569, %v711
        %v713 = vpop.f32.mrf.mxu0
        %714 = vmatprep.mubr.f32.mxu0 0.0
        %715 = vmatmul.mubr.f32.gmra.mxu0 %v591
        %v716 = vpop.f32.mrf.mxu0
        %v717 = vadd.f32 %v569, %v716
        %v718 = vpop.f32.mrf.mxu0
        %719 = vmatprep.mubr.f32.mxu0 0.0
        %720 = vmatmul.mubr.f32.gmra.mxu0 %v594
        %v721 = vpop.f32.mrf.mxu0
        %v722 = vadd.f32 %v569, %v721
        %v723 = vpop.f32.mrf.mxu0
        %724 = vmatprep.mubr.f32.mxu0 0.0
        %725 = vmatmul.mubr.f32.gmra.mxu0 %v597
        %v726 = vpop.f32.mrf.mxu0
        %v727 = vadd.f32 %v569, %v726
        %v728 = vpop.f32.mrf.mxu0
        %729 = vmatprep.mubr.f32.mxu0 0.0
        %730 = vmatmul.mubr.f32.gmra.mxu0 %v600
        %v731 = vpop.f32.mrf.mxu0
        %v732 = vadd.f32 %v569, %v731
        %v733 = vpop.f32.mrf.mxu0
        %734 = vmatprep.mubr.f32.mxu0 0.0
        %735 = vmatmul.mubr.f32.gmra.mxu0 %v603
        %v736 = vpop.f32.mrf.mxu0
        %v737 = vadd.f32 %v569, %v736
        %v738 = vpop.f32.mrf.mxu0
        %739 = vmatprep.mubr.f32.mxu0 0.0
        %740 = vmatmul.mubr.f32.gmra.mxu0 %v606
        %v741 = vpop.f32.mrf.mxu0
        %v742 = vadd.f32 %v569, %v741
        %v743 = vpop.f32.mrf.mxu0
        %744 = vmatprep.mubr.f32.mxu0 0.0
        %745 = vmatmul.mubr.f32.gmra.mxu0 %v609
        %v746 = vpop.f32.mrf.mxu0
        %v747 = vadd.f32 %v569, %v746
        %v748 = vpop.f32.mrf.mxu0
        %749 = vmatprep.mubr.f32.mxu0 0.0
        %750 = vmatmul.mubr.f32.gmra.mxu0 %v612
        %v751 = vpop.f32.mrf.mxu0
        %v752 = vadd.f32 %v569, %v751
        %v753 = vpop.f32.mrf.mxu0
        %754 = vmatprep.mubr.f32.mxu0 0.0
        %755 = vmatmul.mubr.f32.gmra.mxu0 %v615
        %v756 = vpop.f32.mrf.mxu0
        %v757 = vadd.f32 %v569, %v756
        %v758 = vpop.f32.mrf.mxu0
        %759 = vmatprep.mubr.f32.mxu0 0.0
        %760 = vmatmul.mubr.f32.gmra.mxu0 %v618
        %v761 = vpop.f32.mrf.mxu0
        %v762 = vadd.f32 %v569, %v761
        %v763 = vpop.f32.mrf.mxu0
        %764 = vdwg.mxu0
        %v765 = vmax.f32 %v687, 0.0
        %v766 = vmax.f32 %v692, 0.0
        %v767 = vmax.f32 %v697, 0.0
        %v768 = vmax.f32 %v702, 0.0
        %v769 = vmax.f32 %v707, 0.0
        %v770 = vmax.f32 %v712, 0.0
        %v771 = vmax.f32 %v717, 0.0
        %v772 = vmax.f32 %v722, 0.0
        %v773 = vmax.f32 %v727, 0.0
        %v774 = vmax.f32 %v732, 0.0
        %v775 = vmax.f32 %v737, 0.0
        %v776 = vmax.f32 %v742, 0.0
        %v777 = vmax.f32 %v747, 0.0
        %v778 = vmax.f32 %v752, 0.0
        %v779 = vmax.f32 %v757, 0.0
        %v780 = vmax.f32 %v762, 0.0
        %s781 = scalar_lea.vmem [#allocation2], 48
        %782 = vst.msk [vmem:[%s781 + $0x2] sm:$0xff] %vm508, %v765
        %783 = vst.msk [vmem:[%s781 + $0xa] sm:$0xff] %vm508, %v766
        %784 = vst.msk [vmem:[%s781 + $0x1a] sm:$0xff] %vm508, %v767
        %785 = vst.msk [vmem:[%s781 + $0x22] sm:$0xff] %vm508, %v768
        %786 = vst.msk [vmem:[%s781 + $0x32] sm:$0xff] %vm508, %v769
        %787 = vst.msk [vmem:[%s781 + $0x3a] sm:$0xff] %vm508, %v770
        %788 = vst.msk [vmem:[%s781 + $0x4a] sm:$0xff] %vm508, %v771
        %789 = vst.msk [vmem:[%s781 + $0x52] sm:$0xff] %vm508, %v772
        %790 = vst.msk [vmem:[%s781 + $0x62] sm:$0xff] %vm508, %v773
        %791 = vst.msk [vmem:[%s781 + $0x6a] sm:$0xff] %vm508, %v774
        %792 = vst.msk [vmem:[%s781 + $0x7a] sm:$0xff] %vm508, %v775
        %793 = vst.msk [vmem:[%s781 + $0x82] sm:$0xff] %vm508, %v776
        %794 = vst.msk [vmem:[%s781 + $0x92] sm:$0xff] %vm508, %v777
        %795 = vst.msk [vmem:[%s781 + $0x9a] sm:$0xff] %vm508, %v778
        %796 = vst.msk [vmem:[%s781 + $0xaa] sm:$0xff] %vm508, %v779
        %797 = vst.msk [vmem:[%s781 + $0xb2] sm:$0xff] %vm508, %v780
        %p798 = scmp.gt.s32.totalorder %s35, 0
        // Predicated region
        $region73: #{tpu_custom_call.1} parent=55 // pred_check
          %p799 = pneg %p798
        $region74: #{tpu_custom_call.1} parent=55 // pred_check_branch
          %801 = sbr.rel (%p799) target = $region76
        $region75: #{tpu_custom_call.1} parent=55 // pred_region
          %v802 = vld [vmem:[%s438] sm:$0xff]
          %v803 = vld [vmem:[%s438 + $0x8] sm:$0xff]
          %v804 = vld [vmem:[%s438 + $0x10] sm:$0xff]
          %v805 = vld [vmem:[%s438 + $0x18] sm:$0xff]
          %v806 = vld [vmem:[%s3] sm:$0xff]
          %v807 = vld [vmem:[%s3 + $0x8] sm:$0xff]
          %v808 = vld [vmem:[%s4] sm:$0x1]
          %v810 = vlaneseq
          %v811 = vshrl.u32 %v810, 7
          %v812 = vsub.s32 0, %v811
          %v813 = vrot.slane %v808, %v812
          %v816 = vsel %vm571, %v802, 0
          %v819 = vsel %vm571, %v803, 0
          %v822 = vsel %vm571, %v804, 0
          %v825 = vsel %vm571, %v805, 0
          %827 = vmatprep.subr.mxu0 0.0
          %828 = vmatpush1.msra.mxu0 0.0
          %829 = vmatprep.subr.mxu0 0.0
          %830 = vmatpush1.msra.mxu0 0.0
          %831 = vmatprep.subr.mxu0 0.0
          %832 = vmatpush1.msra.mxu0 0.0
          %833 = vmatprep.subr.mxu0 0.0
          %834 = vmatpush1.msra.mxu0 0.0
          %835 = vmatprep.subr.mxu0 0.0
          %836 = vmatpush1.msra.mxu0 0.0
          %837 = vmatprep.subr.mxu0 0.0
          %838 = vmatpush1.msra.mxu0 0.0
          %839 = vmatprep.subr.mxu0 0.0
          %840 = vmatpush1.msra.mxu0 0.0
          %841 = vmatprep.subr.mxu0 0.0
          %842 = vmatpush1.msra.mxu0 0.0
          %843 = vmatprep.subr.mxu0 0.0
          %844 = vmatpush1.msra.mxu0 0.0
          %845 = vmatprep.subr.mxu0 0.0
          %846 = vmatpush1.msra.mxu0 0.0
          %847 = vmatprep.subr.mxu0 0.0
          %848 = vmatpush1.msra.mxu0 0.0
          %849 = vmatprep.subr.mxu0 0.0
          %850 = vmatpush1.msra.mxu0 0.0
          %851 = vmatprep.subr.mxu0 0.0
          %852 = vmatpush1.msra.mxu0 0.0
          %853 = vmatprep.subr.mxu0 0.0
          %854 = vmatpush1.msra.mxu0 0.0
          %855 = vmatprep.subr.mxu0 0.0
          %856 = vmatpush1.msra.mxu0 %v807
          %857 = vmatprep.subr.mxu0 0.0
          %858 = vmatpush1.msra.mxu0 %v806
          %859 = vmatprep.subr.mxu0 0.0
          %860 = vmatpush2.msra.mxu0 0.0
          %861 = vmatprep.subr.mxu0 0.0
          %862 = vmatpush2.msra.mxu0 0.0
          %863 = vmatprep.subr.mxu0 0.0
          %864 = vmatpush2.msra.mxu0 0.0
          %865 = vmatprep.subr.mxu0 0.0
          %866 = vmatpush2.msra.mxu0 0.0
          %867 = vmatprep.subr.mxu0 0.0
          %868 = vmatpush2.msra.mxu0 0.0
          %869 = vmatprep.subr.mxu0 0.0
          %870 = vmatpush2.msra.mxu0 0.0
          %871 = vmatprep.subr.mxu0 0.0
          %872 = vmatpush2.msra.mxu0 0.0
          %873 = vmatprep.subr.mxu0 0.0
          %874 = vmatpush2.msra.mxu0 0.0
          %875 = vmatprep.subr.mxu0 0.0
          %876 = vmatpush2.msra.mxu0 0.0
          %877 = vmatprep.subr.mxu0 0.0
          %878 = vmatpush2.msra.mxu0 0.0
          %879 = vmatprep.subr.mxu0 0.0
          %880 = vmatpush2.msra.mxu0 0.0
          %881 = vmatprep.subr.mxu0 0.0
          %882 = vmatpush2.msra.mxu0 0.0
          %883 = vmatprep.subr.mxu0 0.0
          %884 = vmatpush2.msra.mxu0 0.0
          %885 = vmatprep.subr.mxu0 0.0
          %886 = vmatpush2.msra.mxu0 0.0
          %887 = vmatprep.subr.mxu0 0.0
          %888 = vmatpush2.msra.mxu0 0.0
          %889 = vmatprep.subr.mxu0 0.0
          %890 = vmatpush2.msra.mxu0 0.0
          %891 = vmatprep.mubr.f32.mxu0 0.0
          %892 = vmatmul.mubr.f32.gmra.mxu0 %v816
          %v893 = vpop.f32.mrf.mxu0
          %v894 = vadd.f32 %v813, %v893
          %v895 = vpop.f32.mrf.mxu0
          %896 = vmatprep.mubr.f32.mxu0 0.0
          %897 = vmatmul.mubr.f32.gmra.mxu0 %v819
          %v898 = vpop.f32.mrf.mxu0
          %v899 = vadd.f32 %v813, %v898
          %v900 = vpop.f32.mrf.mxu0
          %901 = vmatprep.mubr.f32.mxu0 0.0
          %902 = vmatmul.mubr.f32.gmra.mxu0 %v822
          %v903 = vpop.f32.mrf.mxu0
          %v904 = vadd.f32 %v813, %v903
          %v905 = vpop.f32.mrf.mxu0
          %906 = vmatprep.mubr.f32.mxu0 0.0
          %907 = vmatmul.mubr.f32.gmra.mxu0 %v825
          %v908 = vpop.f32.mrf.mxu0
          %v909 = vadd.f32 %v813, %v908
          %v910 = vpop.f32.mrf.mxu0
          %911 = vdwg.mxu0
          %v912 = vmax.f32 %v894, 0.0
          %v913 = vmax.f32 %v899, 0.0
          %v914 = vmax.f32 %v904, 0.0
          %v915 = vmax.f32 %v909, 0.0
          %916 = vst.msk [vmem:[#allocation2 + $0x2] sm:$0xff] %vm508, %v912
          %917 = vst.msk [vmem:[#allocation2 + $0xa] sm:$0xff] %vm508, %v913
          %918 = vst.msk [vmem:[#allocation2 + $0x1a] sm:$0xff] %vm508, %v914
          %919 = vst.msk [vmem:[#allocation2 + $0x22] sm:$0xff] %vm508, %v915
        $region76: #{tpu_custom_call.1} parent=55 // pred_fallthru
          _
        %p920 = scmp.lt.s32.totalorder %s35, 1
        // Predicated region
        $region77: #{tpu_custom_call.1} parent=55 // pred_check
          %p921 = pneg %p920
        $region78: #{tpu_custom_call.1} parent=55 // pred_check_branch
          %923 = sbr.rel (%p921) target = $region80
        $region79: #{tpu_custom_call.1} parent=55 // pred_region
          %v924 = vld [vmem:[%s447] sm:$0xff]
          %v925 = vld [vmem:[%s447 + $0x8] sm:$0xff]
          %v926 = vld [vmem:[%s447 + $0x10] sm:$0xff]
          %v927 = vld [vmem:[%s447 + $0x18] sm:$0xff]
          %v928 = vld [vmem:[%s3] sm:$0xff]
          %v929 = vld [vmem:[%s3 + $0x8] sm:$0xff]
          %v930 = vld [vmem:[%s4] sm:$0x1]
          %v932 = vlaneseq
          %v933 = vshrl.u32 %v932, 7
          %v934 = vsub.s32 0, %v933
          %v935 = vrot.slane %v930, %v934
          %v938 = vsel %vm571, %v924, 0
          %v941 = vsel %vm571, %v925, 0
          %v944 = vsel %vm571, %v926, 0
          %v947 = vsel %vm571, %v927, 0
          %949 = vmatprep.subr.mxu0 0.0
          %950 = vmatpush1.msra.mxu0 0.0
          %951 = vmatprep.subr.mxu0 0.0
          %952 = vmatpush1.msra.mxu0 0.0
          %953 = vmatprep.subr.mxu0 0.0
          %954 = vmatpush1.msra.mxu0 0.0
          %955 = vmatprep.subr.mxu0 0.0
          %956 = vmatpush1.msra.mxu0 0.0
          %957 = vmatprep.subr.mxu0 0.0
          %958 = vmatpush1.msra.mxu0 0.0
          %959 = vmatprep.subr.mxu0 0.0
          %960 = vmatpush1.msra.mxu0 0.0
          %961 = vmatprep.subr.mxu0 0.0
          %962 = vmatpush1.msra.mxu0 0.0
          %963 = vmatprep.subr.mxu0 0.0
          %964 = vmatpush1.msra.mxu0 0.0
          %965 = vmatprep.subr.mxu0 0.0
          %966 = vmatpush1.msra.mxu0 0.0
          %967 = vmatprep.subr.mxu0 0.0
          %968 = vmatpush1.msra.mxu0 0.0
          %969 = vmatprep.subr.mxu0 0.0
          %970 = vmatpush1.msra.mxu0 0.0
          %971 = vmatprep.subr.mxu0 0.0
          %972 = vmatpush1.msra.mxu0 0.0
          %973 = vmatprep.subr.mxu0 0.0
          %974 = vmatpush1.msra.mxu0 0.0
          %975 = vmatprep.subr.mxu0 0.0
          %976 = vmatpush1.msra.mxu0 0.0
          %977 = vmatprep.subr.mxu0 0.0
          %978 = vmatpush1.msra.mxu0 %v929
          %979 = vmatprep.subr.mxu0 0.0
          %980 = vmatpush1.msra.mxu0 %v928
          %981 = vmatprep.subr.mxu0 0.0
          %982 = vmatpush2.msra.mxu0 0.0
          %983 = vmatprep.subr.mxu0 0.0
          %984 = vmatpush2.msra.mxu0 0.0
          %985 = vmatprep.subr.mxu0 0.0
          %986 = vmatpush2.msra.mxu0 0.0
          %987 = vmatprep.subr.mxu0 0.0
          %988 = vmatpush2.msra.mxu0 0.0
          %989 = vmatprep.subr.mxu0 0.0
          %990 = vmatpush2.msra.mxu0 0.0
          %991 = vmatprep.subr.mxu0 0.0
          %992 = vmatpush2.msra.mxu0 0.0
          %993 = vmatprep.subr.mxu0 0.0
          %994 = vmatpush2.msra.mxu0 0.0
          %995 = vmatprep.subr.mxu0 0.0
          %996 = vmatpush2.msra.mxu0 0.0
          %997 = vmatprep.subr.mxu0 0.0
          %998 = vmatpush2.msra.mxu0 0.0
          %999 = vmatprep.subr.mxu0 0.0
          %1000 = vmatpush2.msra.mxu0 0.0
          %1001 = vmatprep.subr.mxu0 0.0
          %1002 = vmatpush2.msra.mxu0 0.0
          %1003 = vmatprep.subr.mxu0 0.0
          %1004 = vmatpush2.msra.mxu0 0.0
          %1005 = vmatprep.subr.mxu0 0.0
          %1006 = vmatpush2.msra.mxu0 0.0
          %1007 = vmatprep.subr.mxu0 0.0
          %1008 = vmatpush2.msra.mxu0 0.0
          %1009 = vmatprep.subr.mxu0 0.0
          %1010 = vmatpush2.msra.mxu0 0.0
          %1011 = vmatprep.subr.mxu0 0.0
          %1012 = vmatpush2.msra.mxu0 0.0
          %1013 = vmatprep.mubr.f32.mxu0 0.0
          %1014 = vmatmul.mubr.f32.gmra.mxu0 %v938
          %v1015 = vpop.f32.mrf.mxu0
          %v1016 = vadd.f32 %v935, %v1015
          %v1017 = vpop.f32.mrf.mxu0
          %1018 = vmatprep.mubr.f32.mxu0 0.0
          %1019 = vmatmul.mubr.f32.gmra.mxu0 %v941
          %v1020 = vpop.f32.mrf.mxu0
          %v1021 = vadd.f32 %v935, %v1020
          %v1022 = vpop.f32.mrf.mxu0
          %1023 = vmatprep.mubr.f32.mxu0 0.0
          %1024 = vmatmul.mubr.f32.gmra.mxu0 %v944
          %v1025 = vpop.f32.mrf.mxu0
          %v1026 = vadd.f32 %v935, %v1025
          %v1027 = vpop.f32.mrf.mxu0
          %1028 = vmatprep.mubr.f32.mxu0 0.0
          %1029 = vmatmul.mubr.f32.gmra.mxu0 %v947
          %v1030 = vpop.f32.mrf.mxu0
          %v1031 = vadd.f32 %v935, %v1030
          %v1032 = vpop.f32.mrf.mxu0
          %1033 = vdwg.mxu0
          %v1034 = vmax.f32 %v1016, 0.0
          %v1035 = vmax.f32 %v1021, 0.0
          %v1036 = vmax.f32 %v1026, 0.0
          %v1037 = vmax.f32 %v1031, 0.0
          %s1038 = scalar_lea.vmem [#allocation2], 240
          %1039 = vst.msk [vmem:[%s1038 + $0x2] sm:$0xff] %vm508, %v1034
          %1040 = vst.msk [vmem:[%s1038 + $0xa] sm:$0xff] %vm508, %v1035
          %1041 = vst.msk [vmem:[%s1038 + $0x1a] sm:$0xff] %vm508, %v1036
          %1042 = vst.msk [vmem:[%s1038 + $0x22] sm:$0xff] %vm508, %v1037
        $region80: #{tpu_custom_call.1} parent=55 // pred_fallthru
          _
        %v1043 = vld [vmem:[#allocation2] sm:$0xff]
        %v1044 = vld [vmem:[#allocation2 + $0x8] sm:$0xff]
        %v1045 = vld [vmem:[#allocation2 + $0x18] sm:$0xff]
        %v1046 = vld [vmem:[#allocation2 + $0x20] sm:$0xff]
        %v1047 = vld [vmem:[#allocation2 + $0x30] sm:$0xff]
        %v1048 = vld [vmem:[#allocation2 + $0x38] sm:$0xff]
        %v1049 = vld [vmem:[#allocation2 + $0x48] sm:$0xff]
        %v1050 = vld [vmem:[#allocation2 + $0x50] sm:$0xff]
        %v1051 = vld [vmem:[#allocation2 + $0x60] sm:$0xff]
        %v1052 = vld [vmem:[#allocation2 + $0x68] sm:$0xff]
        %v1053 = vld [vmem:[#allocation2 + $0x78] sm:$0xff]
        %v1054 = vld [vmem:[#allocation2 + $0x80] sm:$0xff]
        %v1055 = vld [vmem:[#allocation2 + $0x90] sm:$0xff]
        %v1056 = vld [vmem:[#allocation2 + $0x98] sm:$0xff]
        %v1057 = vld [vmem:[#allocation2 + $0xa8] sm:$0xff]
        %v1058 = vld [vmem:[#allocation2 + $0xb0] sm:$0xff]
        %v1059 = vld [vmem:[#allocation9] sm:$0xf]
        %v1060 = vld [vmem:[#allocation2 + $0x2] sm:$0xff]
        %v1061 = vld [vmem:[#allocation2 + $0xa] sm:$0xff]
        %v1062 = vld [vmem:[#allocation2 + $0x1a] sm:$0xff]
        %v1063 = vld [vmem:[#allocation2 + $0x22] sm:$0xff]
        %v1064 = vld [vmem:[#allocation2 + $0x32] sm:$0xff]
        %v1065 = vld [vmem:[#allocation2 + $0x3a] sm:$0xff]
        %v1066 = vld [vmem:[#allocation2 + $0x4a] sm:$0xff]
        %v1067 = vld [vmem:[#allocation2 + $0x52] sm:$0xff]
        %v1068 = vld [vmem:[#allocation2 + $0x62] sm:$0xff]
        %v1069 = vld [vmem:[#allocation2 + $0x6a] sm:$0xff]
        %v1070 = vld [vmem:[#allocation2 + $0x7a] sm:$0xff]
        %v1071 = vld [vmem:[#allocation2 + $0x82] sm:$0xff]
        %v1072 = vld [vmem:[#allocation2 + $0x92] sm:$0xff]
        %v1073 = vld [vmem:[#allocation2 + $0x9a] sm:$0xff]
        %v1074 = vld [vmem:[#allocation2 + $0xaa] sm:$0xff]
        %v1075 = vld [vmem:[#allocation2 + $0xb2] sm:$0xff]
        %s1076 = scalar_lea.vmem [#allocation9], 4
        %v1077 = vld [vmem:[%s1076] sm:$0xf]
        %v1079 = vsel %vm508, %v1060, 0
        %v1082 = vsel %vm508, %v1061, 0
        %v1085 = vsel %vm508, %v1062, 0
        %v1088 = vsel %vm508, %v1063, 0
        %v1091 = vsel %vm508, %v1064, 0
        %v1094 = vsel %vm508, %v1065, 0
        %v1097 = vsel %vm508, %v1066, 0
        %v1100 = vsel %vm508, %v1067, 0
        %v1103 = vsel %vm508, %v1068, 0
        %v1106 = vsel %vm508, %v1069, 0
        %v1109 = vsel %vm508, %v1070, 0
        %v1112 = vsel %vm508, %v1071, 0
        %v1115 = vsel %vm508, %v1072, 0
        %v1118 = vsel %vm508, %v1073, 0
        %v1121 = vsel %vm508, %v1074, 0
        %v1124 = vsel %vm508, %v1075, 0
        %vm1126 = vcmask 1043456
        %v1128 = vsel %vm1126, %v1077, 0
        %1130 = vmatprep.subr.mxu0 0.0
        %1131 = vmatpush1.msra.mxu0 0.0
        %1132 = vmatprep.subr.mxu0 0.0
        %1133 = vmatpush1.msra.mxu0 0.0
        %1134 = vmatprep.subr.mxu0 0.0
        %1135 = vmatpush1.msra.mxu0 0.0
        %1136 = vmatprep.subr.mxu0 0.0
        %1137 = vmatpush1.msra.mxu0 0.0
        %1138 = vmatprep.subr.mxu0 0.0
        %1139 = vmatpush1.msra.mxu0 0.0
        %1140 = vmatprep.subr.mxu0 0.0
        %1141 = vmatpush1.msra.mxu0 0.0
        %1142 = vmatprep.subr.mxu0 0.0
        %1143 = vmatpush1.msra.mxu0 0.0
        %1144 = vmatprep.subr.mxu0 0.0
        %1145 = vmatpush1.msra.mxu0 0.0
        %1146 = vmatprep.subr.mxu0 0.0
        %1147 = vmatpush1.msra.mxu0 0.0
        %1148 = vmatprep.subr.mxu0 0.0
        %1149 = vmatpush1.msra.mxu0 0.0
        %1150 = vmatprep.subr.mxu0 0.0
        %1151 = vmatpush1.msra.mxu0 0.0
        %1152 = vmatprep.subr.mxu0 0.0
        %1153 = vmatpush1.msra.mxu0 0.0
        %1154 = vmatprep.subr.mxu0 0.0
        %1155 = vmatpush1.msra.mxu0 0.0
        %1156 = vmatprep.subr.mxu0 0.0
        %1157 = vmatpush1.msra.mxu0 0.0
        %1158 = vmatprep.subr.mxu0 0.0
        %1159 = vmatpush1.msra.mxu0 0.0
        %1160 = vmatprep.subr.mxu0 0.0
        %1161 = vmatpush1.msra.mxu0 %v1128
        %1162 = vmatprep.subr.mxu0 0.0
        %1163 = vmatpush2.msra.mxu0 0.0
        %1164 = vmatprep.subr.mxu0 0.0
        %1165 = vmatpush2.msra.mxu0 0.0
        %1166 = vmatprep.subr.mxu0 0.0
        %1167 = vmatpush2.msra.mxu0 0.0
        %1168 = vmatprep.subr.mxu0 0.0
        %1169 = vmatpush2.msra.mxu0 0.0
        %1170 = vmatprep.subr.mxu0 0.0
        %1171 = vmatpush2.msra.mxu0 0.0
        %1172 = vmatprep.subr.mxu0 0.0
        %1173 = vmatpush2.msra.mxu0 0.0
        %1174 = vmatprep.subr.mxu0 0.0
        %1175 = vmatpush2.msra.mxu0 0.0
        %1176 = vmatprep.subr.mxu0 0.0
        %1177 = vmatpush2.msra.mxu0 0.0
        %1178 = vmatprep.subr.mxu0 0.0
        %1179 = vmatpush2.msra.mxu0 0.0
        %1180 = vmatprep.subr.mxu0 0.0
        %1181 = vmatpush2.msra.mxu0 0.0
        %1182 = vmatprep.subr.mxu0 0.0
        %1183 = vmatpush2.msra.mxu0 0.0
        %1184 = vmatprep.subr.mxu0 0.0
        %1185 = vmatpush2.msra.mxu0 0.0
        %1186 = vmatprep.subr.mxu0 0.0
        %1187 = vmatpush2.msra.mxu0 0.0
        %1188 = vmatprep.subr.mxu0 0.0
        %1189 = vmatpush2.msra.mxu0 0.0
        %1190 = vmatprep.subr.mxu0 0.0
        %1191 = vmatpush2.msra.mxu0 0.0
        %1192 = vmatprep.subr.mxu0 0.0
        %1193 = vmatpush2.msra.mxu0 0.0
        %1194 = vmatprep.mubr.f32.mxu0 0.0
        %1195 = vmatmul.mubr.f32.gmra.mxu0 %v1079
        %v1196 = vpop.f32.mrf.mxu0
        %v1197 = vadd.f32 0.0, %v1196
        %v1198 = vpop.f32.mrf.mxu0
        %1199 = vmatprep.mubr.f32.mxu0 0.0
        %1200 = vmatmul.mubr.f32.gmra.mxu0 %v1082
        %v1201 = vpop.f32.mrf.mxu0
        %v1202 = vadd.f32 0.0, %v1201
        %v1203 = vpop.f32.mrf.mxu0
        %1204 = vmatprep.mubr.f32.mxu0 0.0
        %1205 = vmatmul.mubr.f32.gmra.mxu0 %v1085
        %v1206 = vpop.f32.mrf.mxu0
        %v1207 = vadd.f32 0.0, %v1206
        %v1208 = vpop.f32.mrf.mxu0
        %1209 = vmatprep.mubr.f32.mxu0 0.0
        %1210 = vmatmul.mubr.f32.gmra.mxu0 %v1088
        %v1211 = vpop.f32.mrf.mxu0
        %v1212 = vadd.f32 0.0, %v1211
        %v1213 = vpop.f32.mrf.mxu0
        %1214 = vmatprep.mubr.f32.mxu0 0.0
        %1215 = vmatmul.mubr.f32.gmra.mxu0 %v1091
        %v1216 = vpop.f32.mrf.mxu0
        %v1217 = vadd.f32 0.0, %v1216
        %v1218 = vpop.f32.mrf.mxu0
        %1219 = vmatprep.mubr.f32.mxu0 0.0
        %1220 = vmatmul.mubr.f32.gmra.mxu0 %v1094
        %v1221 = vpop.f32.mrf.mxu0
        %v1222 = vadd.f32 0.0, %v1221
        %v1223 = vpop.f32.mrf.mxu0
        %1224 = vmatprep.mubr.f32.mxu0 0.0
        %1225 = vmatmul.mubr.f32.gmra.mxu0 %v1097
        %v1226 = vpop.f32.mrf.mxu0
        %v1227 = vadd.f32 0.0, %v1226
        %v1228 = vpop.f32.mrf.mxu0
        %1229 = vmatprep.mubr.f32.mxu0 0.0
        %1230 = vmatmul.mubr.f32.gmra.mxu0 %v1100
        %v1231 = vpop.f32.mrf.mxu0
        %v1232 = vadd.f32 0.0, %v1231
        %v1233 = vpop.f32.mrf.mxu0
        %1234 = vmatprep.mubr.f32.mxu0 0.0
        %1235 = vmatmul.mubr.f32.gmra.mxu0 %v1103
        %v1236 = vpop.f32.mrf.mxu0
        %v1237 = vadd.f32 0.0, %v1236
        %v1238 = vpop.f32.mrf.mxu0
        %1239 = vmatprep.mubr.f32.mxu0 0.0
        %1240 = vmatmul.mubr.f32.gmra.mxu0 %v1106
        %v1241 = vpop.f32.mrf.mxu0
        %v1242 = vadd.f32 0.0, %v1241
        %v1243 = vpop.f32.mrf.mxu0
        %1244 = vmatprep.mubr.f32.mxu0 0.0
        %1245 = vmatmul.mubr.f32.gmra.mxu0 %v1109
        %v1246 = vpop.f32.mrf.mxu0
        %v1247 = vadd.f32 0.0, %v1246
        %v1248 = vpop.f32.mrf.mxu0
        %1249 = vmatprep.mubr.f32.mxu0 0.0
        %1250 = vmatmul.mubr.f32.gmra.mxu0 %v1112
        %v1251 = vpop.f32.mrf.mxu0
        %v1252 = vadd.f32 0.0, %v1251
        %v1253 = vpop.f32.mrf.mxu0
        %1254 = vmatprep.mubr.f32.mxu0 0.0
        %1255 = vmatmul.mubr.f32.gmra.mxu0 %v1115
        %v1256 = vpop.f32.mrf.mxu0
        %v1257 = vadd.f32 0.0, %v1256
        %v1258 = vpop.f32.mrf.mxu0
        %1259 = vmatprep.mubr.f32.mxu0 0.0
        %1260 = vmatmul.mubr.f32.gmra.mxu0 %v1118
        %v1261 = vpop.f32.mrf.mxu0
        %v1262 = vadd.f32 0.0, %v1261
        %v1263 = vpop.f32.mrf.mxu0
        %1264 = vmatprep.mubr.f32.mxu0 0.0
        %1265 = vmatmul.mubr.f32.gmra.mxu0 %v1121
        %v1266 = vpop.f32.mrf.mxu0
        %v1267 = vadd.f32 0.0, %v1266
        %v1268 = vpop.f32.mrf.mxu0
        %1269 = vmatprep.mubr.f32.mxu0 0.0
        %1270 = vmatmul.mubr.f32.gmra.mxu0 %v1124
        %v1271 = vpop.f32.mrf.mxu0
        %v1272 = vadd.f32 0.0, %v1271
        %v1273 = vpop.f32.mrf.mxu0
        %1274 = vdwg.mxu0
        %v1276 = vsel %vm508, %v1043, 0
        %v1279 = vsel %vm508, %v1044, 0
        %v1282 = vsel %vm508, %v1045, 0
        %v1285 = vsel %vm508, %v1046, 0
        %v1288 = vsel %vm508, %v1047, 0
        %v1291 = vsel %vm508, %v1048, 0
        %v1294 = vsel %vm508, %v1049, 0
        %v1297 = vsel %vm508, %v1050, 0
        %v1300 = vsel %vm508, %v1051, 0
        %v1303 = vsel %vm508, %v1052, 0
        %v1306 = vsel %vm508, %v1053, 0
        %v1309 = vsel %vm508, %v1054, 0
        %v1312 = vsel %vm508, %v1055, 0
        %v1315 = vsel %vm508, %v1056, 0
        %v1318 = vsel %vm508, %v1057, 0
        %v1321 = vsel %vm508, %v1058, 0
        %v1324 = vsel %vm1126, %v1059, 0
        %1326 = vmatprep.subr.mxu0 0.0
        %1327 = vmatpush1.msra.mxu0 0.0
        %1328 = vmatprep.subr.mxu0 0.0
        %1329 = vmatpush1.msra.mxu0 0.0
        %1330 = vmatprep.subr.mxu0 0.0
        %1331 = vmatpush1.msra.mxu0 0.0
        %1332 = vmatprep.subr.mxu0 0.0
        %1333 = vmatpush1.msra.mxu0 0.0
        %1334 = vmatprep.subr.mxu0 0.0
        %1335 = vmatpush1.msra.mxu0 0.0
        %1336 = vmatprep.subr.mxu0 0.0
        %1337 = vmatpush1.msra.mxu0 0.0
        %1338 = vmatprep.subr.mxu0 0.0
        %1339 = vmatpush1.msra.mxu0 0.0
        %1340 = vmatprep.subr.mxu0 0.0
        %1341 = vmatpush1.msra.mxu0 0.0
        %1342 = vmatprep.subr.mxu0 0.0
        %1343 = vmatpush1.msra.mxu0 0.0
        %1344 = vmatprep.subr.mxu0 0.0
        %1345 = vmatpush1.msra.mxu0 0.0
        %1346 = vmatprep.subr.mxu0 0.0
        %1347 = vmatpush1.msra.mxu0 0.0
        %1348 = vmatprep.subr.mxu0 0.0
        %1349 = vmatpush1.msra.mxu0 0.0
        %1350 = vmatprep.subr.mxu0 0.0
        %1351 = vmatpush1.msra.mxu0 0.0
        %1352 = vmatprep.subr.mxu0 0.0
        %1353 = vmatpush1.msra.mxu0 0.0
        %1354 = vmatprep.subr.mxu0 0.0
        %1355 = vmatpush1.msra.mxu0 0.0
        %1356 = vmatprep.subr.mxu0 0.0
        %1357 = vmatpush1.msra.mxu0 %v1324
        %1358 = vmatprep.subr.mxu0 0.0
        %1359 = vmatpush2.msra.mxu0 0.0
        %1360 = vmatprep.subr.mxu0 0.0
        %1361 = vmatpush2.msra.mxu0 0.0
        %1362 = vmatprep.subr.mxu0 0.0
        %1363 = vmatpush2.msra.mxu0 0.0
        %1364 = vmatprep.subr.mxu0 0.0
        %1365 = vmatpush2.msra.mxu0 0.0
        %1366 = vmatprep.subr.mxu0 0.0
        %1367 = vmatpush2.msra.mxu0 0.0
        %1368 = vmatprep.subr.mxu0 0.0
        %1369 = vmatpush2.msra.mxu0 0.0
        %1370 = vmatprep.subr.mxu0 0.0
        %1371 = vmatpush2.msra.mxu0 0.0
        %1372 = vmatprep.subr.mxu0 0.0
        %1373 = vmatpush2.msra.mxu0 0.0
        %1374 = vmatprep.subr.mxu0 0.0
        %1375 = vmatpush2.msra.mxu0 0.0
        %1376 = vmatprep.subr.mxu0 0.0
        %1377 = vmatpush2.msra.mxu0 0.0
        %1378 = vmatprep.subr.mxu0 0.0
        %1379 = vmatpush2.msra.mxu0 0.0
        %1380 = vmatprep.subr.mxu0 0.0
        %1381 = vmatpush2.msra.mxu0 0.0
        %1382 = vmatprep.subr.mxu0 0.0
        %1383 = vmatpush2.msra.mxu0 0.0
        %1384 = vmatprep.subr.mxu0 0.0
        %1385 = vmatpush2.msra.mxu0 0.0
        %1386 = vmatprep.subr.mxu0 0.0
        %1387 = vmatpush2.msra.mxu0 0.0
        %1388 = vmatprep.subr.mxu0 0.0
        %1389 = vmatpush2.msra.mxu0 0.0
        %1390 = vmatprep.mubr.f32.mxu0 0.0
        %1391 = vmatmul.mubr.f32.gmra.mxu0 %v1276
        %v1392 = vpop.f32.mrf.mxu0
        %v1393 = vadd.f32 %v1197, %v1392
        %v1394 = vpop.f32.mrf.mxu0
        %1395 = vmatprep.mubr.f32.mxu0 0.0
        %1396 = vmatmul.mubr.f32.gmra.mxu0 %v1279
        %v1397 = vpop.f32.mrf.mxu0
        %v1398 = vadd.f32 %v1202, %v1397
        %v1399 = vpop.f32.mrf.mxu0
        %1400 = vmatprep.mubr.f32.mxu0 0.0
        %1401 = vmatmul.mubr.f32.gmra.mxu0 %v1282
        %v1402 = vpop.f32.mrf.mxu0
        %v1403 = vadd.f32 %v1207, %v1402
        %v1404 = vpop.f32.mrf.mxu0
        %1405 = vmatprep.mubr.f32.mxu0 0.0
        %1406 = vmatmul.mubr.f32.gmra.mxu0 %v1285
        %v1407 = vpop.f32.mrf.mxu0
        %v1408 = vadd.f32 %v1212, %v1407
        %v1409 = vpop.f32.mrf.mxu0
        %1410 = vmatprep.mubr.f32.mxu0 0.0
        %1411 = vmatmul.mubr.f32.gmra.mxu0 %v1288
        %v1412 = vpop.f32.mrf.mxu0
        %v1413 = vadd.f32 %v1217, %v1412
        %v1414 = vpop.f32.mrf.mxu0
        %1415 = vmatprep.mubr.f32.mxu0 0.0
        %1416 = vmatmul.mubr.f32.gmra.mxu0 %v1291
        %v1417 = vpop.f32.mrf.mxu0
        %v1418 = vadd.f32 %v1222, %v1417
        %v1419 = vpop.f32.mrf.mxu0
        %1420 = vmatprep.mubr.f32.mxu0 0.0
        %1421 = vmatmul.mubr.f32.gmra.mxu0 %v1294
        %v1422 = vpop.f32.mrf.mxu0
        %v1423 = vadd.f32 %v1227, %v1422
        %v1424 = vpop.f32.mrf.mxu0
        %1425 = vmatprep.mubr.f32.mxu0 0.0
        %1426 = vmatmul.mubr.f32.gmra.mxu0 %v1297
        %v1427 = vpop.f32.mrf.mxu0
        %v1428 = vadd.f32 %v1232, %v1427
        %v1429 = vpop.f32.mrf.mxu0
        %1430 = vmatprep.mubr.f32.mxu0 0.0
        %1431 = vmatmul.mubr.f32.gmra.mxu0 %v1300
        %v1432 = vpop.f32.mrf.mxu0
        %v1433 = vadd.f32 %v1237, %v1432
        %v1434 = vpop.f32.mrf.mxu0
        %1435 = vmatprep.mubr.f32.mxu0 0.0
        %1436 = vmatmul.mubr.f32.gmra.mxu0 %v1303
        %v1437 = vpop.f32.mrf.mxu0
        %v1438 = vadd.f32 %v1242, %v1437
        %v1439 = vpop.f32.mrf.mxu0
        %1440 = vmatprep.mubr.f32.mxu0 0.0
        %1441 = vmatmul.mubr.f32.gmra.mxu0 %v1306
        %v1442 = vpop.f32.mrf.mxu0
        %v1443 = vadd.f32 %v1247, %v1442
        %v1444 = vpop.f32.mrf.mxu0
        %1445 = vmatprep.mubr.f32.mxu0 0.0
        %1446 = vmatmul.mubr.f32.gmra.mxu0 %v1309
        %v1447 = vpop.f32.mrf.mxu0
        %v1448 = vadd.f32 %v1252, %v1447
        %v1449 = vpop.f32.mrf.mxu0
        %1450 = vmatprep.mubr.f32.mxu0 0.0
        %1451 = vmatmul.mubr.f32.gmra.mxu0 %v1312
        %v1452 = vpop.f32.mrf.mxu0
        %v1453 = vadd.f32 %v1257, %v1452
        %v1454 = vpop.f32.mrf.mxu0
        %1455 = vmatprep.mubr.f32.mxu0 0.0
        %1456 = vmatmul.mubr.f32.gmra.mxu0 %v1315
        %v1457 = vpop.f32.mrf.mxu0
        %v1458 = vadd.f32 %v1262, %v1457
        %v1459 = vpop.f32.mrf.mxu0
        %1460 = vmatprep.mubr.f32.mxu0 0.0
        %1461 = vmatmul.mubr.f32.gmra.mxu0 %v1318
        %v1462 = vpop.f32.mrf.mxu0
        %v1463 = vadd.f32 %v1267, %v1462
        %v1464 = vpop.f32.mrf.mxu0
        %1465 = vmatprep.mubr.f32.mxu0 0.0
        %1466 = vmatmul.mubr.f32.gmra.mxu0 %v1321
        %v1467 = vpop.f32.mrf.mxu0
        %v1468 = vadd.f32 %v1272, %v1467
        %v1469 = vpop.f32.mrf.mxu0
        %1470 = vdwg.mxu0
        %v1471 = vld [vmem:[#allocation2 + $0x4] sm:$0xff]
        %v1472 = vld [vmem:[#allocation2 + $0xc] sm:$0xff]
        %v1473 = vld [vmem:[#allocation2 + $0x1c] sm:$0xff]
        %v1474 = vld [vmem:[#allocation2 + $0x24] sm:$0xff]
        %v1475 = vld [vmem:[#allocation2 + $0x34] sm:$0xff]
        %v1476 = vld [vmem:[#allocation2 + $0x3c] sm:$0xff]
        %v1477 = vld [vmem:[#allocation2 + $0x4c] sm:$0xff]
        %v1478 = vld [vmem:[#allocation2 + $0x54] sm:$0xff]
        %v1479 = vld [vmem:[#allocation2 + $0x64] sm:$0xff]
        %v1480 = vld [vmem:[#allocation2 + $0x6c] sm:$0xff]
        %v1481 = vld [vmem:[#allocation2 + $0x7c] sm:$0xff]
        %v1482 = vld [vmem:[#allocation2 + $0x84] sm:$0xff]
        %v1483 = vld [vmem:[#allocation2 + $0x94] sm:$0xff]
        %v1484 = vld [vmem:[#allocation2 + $0x9c] sm:$0xff]
        %v1485 = vld [vmem:[#allocation2 + $0xac] sm:$0xff]
        %v1486 = vld [vmem:[#allocation2 + $0xb4] sm:$0xff]
        %s1487 = scalar_lea.vmem [#allocation9], 8
        %v1488 = vld [vmem:[%s1487] sm:$0xf]
        %v1490 = vsel %vm508, %v1471, 0
        %v1493 = vsel %vm508, %v1472, 0
        %v1496 = vsel %vm508, %v1473, 0
        %v1499 = vsel %vm508, %v1474, 0
        %v1502 = vsel %vm508, %v1475, 0
        %v1505 = vsel %vm508, %v1476, 0
        %v1508 = vsel %vm508, %v1477, 0
        %v1511 = vsel %vm508, %v1478, 0
        %v1514 = vsel %vm508, %v1479, 0
        %v1517 = vsel %vm508, %v1480, 0
        %v1520 = vsel %vm508, %v1481, 0
        %v1523 = vsel %vm508, %v1482, 0
        %v1526 = vsel %vm508, %v1483, 0
        %v1529 = vsel %vm508, %v1484, 0
        %v1532 = vsel %vm508, %v1485, 0
        %v1535 = vsel %vm508, %v1486, 0
        %v1538 = vsel %vm1126, %v1488, 0
        %1540 = vmatprep.subr.mxu0 0.0
        %1541 = vmatpush1.msra.mxu0 0.0
        %1542 = vmatprep.subr.mxu0 0.0
        %1543 = vmatpush1.msra.mxu0 0.0
        %1544 = vmatprep.subr.mxu0 0.0
        %1545 = vmatpush1.msra.mxu0 0.0
        %1546 = vmatprep.subr.mxu0 0.0
        %1547 = vmatpush1.msra.mxu0 0.0
        %1548 = vmatprep.subr.mxu0 0.0
        %1549 = vmatpush1.msra.mxu0 0.0
        %1550 = vmatprep.subr.mxu0 0.0
        %1551 = vmatpush1.msra.mxu0 0.0
        %1552 = vmatprep.subr.mxu0 0.0
        %1553 = vmatpush1.msra.mxu0 0.0
        %1554 = vmatprep.subr.mxu0 0.0
        %1555 = vmatpush1.msra.mxu0 0.0
        %1556 = vmatprep.subr.mxu0 0.0
        %1557 = vmatpush1.msra.mxu0 0.0
        %1558 = vmatprep.subr.mxu0 0.0
        %1559 = vmatpush1.msra.mxu0 0.0
        %1560 = vmatprep.subr.mxu0 0.0
        %1561 = vmatpush1.msra.mxu0 0.0
        %1562 = vmatprep.subr.mxu0 0.0
        %1563 = vmatpush1.msra.mxu0 0.0
        %1564 = vmatprep.subr.mxu0 0.0
        %1565 = vmatpush1.msra.mxu0 0.0
        %1566 = vmatprep.subr.mxu0 0.0
        %1567 = vmatpush1.msra.mxu0 0.0
        %1568 = vmatprep.subr.mxu0 0.0
        %1569 = vmatpush1.msra.mxu0 0.0
        %1570 = vmatprep.subr.mxu0 0.0
        %1571 = vmatpush1.msra.mxu0 %v1538
        %1572 = vmatprep.subr.mxu0 0.0
        %1573 = vmatpush2.msra.mxu0 0.0
        %1574 = vmatprep.subr.mxu0 0.0
        %1575 = vmatpush2.msra.mxu0 0.0
        %1576 = vmatprep.subr.mxu0 0.0
        %1577 = vmatpush2.msra.mxu0 0.0
        %1578 = vmatprep.subr.mxu0 0.0
        %1579 = vmatpush2.msra.mxu0 0.0
        %1580 = vmatprep.subr.mxu0 0.0
        %1581 = vmatpush2.msra.mxu0 0.0
        %1582 = vmatprep.subr.mxu0 0.0
        %1583 = vmatpush2.msra.mxu0 0.0
        %1584 = vmatprep.subr.mxu0 0.0
        %1585 = vmatpush2.msra.mxu0 0.0
        %1586 = vmatprep.subr.mxu0 0.0
        %1587 = vmatpush2.msra.mxu0 0.0
        %1588 = vmatprep.subr.mxu0 0.0
        %1589 = vmatpush2.msra.mxu0 0.0
        %1590 = vmatprep.subr.mxu0 0.0
        %1591 = vmatpush2.msra.mxu0 0.0
        %1592 = vmatprep.subr.mxu0 0.0
        %1593 = vmatpush2.msra.mxu0 0.0
        %1594 = vmatprep.subr.mxu0 0.0
        %1595 = vmatpush2.msra.mxu0 0.0
        %1596 = vmatprep.subr.mxu0 0.0
        %1597 = vmatpush2.msra.mxu0 0.0
        %1598 = vmatprep.subr.mxu0 0.0
        %1599 = vmatpush2.msra.mxu0 0.0
        %1600 = vmatprep.subr.mxu0 0.0
        %1601 = vmatpush2.msra.mxu0 0.0
        %1602 = vmatprep.subr.mxu0 0.0
        %1603 = vmatpush2.msra.mxu0 0.0
        %1604 = vmatprep.mubr.f32.mxu0 0.0
        %1605 = vmatmul.mubr.f32.gmra.mxu0 %v1490
        %v1606 = vpop.f32.mrf.mxu0
        %v1607 = vadd.f32 0.0, %v1606
        %v1608 = vpop.f32.mrf.mxu0
        %1609 = vmatprep.mubr.f32.mxu0 0.0
        %1610 = vmatmul.mubr.f32.gmra.mxu0 %v1493
        %v1611 = vpop.f32.mrf.mxu0
        %v1612 = vadd.f32 0.0, %v1611
        %v1613 = vpop.f32.mrf.mxu0
        %1614 = vmatprep.mubr.f32.mxu0 0.0
        %1615 = vmatmul.mubr.f32.gmra.mxu0 %v1496
        %v1616 = vpop.f32.mrf.mxu0
        %v1617 = vadd.f32 0.0, %v1616
        %v1618 = vpop.f32.mrf.mxu0
        %1619 = vmatprep.mubr.f32.mxu0 0.0
        %1620 = vmatmul.mubr.f32.gmra.mxu0 %v1499
        %v1621 = vpop.f32.mrf.mxu0
        %v1622 = vadd.f32 0.0, %v1621
        %v1623 = vpop.f32.mrf.mxu0
        %1624 = vmatprep.mubr.f32.mxu0 0.0
        %1625 = vmatmul.mubr.f32.gmra.mxu0 %v1502
        %v1626 = vpop.f32.mrf.mxu0
        %v1627 = vadd.f32 0.0, %v1626
        %v1628 = vpop.f32.mrf.mxu0
        %1629 = vmatprep.mubr.f32.mxu0 0.0
        %1630 = vmatmul.mubr.f32.gmra.mxu0 %v1505
        %v1631 = vpop.f32.mrf.mxu0
        %v1632 = vadd.f32 0.0, %v1631
        %v1633 = vpop.f32.mrf.mxu0
        %1634 = vmatprep.mubr.f32.mxu0 0.0
        %1635 = vmatmul.mubr.f32.gmra.mxu0 %v1508
        %v1636 = vpop.f32.mrf.mxu0
        %v1637 = vadd.f32 0.0, %v1636
        %v1638 = vpop.f32.mrf.mxu0
        %1639 = vmatprep.mubr.f32.mxu0 0.0
        %1640 = vmatmul.mubr.f32.gmra.mxu0 %v1511
        %v1641 = vpop.f32.mrf.mxu0
        %v1642 = vadd.f32 0.0, %v1641
        %v1643 = vpop.f32.mrf.mxu0
        %1644 = vmatprep.mubr.f32.mxu0 0.0
        %1645 = vmatmul.mubr.f32.gmra.mxu0 %v1514
        %v1646 = vpop.f32.mrf.mxu0
        %v1647 = vadd.f32 0.0, %v1646
        %v1648 = vpop.f32.mrf.mxu0
        %1649 = vmatprep.mubr.f32.mxu0 0.0
        %1650 = vmatmul.mubr.f32.gmra.mxu0 %v1517
        %v1651 = vpop.f32.mrf.mxu0
        %v1652 = vadd.f32 0.0, %v1651
        %v1653 = vpop.f32.mrf.mxu0
        %1654 = vmatprep.mubr.f32.mxu0 0.0
        %1655 = vmatmul.mubr.f32.gmra.mxu0 %v1520
        %v1656 = vpop.f32.mrf.mxu0
        %v1657 = vadd.f32 0.0, %v1656
        %v1658 = vpop.f32.mrf.mxu0
        %1659 = vmatprep.mubr.f32.mxu0 0.0
        %1660 = vmatmul.mubr.f32.gmra.mxu0 %v1523
        %v1661 = vpop.f32.mrf.mxu0
        %v1662 = vadd.f32 0.0, %v1661
        %v1663 = vpop.f32.mrf.mxu0
        %1664 = vmatprep.mubr.f32.mxu0 0.0
        %1665 = vmatmul.mubr.f32.gmra.mxu0 %v1526
        %v1666 = vpop.f32.mrf.mxu0
        %v1667 = vadd.f32 0.0, %v1666
        %v1668 = vpop.f32.mrf.mxu0
        %1669 = vmatprep.mubr.f32.mxu0 0.0
        %1670 = vmatmul.mubr.f32.gmra.mxu0 %v1529
        %v1671 = vpop.f32.mrf.mxu0
        %v1672 = vadd.f32 0.0, %v1671
        %v1673 = vpop.f32.mrf.mxu0
        %1674 = vmatprep.mubr.f32.mxu0 0.0
        %1675 = vmatmul.mubr.f32.gmra.mxu0 %v1532
        %v1676 = vpop.f32.mrf.mxu0
        %v1677 = vadd.f32 0.0, %v1676
        %v1678 = vpop.f32.mrf.mxu0
        %1679 = vmatprep.mubr.f32.mxu0 0.0
        %1680 = vmatmul.mubr.f32.gmra.mxu0 %v1535
        %v1681 = vpop.f32.mrf.mxu0
        %v1682 = vadd.f32 0.0, %v1681
        %v1683 = vpop.f32.mrf.mxu0
        %1684 = vdwg.mxu0
        %v1685 = vadd.f32 %v1393, %v1607
        %v1686 = vadd.f32 %v1398, %v1612
        %v1687 = vadd.f32 %v1403, %v1617
        %v1688 = vadd.f32 %v1408, %v1622
        %v1689 = vadd.f32 %v1413, %v1627
        %v1690 = vadd.f32 %v1418, %v1632
        %v1691 = vadd.f32 %v1423, %v1637
        %v1692 = vadd.f32 %v1428, %v1642
        %v1693 = vadd.f32 %v1433, %v1647
        %v1694 = vadd.f32 %v1438, %v1652
        %v1695 = vadd.f32 %v1443, %v1657
        %v1696 = vadd.f32 %v1448, %v1662
        %v1697 = vadd.f32 %v1453, %v1667
        %v1698 = vadd.f32 %v1458, %v1672
        %v1699 = vadd.f32 %v1463, %v1677
        %v1700 = vadd.f32 %v1468, %v1682
        %v1701 = vld [vmem:[%s781] sm:$0xff]
        %v1702 = vld [vmem:[%s781 + $0x8] sm:$0xff]
        %v1703 = vld [vmem:[%s781 + $0x18] sm:$0xff]
        %v1704 = vld [vmem:[%s781 + $0x20] sm:$0xff]
        %v1705 = vld [vmem:[%s781 + $0x30] sm:$0xff]
        %v1706 = vld [vmem:[%s781 + $0x38] sm:$0xff]
        %v1707 = vld [vmem:[%s781 + $0x48] sm:$0xff]
        %v1708 = vld [vmem:[%s781 + $0x50] sm:$0xff]
        %v1709 = vld [vmem:[%s781 + $0x60] sm:$0xff]
        %v1710 = vld [vmem:[%s781 + $0x68] sm:$0xff]
        %v1711 = vld [vmem:[%s781 + $0x78] sm:$0xff]
        %v1712 = vld [vmem:[%s781 + $0x80] sm:$0xff]
        %v1713 = vld [vmem:[%s781 + $0x90] sm:$0xff]
        %v1714 = vld [vmem:[%s781 + $0x98] sm:$0xff]
        %v1715 = vld [vmem:[%s781 + $0xa8] sm:$0xff]
        %v1716 = vld [vmem:[%s781 + $0xb0] sm:$0xff]
        %s1717 = scalar_lea.vmem [#allocation9], 12
        %v1718 = vld [vmem:[%s1717] sm:$0xf]
        %v1720 = vsel %vm508, %v1701, 0
        %v1723 = vsel %vm508, %v1702, 0
        %v1726 = vsel %vm508, %v1703, 0
        %v1729 = vsel %vm508, %v1704, 0
        %v1732 = vsel %vm508, %v1705, 0
        %v1735 = vsel %vm508, %v1706, 0
        %v1738 = vsel %vm508, %v1707, 0
        %v1741 = vsel %vm508, %v1708, 0
        %v1744 = vsel %vm508, %v1709, 0
        %v1747 = vsel %vm508, %v1710, 0
        %v1750 = vsel %vm508, %v1711, 0
        %v1753 = vsel %vm508, %v1712, 0
        %v1756 = vsel %vm508, %v1713, 0
        %v1759 = vsel %vm508, %v1714, 0
        %v1762 = vsel %vm508, %v1715, 0
        %v1765 = vsel %vm508, %v1716, 0
        %v1768 = vsel %vm1126, %v1718, 0
        %1770 = vmatprep.subr.mxu0 0.0
        %1771 = vmatpush1.msra.mxu0 0.0
        %1772 = vmatprep.subr.mxu0 0.0
        %1773 = vmatpush1.msra.mxu0 0.0
        %1774 = vmatprep.subr.mxu0 0.0
        %1775 = vmatpush1.msra.mxu0 0.0
        %1776 = vmatprep.subr.mxu0 0.0
        %1777 = vmatpush1.msra.mxu0 0.0
        %1778 = vmatprep.subr.mxu0 0.0
        %1779 = vmatpush1.msra.mxu0 0.0
        %1780 = vmatprep.subr.mxu0 0.0
        %1781 = vmatpush1.msra.mxu0 0.0
        %1782 = vmatprep.subr.mxu0 0.0
        %1783 = vmatpush1.msra.mxu0 0.0
        %1784 = vmatprep.subr.mxu0 0.0
        %1785 = vmatpush1.msra.mxu0 0.0
        %1786 = vmatprep.subr.mxu0 0.0
        %1787 = vmatpush1.msra.mxu0 0.0
        %1788 = vmatprep.subr.mxu0 0.0
        %1789 = vmatpush1.msra.mxu0 0.0
        %1790 = vmatprep.subr.mxu0 0.0
        %1791 = vmatpush1.msra.mxu0 0.0
        %1792 = vmatprep.subr.mxu0 0.0
        %1793 = vmatpush1.msra.mxu0 0.0
        %1794 = vmatprep.subr.mxu0 0.0
        %1795 = vmatpush1.msra.mxu0 0.0
        %1796 = vmatprep.subr.mxu0 0.0
        %1797 = vmatpush1.msra.mxu0 0.0
        %1798 = vmatprep.subr.mxu0 0.0
        %1799 = vmatpush1.msra.mxu0 0.0
        %1800 = vmatprep.subr.mxu0 0.0
        %1801 = vmatpush1.msra.mxu0 %v1768
        %1802 = vmatprep.subr.mxu0 0.0
        %1803 = vmatpush2.msra.mxu0 0.0
        %1804 = vmatprep.subr.mxu0 0.0
        %1805 = vmatpush2.msra.mxu0 0.0
        %1806 = vmatprep.subr.mxu0 0.0
        %1807 = vmatpush2.msra.mxu0 0.0
        %1808 = vmatprep.subr.mxu0 0.0
        %1809 = vmatpush2.msra.mxu0 0.0
        %1810 = vmatprep.subr.mxu0 0.0
        %1811 = vmatpush2.msra.mxu0 0.0
        %1812 = vmatprep.subr.mxu0 0.0
        %1813 = vmatpush2.msra.mxu0 0.0
        %1814 = vmatprep.subr.mxu0 0.0
        %1815 = vmatpush2.msra.mxu0 0.0
        %1816 = vmatprep.subr.mxu0 0.0
        %1817 = vmatpush2.msra.mxu0 0.0
        %1818 = vmatprep.subr.mxu0 0.0
        %1819 = vmatpush2.msra.mxu0 0.0
        %1820 = vmatprep.subr.mxu0 0.0
        %1821 = vmatpush2.msra.mxu0 0.0
        %1822 = vmatprep.subr.mxu0 0.0
        %1823 = vmatpush2.msra.mxu0 0.0
        %1824 = vmatprep.subr.mxu0 0.0
        %1825 = vmatpush2.msra.mxu0 0.0
        %1826 = vmatprep.subr.mxu0 0.0
        %1827 = vmatpush2.msra.mxu0 0.0
        %1828 = vmatprep.subr.mxu0 0.0
        %1829 = vmatpush2.msra.mxu0 0.0
        %1830 = vmatprep.subr.mxu0 0.0
        %1831 = vmatpush2.msra.mxu0 0.0
        %1832 = vmatprep.subr.mxu0 0.0
        %1833 = vmatpush2.msra.mxu0 0.0
        %1834 = vmatprep.mubr.f32.mxu0 0.0
        %1835 = vmatmul.mubr.f32.gmra.mxu0 %v1720
        %v1836 = vpop.f32.mrf.mxu0
        %v1837 = vadd.f32 0.0, %v1836
        %v1838 = vpop.f32.mrf.mxu0
        %1839 = vmatprep.mubr.f32.mxu0 0.0
        %1840 = vmatmul.mubr.f32.gmra.mxu0 %v1723
        %v1841 = vpop.f32.mrf.mxu0
        %v1842 = vadd.f32 0.0, %v1841
        %v1843 = vpop.f32.mrf.mxu0
        %1844 = vmatprep.mubr.f32.mxu0 0.0
        %1845 = vmatmul.mubr.f32.gmra.mxu0 %v1726
        %v1846 = vpop.f32.mrf.mxu0
        %v1847 = vadd.f32 0.0, %v1846
        %v1848 = vpop.f32.mrf.mxu0
        %1849 = vmatprep.mubr.f32.mxu0 0.0
        %1850 = vmatmul.mubr.f32.gmra.mxu0 %v1729
        %v1851 = vpop.f32.mrf.mxu0
        %v1852 = vadd.f32 0.0, %v1851
        %v1853 = vpop.f32.mrf.mxu0
        %1854 = vmatprep.mubr.f32.mxu0 0.0
        %1855 = vmatmul.mubr.f32.gmra.mxu0 %v1732
        %v1856 = vpop.f32.mrf.mxu0
        %v1857 = vadd.f32 0.0, %v1856
        %v1858 = vpop.f32.mrf.mxu0
        %1859 = vmatprep.mubr.f32.mxu0 0.0
        %1860 = vmatmul.mubr.f32.gmra.mxu0 %v1735
        %v1861 = vpop.f32.mrf.mxu0
        %v1862 = vadd.f32 0.0, %v1861
        %v1863 = vpop.f32.mrf.mxu0
        %1864 = vmatprep.mubr.f32.mxu0 0.0
        %1865 = vmatmul.mubr.f32.gmra.mxu0 %v1738
        %v1866 = vpop.f32.mrf.mxu0
        %v1867 = vadd.f32 0.0, %v1866
        %v1868 = vpop.f32.mrf.mxu0
        %1869 = vmatprep.mubr.f32.mxu0 0.0
        %1870 = vmatmul.mubr.f32.gmra.mxu0 %v1741
        %v1871 = vpop.f32.mrf.mxu0
        %v1872 = vadd.f32 0.0, %v1871
        %v1873 = vpop.f32.mrf.mxu0
        %1874 = vmatprep.mubr.f32.mxu0 0.0
        %1875 = vmatmul.mubr.f32.gmra.mxu0 %v1744
        %v1876 = vpop.f32.mrf.mxu0
        %v1877 = vadd.f32 0.0, %v1876
        %v1878 = vpop.f32.mrf.mxu0
        %1879 = vmatprep.mubr.f32.mxu0 0.0
        %1880 = vmatmul.mubr.f32.gmra.mxu0 %v1747
        %v1881 = vpop.f32.mrf.mxu0
        %v1882 = vadd.f32 0.0, %v1881
        %v1883 = vpop.f32.mrf.mxu0
        %1884 = vmatprep.mubr.f32.mxu0 0.0
        %1885 = vmatmul.mubr.f32.gmra.mxu0 %v1750
        %v1886 = vpop.f32.mrf.mxu0
        %v1887 = vadd.f32 0.0, %v1886
        %v1888 = vpop.f32.mrf.mxu0
        %1889 = vmatprep.mubr.f32.mxu0 0.0
        %1890 = vmatmul.mubr.f32.gmra.mxu0 %v1753
        %v1891 = vpop.f32.mrf.mxu0
        %v1892 = vadd.f32 0.0, %v1891
        %v1893 = vpop.f32.mrf.mxu0
        %1894 = vmatprep.mubr.f32.mxu0 0.0
        %1895 = vmatmul.mubr.f32.gmra.mxu0 %v1756
        %v1896 = vpop.f32.mrf.mxu0
        %v1897 = vadd.f32 0.0, %v1896
        %v1898 = vpop.f32.mrf.mxu0
        %1899 = vmatprep.mubr.f32.mxu0 0.0
        %1900 = vmatmul.mubr.f32.gmra.mxu0 %v1759
        %v1901 = vpop.f32.mrf.mxu0
        %v1902 = vadd.f32 0.0, %v1901
        %v1903 = vpop.f32.mrf.mxu0
        %1904 = vmatprep.mubr.f32.mxu0 0.0
        %1905 = vmatmul.mubr.f32.gmra.mxu0 %v1762
        %v1906 = vpop.f32.mrf.mxu0
        %v1907 = vadd.f32 0.0, %v1906
        %v1908 = vpop.f32.mrf.mxu0
        %1909 = vmatprep.mubr.f32.mxu0 0.0
        %1910 = vmatmul.mubr.f32.gmra.mxu0 %v1765
        %v1911 = vpop.f32.mrf.mxu0
        %v1912 = vadd.f32 0.0, %v1911
        %v1913 = vpop.f32.mrf.mxu0
        %1914 = vdwg.mxu0
        %v1915 = vadd.f32 %v1685, %v1837
        %v1916 = vadd.f32 %v1686, %v1842
        %v1917 = vadd.f32 %v1687, %v1847
        %v1918 = vadd.f32 %v1688, %v1852
        %v1919 = vadd.f32 %v1689, %v1857
        %v1920 = vadd.f32 %v1690, %v1862
        %v1921 = vadd.f32 %v1691, %v1867
        %v1922 = vadd.f32 %v1692, %v1872
        %v1923 = vadd.f32 %v1693, %v1877
        %v1924 = vadd.f32 %v1694, %v1882
        %v1925 = vadd.f32 %v1695, %v1887
        %v1926 = vadd.f32 %v1696, %v1892
        %v1927 = vadd.f32 %v1697, %v1897
        %v1928 = vadd.f32 %v1698, %v1902
        %v1929 = vadd.f32 %v1699, %v1907
        %v1930 = vadd.f32 %v1700, %v1912
        %v1931 = vld [vmem:[%s781 + $0x2] sm:$0xff]
        %v1932 = vld [vmem:[%s781 + $0xa] sm:$0xff]
        %v1933 = vld [vmem:[%s781 + $0x1a] sm:$0xff]
        %v1934 = vld [vmem:[%s781 + $0x22] sm:$0xff]
        %v1935 = vld [vmem:[%s781 + $0x32] sm:$0xff]
        %v1936 = vld [vmem:[%s781 + $0x3a] sm:$0xff]
        %v1937 = vld [vmem:[%s781 + $0x4a] sm:$0xff]
        %v1938 = vld [vmem:[%s781 + $0x52] sm:$0xff]
        %v1939 = vld [vmem:[%s781 + $0x62] sm:$0xff]
        %v1940 = vld [vmem:[%s781 + $0x6a] sm:$0xff]
        %v1941 = vld [vmem:[%s781 + $0x7a] sm:$0xff]
        %v1942 = vld [vmem:[%s781 + $0x82] sm:$0xff]
        %v1943 = vld [vmem:[%s781 + $0x92] sm:$0xff]
        %v1944 = vld [vmem:[%s781 + $0x9a] sm:$0xff]
        %v1945 = vld [vmem:[%s781 + $0xaa] sm:$0xff]
        %v1946 = vld [vmem:[%s781 + $0xb2] sm:$0xff]
        %s1947 = scalar_lea.vmem [#allocation9], 16
        %v1948 = vld [vmem:[%s1947] sm:$0xf]
        %v1950 = vsel %vm508, %v1931, 0
        %v1953 = vsel %vm508, %v1932, 0
        %v1956 = vsel %vm508, %v1933, 0
        %v1959 = vsel %vm508, %v1934, 0
        %v1962 = vsel %vm508, %v1935, 0
        %v1965 = vsel %vm508, %v1936, 0
        %v1968 = vsel %vm508, %v1937, 0
        %v1971 = vsel %vm508, %v1938, 0
        %v1974 = vsel %vm508, %v1939, 0
        %v1977 = vsel %vm508, %v1940, 0
        %v1980 = vsel %vm508, %v1941, 0
        %v1983 = vsel %vm508, %v1942, 0
        %v1986 = vsel %vm508, %v1943, 0
        %v1989 = vsel %vm508, %v1944, 0
        %v1992 = vsel %vm508, %v1945, 0
        %v1995 = vsel %vm508, %v1946, 0
        %v1998 = vsel %vm1126, %v1948, 0
        %2000 = vmatprep.subr.mxu0 0.0
        %2001 = vmatpush1.msra.mxu0 0.0
        %2002 = vmatprep.subr.mxu0 0.0
        %2003 = vmatpush1.msra.mxu0 0.0
        %2004 = vmatprep.subr.mxu0 0.0
        %2005 = vmatpush1.msra.mxu0 0.0
        %2006 = vmatprep.subr.mxu0 0.0
        %2007 = vmatpush1.msra.mxu0 0.0
        %2008 = vmatprep.subr.mxu0 0.0
        %2009 = vmatpush1.msra.mxu0 0.0
        %2010 = vmatprep.subr.mxu0 0.0
        %2011 = vmatpush1.msra.mxu0 0.0
        %2012 = vmatprep.subr.mxu0 0.0
        %2013 = vmatpush1.msra.mxu0 0.0
        %2014 = vmatprep.subr.mxu0 0.0
        %2015 = vmatpush1.msra.mxu0 0.0
        %2016 = vmatprep.subr.mxu0 0.0
        %2017 = vmatpush1.msra.mxu0 0.0
        %2018 = vmatprep.subr.mxu0 0.0
        %2019 = vmatpush1.msra.mxu0 0.0
        %2020 = vmatprep.subr.mxu0 0.0
        %2021 = vmatpush1.msra.mxu0 0.0
        %2022 = vmatprep.subr.mxu0 0.0
        %2023 = vmatpush1.msra.mxu0 0.0
        %2024 = vmatprep.subr.mxu0 0.0
        %2025 = vmatpush1.msra.mxu0 0.0
        %2026 = vmatprep.subr.mxu0 0.0
        %2027 = vmatpush1.msra.mxu0 0.0
        %2028 = vmatprep.subr.mxu0 0.0
        %2029 = vmatpush1.msra.mxu0 0.0
        %2030 = vmatprep.subr.mxu0 0.0
        %2031 = vmatpush1.msra.mxu0 %v1998
        %2032 = vmatprep.subr.mxu0 0.0
        %2033 = vmatpush2.msra.mxu0 0.0
        %2034 = vmatprep.subr.mxu0 0.0
        %2035 = vmatpush2.msra.mxu0 0.0
        %2036 = vmatprep.subr.mxu0 0.0
        %2037 = vmatpush2.msra.mxu0 0.0
        %2038 = vmatprep.subr.mxu0 0.0
        %2039 = vmatpush2.msra.mxu0 0.0
        %2040 = vmatprep.subr.mxu0 0.0
        %2041 = vmatpush2.msra.mxu0 0.0
        %2042 = vmatprep.subr.mxu0 0.0
        %2043 = vmatpush2.msra.mxu0 0.0
        %2044 = vmatprep.subr.mxu0 0.0
        %2045 = vmatpush2.msra.mxu0 0.0
        %2046 = vmatprep.subr.mxu0 0.0
        %2047 = vmatpush2.msra.mxu0 0.0
        %2048 = vmatprep.subr.mxu0 0.0
        %2049 = vmatpush2.msra.mxu0 0.0
        %2050 = vmatprep.subr.mxu0 0.0
        %2051 = vmatpush2.msra.mxu0 0.0
        %2052 = vmatprep.subr.mxu0 0.0
        %2053 = vmatpush2.msra.mxu0 0.0
        %2054 = vmatprep.subr.mxu0 0.0
        %2055 = vmatpush2.msra.mxu0 0.0
        %2056 = vmatprep.subr.mxu0 0.0
        %2057 = vmatpush2.msra.mxu0 0.0
        %2058 = vmatprep.subr.mxu0 0.0
        %2059 = vmatpush2.msra.mxu0 0.0
        %2060 = vmatprep.subr.mxu0 0.0
        %2061 = vmatpush2.msra.mxu0 0.0
        %2062 = vmatprep.subr.mxu0 0.0
        %2063 = vmatpush2.msra.mxu0 0.0
        %2064 = vmatprep.mubr.f32.mxu0 0.0
        %2065 = vmatmul.mubr.f32.gmra.mxu0 %v1950
        %v2066 = vpop.f32.mrf.mxu0
        %v2067 = vadd.f32 0.0, %v2066
        %v2068 = vpop.f32.mrf.mxu0
        %2069 = vmatprep.mubr.f32.mxu0 0.0
        %2070 = vmatmul.mubr.f32.gmra.mxu0 %v1953
        %v2071 = vpop.f32.mrf.mxu0
        %v2072 = vadd.f32 0.0, %v2071
        %v2073 = vpop.f32.mrf.mxu0
        %2074 = vmatprep.mubr.f32.mxu0 0.0
        %2075 = vmatmul.mubr.f32.gmra.mxu0 %v1956
        %v2076 = vpop.f32.mrf.mxu0
        %v2077 = vadd.f32 0.0, %v2076
        %v2078 = vpop.f32.mrf.mxu0
        %2079 = vmatprep.mubr.f32.mxu0 0.0
        %2080 = vmatmul.mubr.f32.gmra.mxu0 %v1959
        %v2081 = vpop.f32.mrf.mxu0
        %v2082 = vadd.f32 0.0, %v2081
        %v2083 = vpop.f32.mrf.mxu0
        %2084 = vmatprep.mubr.f32.mxu0 0.0
        %2085 = vmatmul.mubr.f32.gmra.mxu0 %v1962
        %v2086 = vpop.f32.mrf.mxu0
        %v2087 = vadd.f32 0.0, %v2086
        %v2088 = vpop.f32.mrf.mxu0
        %2089 = vmatprep.mubr.f32.mxu0 0.0
        %2090 = vmatmul.mubr.f32.gmra.mxu0 %v1965
        %v2091 = vpop.f32.mrf.mxu0
        %v2092 = vadd.f32 0.0, %v2091
        %v2093 = vpop.f32.mrf.mxu0
        %2094 = vmatprep.mubr.f32.mxu0 0.0
        %2095 = vmatmul.mubr.f32.gmra.mxu0 %v1968
        %v2096 = vpop.f32.mrf.mxu0
        %v2097 = vadd.f32 0.0, %v2096
        %v2098 = vpop.f32.mrf.mxu0
        %2099 = vmatprep.mubr.f32.mxu0 0.0
        %2100 = vmatmul.mubr.f32.gmra.mxu0 %v1971
        %v2101 = vpop.f32.mrf.mxu0
        %v2102 = vadd.f32 0.0, %v2101
        %v2103 = vpop.f32.mrf.mxu0
        %2104 = vmatprep.mubr.f32.mxu0 0.0
        %2105 = vmatmul.mubr.f32.gmra.mxu0 %v1974
        %v2106 = vpop.f32.mrf.mxu0
        %v2107 = vadd.f32 0.0, %v2106
        %v2108 = vpop.f32.mrf.mxu0
        %2109 = vmatprep.mubr.f32.mxu0 0.0
        %2110 = vmatmul.mubr.f32.gmra.mxu0 %v1977
        %v2111 = vpop.f32.mrf.mxu0
        %v2112 = vadd.f32 0.0, %v2111
        %v2113 = vpop.f32.mrf.mxu0
        %2114 = vmatprep.mubr.f32.mxu0 0.0
        %2115 = vmatmul.mubr.f32.gmra.mxu0 %v1980
        %v2116 = vpop.f32.mrf.mxu0
        %v2117 = vadd.f32 0.0, %v2116
        %v2118 = vpop.f32.mrf.mxu0
        %2119 = vmatprep.mubr.f32.mxu0 0.0
        %2120 = vmatmul.mubr.f32.gmra.mxu0 %v1983
        %v2121 = vpop.f32.mrf.mxu0
        %v2122 = vadd.f32 0.0, %v2121
        %v2123 = vpop.f32.mrf.mxu0
        %2124 = vmatprep.mubr.f32.mxu0 0.0
        %2125 = vmatmul.mubr.f32.gmra.mxu0 %v1986
        %v2126 = vpop.f32.mrf.mxu0
        %v2127 = vadd.f32 0.0, %v2126
        %v2128 = vpop.f32.mrf.mxu0
        %2129 = vmatprep.mubr.f32.mxu0 0.0
        %2130 = vmatmul.mubr.f32.gmra.mxu0 %v1989
        %v2131 = vpop.f32.mrf.mxu0
        %v2132 = vadd.f32 0.0, %v2131
        %v2133 = vpop.f32.mrf.mxu0
        %2134 = vmatprep.mubr.f32.mxu0 0.0
        %2135 = vmatmul.mubr.f32.gmra.mxu0 %v1992
        %v2136 = vpop.f32.mrf.mxu0
        %v2137 = vadd.f32 0.0, %v2136
        %v2138 = vpop.f32.mrf.mxu0
        %2139 = vmatprep.mubr.f32.mxu0 0.0
        %2140 = vmatmul.mubr.f32.gmra.mxu0 %v1995
        %v2141 = vpop.f32.mrf.mxu0
        %v2142 = vadd.f32 0.0, %v2141
        %v2143 = vpop.f32.mrf.mxu0
        %2144 = vdwg.mxu0
        %v2145 = vadd.f32 %v1915, %v2067
        %v2146 = vadd.f32 %v1916, %v2072
        %v2147 = vadd.f32 %v1917, %v2077
        %v2148 = vadd.f32 %v1918, %v2082
        %v2149 = vadd.f32 %v1919, %v2087
        %v2150 = vadd.f32 %v1920, %v2092
        %v2151 = vadd.f32 %v1921, %v2097
        %v2152 = vadd.f32 %v1922, %v2102
        %v2153 = vadd.f32 %v1923, %v2107
        %v2154 = vadd.f32 %v1924, %v2112
        %v2155 = vadd.f32 %v1925, %v2117
        %v2156 = vadd.f32 %v1926, %v2122
        %v2157 = vadd.f32 %v1927, %v2127
        %v2158 = vadd.f32 %v1928, %v2132
        %v2159 = vadd.f32 %v1929, %v2137
        %v2160 = vadd.f32 %v1930, %v2142
        %v2161 = vld [vmem:[%s781 + $0x4] sm:$0xff]
        %v2162 = vld [vmem:[%s781 + $0xc] sm:$0xff]
        %v2163 = vld [vmem:[%s781 + $0x1c] sm:$0xff]
        %v2164 = vld [vmem:[%s781 + $0x24] sm:$0xff]
        %v2165 = vld [vmem:[%s781 + $0x34] sm:$0xff]
        %v2166 = vld [vmem:[%s781 + $0x3c] sm:$0xff]
        %v2167 = vld [vmem:[%s781 + $0x4c] sm:$0xff]
        %v2168 = vld [vmem:[%s781 + $0x54] sm:$0xff]
        %v2169 = vld [vmem:[%s781 + $0x64] sm:$0xff]
        %v2170 = vld [vmem:[%s781 + $0x6c] sm:$0xff]
        %v2171 = vld [vmem:[%s781 + $0x7c] sm:$0xff]
        %v2172 = vld [vmem:[%s781 + $0x84] sm:$0xff]
        %v2173 = vld [vmem:[%s781 + $0x94] sm:$0xff]
        %v2174 = vld [vmem:[%s781 + $0x9c] sm:$0xff]
        %v2175 = vld [vmem:[%s781 + $0xac] sm:$0xff]
        %v2176 = vld [vmem:[%s781 + $0xb4] sm:$0xff]
        %s2177 = scalar_lea.vmem [#allocation9], 20
        %v2178 = vld [vmem:[%s2177] sm:$0xf]
        %v2180 = vsel %vm508, %v2161, 0
        %v2183 = vsel %vm508, %v2162, 0
        %v2186 = vsel %vm508, %v2163, 0
        %v2189 = vsel %vm508, %v2164, 0
        %v2192 = vsel %vm508, %v2165, 0
        %v2195 = vsel %vm508, %v2166, 0
        %v2198 = vsel %vm508, %v2167, 0
        %v2201 = vsel %vm508, %v2168, 0
        %v2204 = vsel %vm508, %v2169, 0
        %v2207 = vsel %vm508, %v2170, 0
        %v2210 = vsel %vm508, %v2171, 0
        %v2213 = vsel %vm508, %v2172, 0
        %v2216 = vsel %vm508, %v2173, 0
        %v2219 = vsel %vm508, %v2174, 0
        %v2222 = vsel %vm508, %v2175, 0
        %v2225 = vsel %vm508, %v2176, 0
        %v2228 = vsel %vm1126, %v2178, 0
        %2230 = vmatprep.subr.mxu0 0.0
        %2231 = vmatpush1.msra.mxu0 0.0
        %2232 = vmatprep.subr.mxu0 0.0
        %2233 = vmatpush1.msra.mxu0 0.0
        %2234 = vmatprep.subr.mxu0 0.0
        %2235 = vmatpush1.msra.mxu0 0.0
        %2236 = vmatprep.subr.mxu0 0.0
        %2237 = vmatpush1.msra.mxu0 0.0
        %2238 = vmatprep.subr.mxu0 0.0
        %2239 = vmatpush1.msra.mxu0 0.0
        %2240 = vmatprep.subr.mxu0 0.0
        %2241 = vmatpush1.msra.mxu0 0.0
        %2242 = vmatprep.subr.mxu0 0.0
        %2243 = vmatpush1.msra.mxu0 0.0
        %2244 = vmatprep.subr.mxu0 0.0
        %2245 = vmatpush1.msra.mxu0 0.0
        %2246 = vmatprep.subr.mxu0 0.0
        %2247 = vmatpush1.msra.mxu0 0.0
        %2248 = vmatprep.subr.mxu0 0.0
        %2249 = vmatpush1.msra.mxu0 0.0
        %2250 = vmatprep.subr.mxu0 0.0
        %2251 = vmatpush1.msra.mxu0 0.0
        %2252 = vmatprep.subr.mxu0 0.0
        %2253 = vmatpush1.msra.mxu0 0.0
        %2254 = vmatprep.subr.mxu0 0.0
        %2255 = vmatpush1.msra.mxu0 0.0
        %2256 = vmatprep.subr.mxu0 0.0
        %2257 = vmatpush1.msra.mxu0 0.0
        %2258 = vmatprep.subr.mxu0 0.0
        %2259 = vmatpush1.msra.mxu0 0.0
        %2260 = vmatprep.subr.mxu0 0.0
        %2261 = vmatpush1.msra.mxu0 %v2228
        %2262 = vmatprep.subr.mxu0 0.0
        %2263 = vmatpush2.msra.mxu0 0.0
        %2264 = vmatprep.subr.mxu0 0.0
        %2265 = vmatpush2.msra.mxu0 0.0
        %2266 = vmatprep.subr.mxu0 0.0
        %2267 = vmatpush2.msra.mxu0 0.0
        %2268 = vmatprep.subr.mxu0 0.0
        %2269 = vmatpush2.msra.mxu0 0.0
        %2270 = vmatprep.subr.mxu0 0.0
        %2271 = vmatpush2.msra.mxu0 0.0
        %2272 = vmatprep.subr.mxu0 0.0
        %2273 = vmatpush2.msra.mxu0 0.0
        %2274 = vmatprep.subr.mxu0 0.0
        %2275 = vmatpush2.msra.mxu0 0.0
        %2276 = vmatprep.subr.mxu0 0.0
        %2277 = vmatpush2.msra.mxu0 0.0
        %2278 = vmatprep.subr.mxu0 0.0
        %2279 = vmatpush2.msra.mxu0 0.0
        %2280 = vmatprep.subr.mxu0 0.0
        %2281 = vmatpush2.msra.mxu0 0.0
        %2282 = vmatprep.subr.mxu0 0.0
        %2283 = vmatpush2.msra.mxu0 0.0
        %2284 = vmatprep.subr.mxu0 0.0
        %2285 = vmatpush2.msra.mxu0 0.0
        %2286 = vmatprep.subr.mxu0 0.0
        %2287 = vmatpush2.msra.mxu0 0.0
        %2288 = vmatprep.subr.mxu0 0.0
        %2289 = vmatpush2.msra.mxu0 0.0
        %2290 = vmatprep.subr.mxu0 0.0
        %2291 = vmatpush2.msra.mxu0 0.0
        %2292 = vmatprep.subr.mxu0 0.0
        %2293 = vmatpush2.msra.mxu0 0.0
        %2294 = vmatprep.mubr.f32.mxu0 0.0
        %2295 = vmatmul.mubr.f32.gmra.mxu0 %v2180
        %v2296 = vpop.f32.mrf.mxu0
        %v2297 = vadd.f32 0.0, %v2296
        %v2298 = vpop.f32.mrf.mxu0
        %2299 = vmatprep.mubr.f32.mxu0 0.0
        %2300 = vmatmul.mubr.f32.gmra.mxu0 %v2183
        %v2301 = vpop.f32.mrf.mxu0
        %v2302 = vadd.f32 0.0, %v2301
        %v2303 = vpop.f32.mrf.mxu0
        %2304 = vmatprep.mubr.f32.mxu0 0.0
        %2305 = vmatmul.mubr.f32.gmra.mxu0 %v2186
        %v2306 = vpop.f32.mrf.mxu0
        %v2307 = vadd.f32 0.0, %v2306
        %v2308 = vpop.f32.mrf.mxu0
        %2309 = vmatprep.mubr.f32.mxu0 0.0
        %2310 = vmatmul.mubr.f32.gmra.mxu0 %v2189
        %v2311 = vpop.f32.mrf.mxu0
        %v2312 = vadd.f32 0.0, %v2311
        %v2313 = vpop.f32.mrf.mxu0
        %2314 = vmatprep.mubr.f32.mxu0 0.0
        %2315 = vmatmul.mubr.f32.gmra.mxu0 %v2192
        %v2316 = vpop.f32.mrf.mxu0
        %v2317 = vadd.f32 0.0, %v2316
        %v2318 = vpop.f32.mrf.mxu0
        %2319 = vmatprep.mubr.f32.mxu0 0.0
        %2320 = vmatmul.mubr.f32.gmra.mxu0 %v2195
        %v2321 = vpop.f32.mrf.mxu0
        %v2322 = vadd.f32 0.0, %v2321
        %v2323 = vpop.f32.mrf.mxu0
        %2324 = vmatprep.mubr.f32.mxu0 0.0
        %2325 = vmatmul.mubr.f32.gmra.mxu0 %v2198
        %v2326 = vpop.f32.mrf.mxu0
        %v2327 = vadd.f32 0.0, %v2326
        %v2328 = vpop.f32.mrf.mxu0
        %2329 = vmatprep.mubr.f32.mxu0 0.0
        %2330 = vmatmul.mubr.f32.gmra.mxu0 %v2201
        %v2331 = vpop.f32.mrf.mxu0
        %v2332 = vadd.f32 0.0, %v2331
        %v2333 = vpop.f32.mrf.mxu0
        %2334 = vmatprep.mubr.f32.mxu0 0.0
        %2335 = vmatmul.mubr.f32.gmra.mxu0 %v2204
        %v2336 = vpop.f32.mrf.mxu0
        %v2337 = vadd.f32 0.0, %v2336
        %v2338 = vpop.f32.mrf.mxu0
        %2339 = vmatprep.mubr.f32.mxu0 0.0
        %2340 = vmatmul.mubr.f32.gmra.mxu0 %v2207
        %v2341 = vpop.f32.mrf.mxu0
        %v2342 = vadd.f32 0.0, %v2341
        %v2343 = vpop.f32.mrf.mxu0
        %2344 = vmatprep.mubr.f32.mxu0 0.0
        %2345 = vmatmul.mubr.f32.gmra.mxu0 %v2210
        %v2346 = vpop.f32.mrf.mxu0
        %v2347 = vadd.f32 0.0, %v2346
        %v2348 = vpop.f32.mrf.mxu0
        %2349 = vmatprep.mubr.f32.mxu0 0.0
        %2350 = vmatmul.mubr.f32.gmra.mxu0 %v2213
        %v2351 = vpop.f32.mrf.mxu0
        %v2352 = vadd.f32 0.0, %v2351
        %v2353 = vpop.f32.mrf.mxu0
        %2354 = vmatprep.mubr.f32.mxu0 0.0
        %2355 = vmatmul.mubr.f32.gmra.mxu0 %v2216
        %v2356 = vpop.f32.mrf.mxu0
        %v2357 = vadd.f32 0.0, %v2356
        %v2358 = vpop.f32.mrf.mxu0
        %2359 = vmatprep.mubr.f32.mxu0 0.0
        %2360 = vmatmul.mubr.f32.gmra.mxu0 %v2219
        %v2361 = vpop.f32.mrf.mxu0
        %v2362 = vadd.f32 0.0, %v2361
        %v2363 = vpop.f32.mrf.mxu0
        %2364 = vmatprep.mubr.f32.mxu0 0.0
        %2365 = vmatmul.mubr.f32.gmra.mxu0 %v2222
        %v2366 = vpop.f32.mrf.mxu0
        %v2367 = vadd.f32 0.0, %v2366
        %v2368 = vpop.f32.mrf.mxu0
        %2369 = vmatprep.mubr.f32.mxu0 0.0
        %2370 = vmatmul.mubr.f32.gmra.mxu0 %v2225
        %v2371 = vpop.f32.mrf.mxu0
        %v2372 = vadd.f32 0.0, %v2371
        %v2373 = vpop.f32.mrf.mxu0
        %2374 = vdwg.mxu0
        %v2375 = vadd.f32 %v2145, %v2297
        %v2376 = vadd.f32 %v2146, %v2302
        %v2377 = vadd.f32 %v2147, %v2307
        %v2378 = vadd.f32 %v2148, %v2312
        %v2379 = vadd.f32 %v2149, %v2317
        %v2380 = vadd.f32 %v2150, %v2322
        %v2381 = vadd.f32 %v2151, %v2327
        %v2382 = vadd.f32 %v2152, %v2332
        %v2383 = vadd.f32 %v2153, %v2337
        %v2384 = vadd.f32 %v2154, %v2342
        %v2385 = vadd.f32 %v2155, %v2347
        %v2386 = vadd.f32 %v2156, %v2352
        %v2387 = vadd.f32 %v2157, %v2357
        %v2388 = vadd.f32 %v2158, %v2362
        %v2389 = vadd.f32 %v2159, %v2367
        %v2390 = vadd.f32 %v2160, %v2372
        %s2391 = scalar_lea.vmem [#allocation2], 96
        %v2392 = vld [vmem:[%s2391] sm:$0xff]
        %v2393 = vld [vmem:[%s2391 + $0x8] sm:$0xff]
        %v2394 = vld [vmem:[%s2391 + $0x18] sm:$0xff]
        %v2395 = vld [vmem:[%s2391 + $0x20] sm:$0xff]
        %v2396 = vld [vmem:[%s2391 + $0x30] sm:$0xff]
        %v2397 = vld [vmem:[%s2391 + $0x38] sm:$0xff]
        %v2398 = vld [vmem:[%s2391 + $0x48] sm:$0xff]
        %v2399 = vld [vmem:[%s2391 + $0x50] sm:$0xff]
        %v2400 = vld [vmem:[%s2391 + $0x60] sm:$0xff]
        %v2401 = vld [vmem:[%s2391 + $0x68] sm:$0xff]
        %v2402 = vld [vmem:[%s2391 + $0x78] sm:$0xff]
        %v2403 = vld [vmem:[%s2391 + $0x80] sm:$0xff]
        %v2404 = vld [vmem:[%s2391 + $0x90] sm:$0xff]
        %v2405 = vld [vmem:[%s2391 + $0x98] sm:$0xff]
        %v2406 = vld [vmem:[%s2391 + $0xa8] sm:$0xff]
        %v2407 = vld [vmem:[%s2391 + $0xb0] sm:$0xff]
        %s2408 = scalar_lea.vmem [#allocation9], 24
        %v2409 = vld [vmem:[%s2408] sm:$0xf]
        %v2411 = vsel %vm508, %v2392, 0
        %v2414 = vsel %vm508, %v2393, 0
        %v2417 = vsel %vm508, %v2394, 0
        %v2420 = vsel %vm508, %v2395, 0
        %v2423 = vsel %vm508, %v2396, 0
        %v2426 = vsel %vm508, %v2397, 0
        %v2429 = vsel %vm508, %v2398, 0
        %v2432 = vsel %vm508, %v2399, 0
        %v2435 = vsel %vm508, %v2400, 0
        %v2438 = vsel %vm508, %v2401, 0
        %v2441 = vsel %vm508, %v2402, 0
        %v2444 = vsel %vm508, %v2403, 0
        %v2447 = vsel %vm508, %v2404, 0
        %v2450 = vsel %vm508, %v2405, 0
        %v2453 = vsel %vm508, %v2406, 0
        %v2456 = vsel %vm508, %v2407, 0
        %v2459 = vsel %vm1126, %v2409, 0
        %2461 = vmatprep.subr.mxu0 0.0
        %2462 = vmatpush1.msra.mxu0 0.0
        %2463 = vmatprep.subr.mxu0 0.0
        %2464 = vmatpush1.msra.mxu0 0.0
        %2465 = vmatprep.subr.mxu0 0.0
        %2466 = vmatpush1.msra.mxu0 0.0
        %2467 = vmatprep.subr.mxu0 0.0
        %2468 = vmatpush1.msra.mxu0 0.0
        %2469 = vmatprep.subr.mxu0 0.0
        %2470 = vmatpush1.msra.mxu0 0.0
        %2471 = vmatprep.subr.mxu0 0.0
        %2472 = vmatpush1.msra.mxu0 0.0
        %2473 = vmatprep.subr.mxu0 0.0
        %2474 = vmatpush1.msra.mxu0 0.0
        %2475 = vmatprep.subr.mxu0 0.0
        %2476 = vmatpush1.msra.mxu0 0.0
        %2477 = vmatprep.subr.mxu0 0.0
        %2478 = vmatpush1.msra.mxu0 0.0
        %2479 = vmatprep.subr.mxu0 0.0
        %2480 = vmatpush1.msra.mxu0 0.0
        %2481 = vmatprep.subr.mxu0 0.0
        %2482 = vmatpush1.msra.mxu0 0.0
        %2483 = vmatprep.subr.mxu0 0.0
        %2484 = vmatpush1.msra.mxu0 0.0
        %2485 = vmatprep.subr.mxu0 0.0
        %2486 = vmatpush1.msra.mxu0 0.0
        %2487 = vmatprep.subr.mxu0 0.0
        %2488 = vmatpush1.msra.mxu0 0.0
        %2489 = vmatprep.subr.mxu0 0.0
        %2490 = vmatpush1.msra.mxu0 0.0
        %2491 = vmatprep.subr.mxu0 0.0
        %2492 = vmatpush1.msra.mxu0 %v2459
        %2493 = vmatprep.subr.mxu0 0.0
        %2494 = vmatpush2.msra.mxu0 0.0
        %2495 = vmatprep.subr.mxu0 0.0
        %2496 = vmatpush2.msra.mxu0 0.0
        %2497 = vmatprep.subr.mxu0 0.0
        %2498 = vmatpush2.msra.mxu0 0.0
        %2499 = vmatprep.subr.mxu0 0.0
        %2500 = vmatpush2.msra.mxu0 0.0
        %2501 = vmatprep.subr.mxu0 0.0
        %2502 = vmatpush2.msra.mxu0 0.0
        %2503 = vmatprep.subr.mxu0 0.0
        %2504 = vmatpush2.msra.mxu0 0.0
        %2505 = vmatprep.subr.mxu0 0.0
        %2506 = vmatpush2.msra.mxu0 0.0
        %2507 = vmatprep.subr.mxu0 0.0
        %2508 = vmatpush2.msra.mxu0 0.0
        %2509 = vmatprep.subr.mxu0 0.0
        %2510 = vmatpush2.msra.mxu0 0.0
        %2511 = vmatprep.subr.mxu0 0.0
        %2512 = vmatpush2.msra.mxu0 0.0
        %2513 = vmatprep.subr.mxu0 0.0
        %2514 = vmatpush2.msra.mxu0 0.0
        %2515 = vmatprep.subr.mxu0 0.0
        %2516 = vmatpush2.msra.mxu0 0.0
        %2517 = vmatprep.subr.mxu0 0.0
        %2518 = vmatpush2.msra.mxu0 0.0
        %2519 = vmatprep.subr.mxu0 0.0
        %2520 = vmatpush2.msra.mxu0 0.0
        %2521 = vmatprep.subr.mxu0 0.0
        %2522 = vmatpush2.msra.mxu0 0.0
        %2523 = vmatprep.subr.mxu0 0.0
        %2524 = vmatpush2.msra.mxu0 0.0
        %2525 = vmatprep.mubr.f32.mxu0 0.0
        %2526 = vmatmul.mubr.f32.gmra.mxu0 %v2411
        %v2527 = vpop.f32.mrf.mxu0
        %v2528 = vadd.f32 0.0, %v2527
        %v2529 = vpop.f32.mrf.mxu0
        %2530 = vmatprep.mubr.f32.mxu0 0.0
        %2531 = vmatmul.mubr.f32.gmra.mxu0 %v2414
        %v2532 = vpop.f32.mrf.mxu0
        %v2533 = vadd.f32 0.0, %v2532
        %v2534 = vpop.f32.mrf.mxu0
        %2535 = vmatprep.mubr.f32.mxu0 0.0
        %2536 = vmatmul.mubr.f32.gmra.mxu0 %v2417
        %v2537 = vpop.f32.mrf.mxu0
        %v2538 = vadd.f32 0.0, %v2537
        %v2539 = vpop.f32.mrf.mxu0
        %2540 = vmatprep.mubr.f32.mxu0 0.0
        %2541 = vmatmul.mubr.f32.gmra.mxu0 %v2420
        %v2542 = vpop.f32.mrf.mxu0
        %v2543 = vadd.f32 0.0, %v2542
        %v2544 = vpop.f32.mrf.mxu0
        %2545 = vmatprep.mubr.f32.mxu0 0.0
        %2546 = vmatmul.mubr.f32.gmra.mxu0 %v2423
        %v2547 = vpop.f32.mrf.mxu0
        %v2548 = vadd.f32 0.0, %v2547
        %v2549 = vpop.f32.mrf.mxu0
        %2550 = vmatprep.mubr.f32.mxu0 0.0
        %2551 = vmatmul.mubr.f32.gmra.mxu0 %v2426
        %v2552 = vpop.f32.mrf.mxu0
        %v2553 = vadd.f32 0.0, %v2552
        %v2554 = vpop.f32.mrf.mxu0
        %2555 = vmatprep.mubr.f32.mxu0 0.0
        %2556 = vmatmul.mubr.f32.gmra.mxu0 %v2429
        %v2557 = vpop.f32.mrf.mxu0
        %v2558 = vadd.f32 0.0, %v2557
        %v2559 = vpop.f32.mrf.mxu0
        %2560 = vmatprep.mubr.f32.mxu0 0.0
        %2561 = vmatmul.mubr.f32.gmra.mxu0 %v2432
        %v2562 = vpop.f32.mrf.mxu0
        %v2563 = vadd.f32 0.0, %v2562
        %v2564 = vpop.f32.mrf.mxu0
        %2565 = vmatprep.mubr.f32.mxu0 0.0
        %2566 = vmatmul.mubr.f32.gmra.mxu0 %v2435
        %v2567 = vpop.f32.mrf.mxu0
        %v2568 = vadd.f32 0.0, %v2567
        %v2569 = vpop.f32.mrf.mxu0
        %2570 = vmatprep.mubr.f32.mxu0 0.0
        %2571 = vmatmul.mubr.f32.gmra.mxu0 %v2438
        %v2572 = vpop.f32.mrf.mxu0
        %v2573 = vadd.f32 0.0, %v2572
        %v2574 = vpop.f32.mrf.mxu0
        %2575 = vmatprep.mubr.f32.mxu0 0.0
        %2576 = vmatmul.mubr.f32.gmra.mxu0 %v2441
        %v2577 = vpop.f32.mrf.mxu0
        %v2578 = vadd.f32 0.0, %v2577
        %v2579 = vpop.f32.mrf.mxu0
        %2580 = vmatprep.mubr.f32.mxu0 0.0
        %2581 = vmatmul.mubr.f32.gmra.mxu0 %v2444
        %v2582 = vpop.f32.mrf.mxu0
        %v2583 = vadd.f32 0.0, %v2582
        %v2584 = vpop.f32.mrf.mxu0
        %2585 = vmatprep.mubr.f32.mxu0 0.0
        %2586 = vmatmul.mubr.f32.gmra.mxu0 %v2447
        %v2587 = vpop.f32.mrf.mxu0
        %v2588 = vadd.f32 0.0, %v2587
        %v2589 = vpop.f32.mrf.mxu0
        %2590 = vmatprep.mubr.f32.mxu0 0.0
        %2591 = vmatmul.mubr.f32.gmra.mxu0 %v2450
        %v2592 = vpop.f32.mrf.mxu0
        %v2593 = vadd.f32 0.0, %v2592
        %v2594 = vpop.f32.mrf.mxu0
        %2595 = vmatprep.mubr.f32.mxu0 0.0
        %2596 = vmatmul.mubr.f32.gmra.mxu0 %v2453
        %v2597 = vpop.f32.mrf.mxu0
        %v2598 = vadd.f32 0.0, %v2597
        %v2599 = vpop.f32.mrf.mxu0
        %2600 = vmatprep.mubr.f32.mxu0 0.0
        %2601 = vmatmul.mubr.f32.gmra.mxu0 %v2456
        %v2602 = vpop.f32.mrf.mxu0
        %v2603 = vadd.f32 0.0, %v2602
        %v2604 = vpop.f32.mrf.mxu0
        %2605 = vdwg.mxu0
        %v2606 = vadd.f32 %v2375, %v2528
        %v2607 = vadd.f32 %v2376, %v2533
        %v2608 = vadd.f32 %v2377, %v2538
        %v2609 = vadd.f32 %v2378, %v2543
        %v2610 = vadd.f32 %v2379, %v2548
        %v2611 = vadd.f32 %v2380, %v2553
        %v2612 = vadd.f32 %v2381, %v2558
        %v2613 = vadd.f32 %v2382, %v2563
        %v2614 = vadd.f32 %v2383, %v2568
        %v2615 = vadd.f32 %v2384, %v2573
        %v2616 = vadd.f32 %v2385, %v2578
        %v2617 = vadd.f32 %v2386, %v2583
        %v2618 = vadd.f32 %v2387, %v2588
        %v2619 = vadd.f32 %v2388, %v2593
        %v2620 = vadd.f32 %v2389, %v2598
        %v2621 = vadd.f32 %v2390, %v2603
        %v2622 = vld [vmem:[%s2391 + $0x2] sm:$0xff]
        %v2623 = vld [vmem:[%s2391 + $0xa] sm:$0xff]
        %v2624 = vld [vmem:[%s2391 + $0x1a] sm:$0xff]
        %v2625 = vld [vmem:[%s2391 + $0x22] sm:$0xff]
        %v2626 = vld [vmem:[%s2391 + $0x32] sm:$0xff]
        %v2627 = vld [vmem:[%s2391 + $0x3a] sm:$0xff]
        %v2628 = vld [vmem:[%s2391 + $0x4a] sm:$0xff]
        %v2629 = vld [vmem:[%s2391 + $0x52] sm:$0xff]
        %v2630 = vld [vmem:[%s2391 + $0x62] sm:$0xff]
        %v2631 = vld [vmem:[%s2391 + $0x6a] sm:$0xff]
        %v2632 = vld [vmem:[%s2391 + $0x7a] sm:$0xff]
        %v2633 = vld [vmem:[%s2391 + $0x82] sm:$0xff]
        %v2634 = vld [vmem:[%s2391 + $0x92] sm:$0xff]
        %v2635 = vld [vmem:[%s2391 + $0x9a] sm:$0xff]
        %v2636 = vld [vmem:[%s2391 + $0xaa] sm:$0xff]
        %v2637 = vld [vmem:[%s2391 + $0xb2] sm:$0xff]
        %s2638 = scalar_lea.vmem [#allocation9], 28
        %v2639 = vld [vmem:[%s2638] sm:$0xf]
        %v2641 = vsel %vm508, %v2622, 0
        %v2644 = vsel %vm508, %v2623, 0
        %v2647 = vsel %vm508, %v2624, 0
        %v2650 = vsel %vm508, %v2625, 0
        %v2653 = vsel %vm508, %v2626, 0
        %v2656 = vsel %vm508, %v2627, 0
        %v2659 = vsel %vm508, %v2628, 0
        %v2662 = vsel %vm508, %v2629, 0
        %v2665 = vsel %vm508, %v2630, 0
        %v2668 = vsel %vm508, %v2631, 0
        %v2671 = vsel %vm508, %v2632, 0
        %v2674 = vsel %vm508, %v2633, 0
        %v2677 = vsel %vm508, %v2634, 0
        %v2680 = vsel %vm508, %v2635, 0
        %v2683 = vsel %vm508, %v2636, 0
        %v2686 = vsel %vm508, %v2637, 0
        %v2689 = vsel %vm1126, %v2639, 0
        %2691 = vmatprep.subr.mxu0 0.0
        %2692 = vmatpush1.msra.mxu0 0.0
        %2693 = vmatprep.subr.mxu0 0.0
        %2694 = vmatpush1.msra.mxu0 0.0
        %2695 = vmatprep.subr.mxu0 0.0
        %2696 = vmatpush1.msra.mxu0 0.0
        %2697 = vmatprep.subr.mxu0 0.0
        %2698 = vmatpush1.msra.mxu0 0.0
        %2699 = vmatprep.subr.mxu0 0.0
        %2700 = vmatpush1.msra.mxu0 0.0
        %2701 = vmatprep.subr.mxu0 0.0
        %2702 = vmatpush1.msra.mxu0 0.0
        %2703 = vmatprep.subr.mxu0 0.0
        %2704 = vmatpush1.msra.mxu0 0.0
        %2705 = vmatprep.subr.mxu0 0.0
        %2706 = vmatpush1.msra.mxu0 0.0
        %2707 = vmatprep.subr.mxu0 0.0
        %2708 = vmatpush1.msra.mxu0 0.0
        %2709 = vmatprep.subr.mxu0 0.0
        %2710 = vmatpush1.msra.mxu0 0.0
        %2711 = vmatprep.subr.mxu0 0.0
        %2712 = vmatpush1.msra.mxu0 0.0
        %2713 = vmatprep.subr.mxu0 0.0
        %2714 = vmatpush1.msra.mxu0 0.0
        %2715 = vmatprep.subr.mxu0 0.0
        %2716 = vmatpush1.msra.mxu0 0.0
        %2717 = vmatprep.subr.mxu0 0.0
        %2718 = vmatpush1.msra.mxu0 0.0
        %2719 = vmatprep.subr.mxu0 0.0
        %2720 = vmatpush1.msra.mxu0 0.0
        %2721 = vmatprep.subr.mxu0 0.0
        %2722 = vmatpush1.msra.mxu0 %v2689
        %2723 = vmatprep.subr.mxu0 0.0
        %2724 = vmatpush2.msra.mxu0 0.0
        %2725 = vmatprep.subr.mxu0 0.0
        %2726 = vmatpush2.msra.mxu0 0.0
        %2727 = vmatprep.subr.mxu0 0.0
        %2728 = vmatpush2.msra.mxu0 0.0
        %2729 = vmatprep.subr.mxu0 0.0
        %2730 = vmatpush2.msra.mxu0 0.0
        %2731 = vmatprep.subr.mxu0 0.0
        %2732 = vmatpush2.msra.mxu0 0.0
        %2733 = vmatprep.subr.mxu0 0.0
        %2734 = vmatpush2.msra.mxu0 0.0
        %2735 = vmatprep.subr.mxu0 0.0
        %2736 = vmatpush2.msra.mxu0 0.0
        %2737 = vmatprep.subr.mxu0 0.0
        %2738 = vmatpush2.msra.mxu0 0.0
        %2739 = vmatprep.subr.mxu0 0.0
        %2740 = vmatpush2.msra.mxu0 0.0
        %2741 = vmatprep.subr.mxu0 0.0
        %2742 = vmatpush2.msra.mxu0 0.0
        %2743 = vmatprep.subr.mxu0 0.0
        %2744 = vmatpush2.msra.mxu0 0.0
        %2745 = vmatprep.subr.mxu0 0.0
        %2746 = vmatpush2.msra.mxu0 0.0
        %2747 = vmatprep.subr.mxu0 0.0
        %2748 = vmatpush2.msra.mxu0 0.0
        %2749 = vmatprep.subr.mxu0 0.0
        %2750 = vmatpush2.msra.mxu0 0.0
        %2751 = vmatprep.subr.mxu0 0.0
        %2752 = vmatpush2.msra.mxu0 0.0
        %2753 = vmatprep.subr.mxu0 0.0
        %2754 = vmatpush2.msra.mxu0 0.0
        %2755 = vmatprep.mubr.f32.mxu0 0.0
        %2756 = vmatmul.mubr.f32.gmra.mxu0 %v2641
        %v2757 = vpop.f32.mrf.mxu0
        %v2758 = vadd.f32 0.0, %v2757
        %v2759 = vpop.f32.mrf.mxu0
        %2760 = vmatprep.mubr.f32.mxu0 0.0
        %2761 = vmatmul.mubr.f32.gmra.mxu0 %v2644
        %v2762 = vpop.f32.mrf.mxu0
        %v2763 = vadd.f32 0.0, %v2762
        %v2764 = vpop.f32.mrf.mxu0
        %2765 = vmatprep.mubr.f32.mxu0 0.0
        %2766 = vmatmul.mubr.f32.gmra.mxu0 %v2647
        %v2767 = vpop.f32.mrf.mxu0
        %v2768 = vadd.f32 0.0, %v2767
        %v2769 = vpop.f32.mrf.mxu0
        %2770 = vmatprep.mubr.f32.mxu0 0.0
        %2771 = vmatmul.mubr.f32.gmra.mxu0 %v2650
        %v2772 = vpop.f32.mrf.mxu0
        %v2773 = vadd.f32 0.0, %v2772
        %v2774 = vpop.f32.mrf.mxu0
        %2775 = vmatprep.mubr.f32.mxu0 0.0
        %2776 = vmatmul.mubr.f32.gmra.mxu0 %v2653
        %v2777 = vpop.f32.mrf.mxu0
        %v2778 = vadd.f32 0.0, %v2777
        %v2779 = vpop.f32.mrf.mxu0
        %2780 = vmatprep.mubr.f32.mxu0 0.0
        %2781 = vmatmul.mubr.f32.gmra.mxu0 %v2656
        %v2782 = vpop.f32.mrf.mxu0
        %v2783 = vadd.f32 0.0, %v2782
        %v2784 = vpop.f32.mrf.mxu0
        %2785 = vmatprep.mubr.f32.mxu0 0.0
        %2786 = vmatmul.mubr.f32.gmra.mxu0 %v2659
        %v2787 = vpop.f32.mrf.mxu0
        %v2788 = vadd.f32 0.0, %v2787
        %v2789 = vpop.f32.mrf.mxu0
        %2790 = vmatprep.mubr.f32.mxu0 0.0
        %2791 = vmatmul.mubr.f32.gmra.mxu0 %v2662
        %v2792 = vpop.f32.mrf.mxu0
        %v2793 = vadd.f32 0.0, %v2792
        %v2794 = vpop.f32.mrf.mxu0
        %2795 = vmatprep.mubr.f32.mxu0 0.0
        %2796 = vmatmul.mubr.f32.gmra.mxu0 %v2665
        %v2797 = vpop.f32.mrf.mxu0
        %v2798 = vadd.f32 0.0, %v2797
        %v2799 = vpop.f32.mrf.mxu0
        %2800 = vmatprep.mubr.f32.mxu0 0.0
        %2801 = vmatmul.mubr.f32.gmra.mxu0 %v2668
        %v2802 = vpop.f32.mrf.mxu0
        %v2803 = vadd.f32 0.0, %v2802
        %v2804 = vpop.f32.mrf.mxu0
        %2805 = vmatprep.mubr.f32.mxu0 0.0
        %2806 = vmatmul.mubr.f32.gmra.mxu0 %v2671
        %v2807 = vpop.f32.mrf.mxu0
        %v2808 = vadd.f32 0.0, %v2807
        %v2809 = vpop.f32.mrf.mxu0
        %2810 = vmatprep.mubr.f32.mxu0 0.0
        %2811 = vmatmul.mubr.f32.gmra.mxu0 %v2674
        %v2812 = vpop.f32.mrf.mxu0
        %v2813 = vadd.f32 0.0, %v2812
        %v2814 = vpop.f32.mrf.mxu0
        %2815 = vmatprep.mubr.f32.mxu0 0.0
        %2816 = vmatmul.mubr.f32.gmra.mxu0 %v2677
        %v2817 = vpop.f32.mrf.mxu0
        %v2818 = vadd.f32 0.0, %v2817
        %v2819 = vpop.f32.mrf.mxu0
        %2820 = vmatprep.mubr.f32.mxu0 0.0
        %2821 = vmatmul.mubr.f32.gmra.mxu0 %v2680
        %v2822 = vpop.f32.mrf.mxu0
        %v2823 = vadd.f32 0.0, %v2822
        %v2824 = vpop.f32.mrf.mxu0
        %2825 = vmatprep.mubr.f32.mxu0 0.0
        %2826 = vmatmul.mubr.f32.gmra.mxu0 %v2683
        %v2827 = vpop.f32.mrf.mxu0
        %v2828 = vadd.f32 0.0, %v2827
        %v2829 = vpop.f32.mrf.mxu0
        %2830 = vmatprep.mubr.f32.mxu0 0.0
        %2831 = vmatmul.mubr.f32.gmra.mxu0 %v2686
        %v2832 = vpop.f32.mrf.mxu0
        %v2833 = vadd.f32 0.0, %v2832
        %v2834 = vpop.f32.mrf.mxu0
        %2835 = vdwg.mxu0
        %v2836 = vadd.f32 %v2606, %v2758
        %v2837 = vadd.f32 %v2607, %v2763
        %v2838 = vadd.f32 %v2608, %v2768
        %v2839 = vadd.f32 %v2609, %v2773
        %v2840 = vadd.f32 %v2610, %v2778
        %v2841 = vadd.f32 %v2611, %v2783
        %v2842 = vadd.f32 %v2612, %v2788
        %v2843 = vadd.f32 %v2613, %v2793
        %v2844 = vadd.f32 %v2614, %v2798
        %v2845 = vadd.f32 %v2615, %v2803
        %v2846 = vadd.f32 %v2616, %v2808
        %v2847 = vadd.f32 %v2617, %v2813
        %v2848 = vadd.f32 %v2618, %v2818
        %v2849 = vadd.f32 %v2619, %v2823
        %v2850 = vadd.f32 %v2620, %v2828
        %v2851 = vadd.f32 %v2621, %v2833
        %v2852 = vld [vmem:[%s2391 + $0x4] sm:$0xff]
        %v2853 = vld [vmem:[%s2391 + $0xc] sm:$0xff]
        %v2854 = vld [vmem:[%s2391 + $0x1c] sm:$0xff]
        %v2855 = vld [vmem:[%s2391 + $0x24] sm:$0xff]
        %v2856 = vld [vmem:[%s2391 + $0x34] sm:$0xff]
        %v2857 = vld [vmem:[%s2391 + $0x3c] sm:$0xff]
        %v2858 = vld [vmem:[%s2391 + $0x4c] sm:$0xff]
        %v2859 = vld [vmem:[%s2391 + $0x54] sm:$0xff]
        %v2860 = vld [vmem:[%s2391 + $0x64] sm:$0xff]
        %v2861 = vld [vmem:[%s2391 + $0x6c] sm:$0xff]
        %v2862 = vld [vmem:[%s2391 + $0x7c] sm:$0xff]
        %v2863 = vld [vmem:[%s2391 + $0x84] sm:$0xff]
        %v2864 = vld [vmem:[%s2391 + $0x94] sm:$0xff]
        %v2865 = vld [vmem:[%s2391 + $0x9c] sm:$0xff]
        %v2866 = vld [vmem:[%s2391 + $0xac] sm:$0xff]
        %v2867 = vld [vmem:[%s2391 + $0xb4] sm:$0xff]
        %s2868 = scalar_lea.vmem [#allocation9], 32
        %v2869 = vld [vmem:[%s2868] sm:$0xf]
        %v2871 = vsel %vm508, %v2852, 0
        %v2874 = vsel %vm508, %v2853, 0
        %v2877 = vsel %vm508, %v2854, 0
        %v2880 = vsel %vm508, %v2855, 0
        %v2883 = vsel %vm508, %v2856, 0
        %v2886 = vsel %vm508, %v2857, 0
        %v2889 = vsel %vm508, %v2858, 0
        %v2892 = vsel %vm508, %v2859, 0
        %v2895 = vsel %vm508, %v2860, 0
        %v2898 = vsel %vm508, %v2861, 0
        %v2901 = vsel %vm508, %v2862, 0
        %v2904 = vsel %vm508, %v2863, 0
        %v2907 = vsel %vm508, %v2864, 0
        %v2910 = vsel %vm508, %v2865, 0
        %v2913 = vsel %vm508, %v2866, 0
        %v2916 = vsel %vm508, %v2867, 0
        %v2919 = vsel %vm1126, %v2869, 0
        %2921 = vmatprep.subr.mxu0 0.0
        %2922 = vmatpush1.msra.mxu0 0.0
        %2923 = vmatprep.subr.mxu0 0.0
        %2924 = vmatpush1.msra.mxu0 0.0
        %2925 = vmatprep.subr.mxu0 0.0
        %2926 = vmatpush1.msra.mxu0 0.0
        %2927 = vmatprep.subr.mxu0 0.0
        %2928 = vmatpush1.msra.mxu0 0.0
        %2929 = vmatprep.subr.mxu0 0.0
        %2930 = vmatpush1.msra.mxu0 0.0
        %2931 = vmatprep.subr.mxu0 0.0
        %2932 = vmatpush1.msra.mxu0 0.0
        %2933 = vmatprep.subr.mxu0 0.0
        %2934 = vmatpush1.msra.mxu0 0.0
        %2935 = vmatprep.subr.mxu0 0.0
        %2936 = vmatpush1.msra.mxu0 0.0
        %2937 = vmatprep.subr.mxu0 0.0
        %2938 = vmatpush1.msra.mxu0 0.0
        %2939 = vmatprep.subr.mxu0 0.0
        %2940 = vmatpush1.msra.mxu0 0.0
        %2941 = vmatprep.subr.mxu0 0.0
        %2942 = vmatpush1.msra.mxu0 0.0
        %2943 = vmatprep.subr.mxu0 0.0
        %2944 = vmatpush1.msra.mxu0 0.0
        %2945 = vmatprep.subr.mxu0 0.0
        %2946 = vmatpush1.msra.mxu0 0.0
        %2947 = vmatprep.subr.mxu0 0.0
        %2948 = vmatpush1.msra.mxu0 0.0
        %2949 = vmatprep.subr.mxu0 0.0
        %2950 = vmatpush1.msra.mxu0 0.0
        %2951 = vmatprep.subr.mxu0 0.0
        %2952 = vmatpush1.msra.mxu0 %v2919
        %2953 = vmatprep.subr.mxu0 0.0
        %2954 = vmatpush2.msra.mxu0 0.0
        %2955 = vmatprep.subr.mxu0 0.0
        %2956 = vmatpush2.msra.mxu0 0.0
        %2957 = vmatprep.subr.mxu0 0.0
        %2958 = vmatpush2.msra.mxu0 0.0
        %2959 = vmatprep.subr.mxu0 0.0
        %2960 = vmatpush2.msra.mxu0 0.0
        %2961 = vmatprep.subr.mxu0 0.0
        %2962 = vmatpush2.msra.mxu0 0.0
        %2963 = vmatprep.subr.mxu0 0.0
        %2964 = vmatpush2.msra.mxu0 0.0
        %2965 = vmatprep.subr.mxu0 0.0
        %2966 = vmatpush2.msra.mxu0 0.0
        %2967 = vmatprep.subr.mxu0 0.0
        %2968 = vmatpush2.msra.mxu0 0.0
        %2969 = vmatprep.subr.mxu0 0.0
        %2970 = vmatpush2.msra.mxu0 0.0
        %2971 = vmatprep.subr.mxu0 0.0
        %2972 = vmatpush2.msra.mxu0 0.0
        %2973 = vmatprep.subr.mxu0 0.0
        %2974 = vmatpush2.msra.mxu0 0.0
        %2975 = vmatprep.subr.mxu0 0.0
        %2976 = vmatpush2.msra.mxu0 0.0
        %2977 = vmatprep.subr.mxu0 0.0
        %2978 = vmatpush2.msra.mxu0 0.0
        %2979 = vmatprep.subr.mxu0 0.0
        %2980 = vmatpush2.msra.mxu0 0.0
        %2981 = vmatprep.subr.mxu0 0.0
        %2982 = vmatpush2.msra.mxu0 0.0
        %2983 = vmatprep.subr.mxu0 0.0
        %2984 = vmatpush2.msra.mxu0 0.0
        %2985 = vmatprep.mubr.f32.mxu0 0.0
        %2986 = vmatmul.mubr.f32.gmra.mxu0 %v2871
        %v2987 = vpop.f32.mrf.mxu0
        %v2988 = vadd.f32 0.0, %v2987
        %v2989 = vpop.f32.mrf.mxu0
        %2990 = vmatprep.mubr.f32.mxu0 0.0
        %2991 = vmatmul.mubr.f32.gmra.mxu0 %v2874
        %v2992 = vpop.f32.mrf.mxu0
        %v2993 = vadd.f32 0.0, %v2992
        %v2994 = vpop.f32.mrf.mxu0
        %2995 = vmatprep.mubr.f32.mxu0 0.0
        %2996 = vmatmul.mubr.f32.gmra.mxu0 %v2877
        %v2997 = vpop.f32.mrf.mxu0
        %v2998 = vadd.f32 0.0, %v2997
        %v2999 = vpop.f32.mrf.mxu0
        %3000 = vmatprep.mubr.f32.mxu0 0.0
        %3001 = vmatmul.mubr.f32.gmra.mxu0 %v2880
        %v3002 = vpop.f32.mrf.mxu0
        %v3003 = vadd.f32 0.0, %v3002
        %v3004 = vpop.f32.mrf.mxu0
        %3005 = vmatprep.mubr.f32.mxu0 0.0
        %3006 = vmatmul.mubr.f32.gmra.mxu0 %v2883
        %v3007 = vpop.f32.mrf.mxu0
        %v3008 = vadd.f32 0.0, %v3007
        %v3009 = vpop.f32.mrf.mxu0
        %3010 = vmatprep.mubr.f32.mxu0 0.0
        %3011 = vmatmul.mubr.f32.gmra.mxu0 %v2886
        %v3012 = vpop.f32.mrf.mxu0
        %v3013 = vadd.f32 0.0, %v3012
        %v3014 = vpop.f32.mrf.mxu0
        %3015 = vmatprep.mubr.f32.mxu0 0.0
        %3016 = vmatmul.mubr.f32.gmra.mxu0 %v2889
        %v3017 = vpop.f32.mrf.mxu0
        %v3018 = vadd.f32 0.0, %v3017
        %v3019 = vpop.f32.mrf.mxu0
        %3020 = vmatprep.mubr.f32.mxu0 0.0
        %3021 = vmatmul.mubr.f32.gmra.mxu0 %v2892
        %v3022 = vpop.f32.mrf.mxu0
        %v3023 = vadd.f32 0.0, %v3022
        %v3024 = vpop.f32.mrf.mxu0
        %3025 = vmatprep.mubr.f32.mxu0 0.0
        %3026 = vmatmul.mubr.f32.gmra.mxu0 %v2895
        %v3027 = vpop.f32.mrf.mxu0
        %v3028 = vadd.f32 0.0, %v3027
        %v3029 = vpop.f32.mrf.mxu0
        %3030 = vmatprep.mubr.f32.mxu0 0.0
        %3031 = vmatmul.mubr.f32.gmra.mxu0 %v2898
        %v3032 = vpop.f32.mrf.mxu0
        %v3033 = vadd.f32 0.0, %v3032
        %v3034 = vpop.f32.mrf.mxu0
        %3035 = vmatprep.mubr.f32.mxu0 0.0
        %3036 = vmatmul.mubr.f32.gmra.mxu0 %v2901
        %v3037 = vpop.f32.mrf.mxu0
        %v3038 = vadd.f32 0.0, %v3037
        %v3039 = vpop.f32.mrf.mxu0
        %3040 = vmatprep.mubr.f32.mxu0 0.0
        %3041 = vmatmul.mubr.f32.gmra.mxu0 %v2904
        %v3042 = vpop.f32.mrf.mxu0
        %v3043 = vadd.f32 0.0, %v3042
        %v3044 = vpop.f32.mrf.mxu0
        %3045 = vmatprep.mubr.f32.mxu0 0.0
        %3046 = vmatmul.mubr.f32.gmra.mxu0 %v2907
        %v3047 = vpop.f32.mrf.mxu0
        %v3048 = vadd.f32 0.0, %v3047
        %v3049 = vpop.f32.mrf.mxu0
        %3050 = vmatprep.mubr.f32.mxu0 0.0
        %3051 = vmatmul.mubr.f32.gmra.mxu0 %v2910
        %v3052 = vpop.f32.mrf.mxu0
        %v3053 = vadd.f32 0.0, %v3052
        %v3054 = vpop.f32.mrf.mxu0
        %3055 = vmatprep.mubr.f32.mxu0 0.0
        %3056 = vmatmul.mubr.f32.gmra.mxu0 %v2913
        %v3057 = vpop.f32.mrf.mxu0
        %v3058 = vadd.f32 0.0, %v3057
        %v3059 = vpop.f32.mrf.mxu0
        %3060 = vmatprep.mubr.f32.mxu0 0.0
        %3061 = vmatmul.mubr.f32.gmra.mxu0 %v2916
        %v3062 = vpop.f32.mrf.mxu0
        %v3063 = vadd.f32 0.0, %v3062
        %v3064 = vpop.f32.mrf.mxu0
        %3065 = vdwg.mxu0
        %v3066 = vadd.f32 %v2836, %v2988
        %v3067 = vadd.f32 %v2837, %v2993
        %v3068 = vadd.f32 %v2838, %v2998
        %v3069 = vadd.f32 %v2839, %v3003
        %v3070 = vadd.f32 %v2840, %v3008
        %v3071 = vadd.f32 %v2841, %v3013
        %v3072 = vadd.f32 %v2842, %v3018
        %v3073 = vadd.f32 %v2843, %v3023
        %v3074 = vadd.f32 %v2844, %v3028
        %v3075 = vadd.f32 %v2845, %v3033
        %v3076 = vadd.f32 %v2846, %v3038
        %v3077 = vadd.f32 %v2847, %v3043
        %v3078 = vadd.f32 %v2848, %v3048
        %v3079 = vadd.f32 %v2849, %v3053
        %v3080 = vadd.f32 %v2850, %v3058
        %v3081 = vadd.f32 %v2851, %v3063
        %v3082 = vld [vmem:[%s6] sm:$0x1]
        %v3084 = vlaneseq
        %v3085 = vshrl.u32 %v3084, 7
        %v3086 = vsub.s32 0, %v3085
        %v3087 = vrot.slane %v3082, %v3086
        %v3089 = vadd.f32 %v3066, %v3087
        %v3090 = vadd.f32 %v3067, %v3087
        %v3091 = vadd.f32 %v3068, %v3087
        %v3092 = vadd.f32 %v3069, %v3087
        %v3093 = vadd.f32 %v3070, %v3087
        %v3094 = vadd.f32 %v3071, %v3087
        %v3095 = vadd.f32 %v3072, %v3087
        %v3096 = vadd.f32 %v3073, %v3087
        %v3097 = vadd.f32 %v3074, %v3087
        %v3098 = vadd.f32 %v3075, %v3087
        %v3099 = vadd.f32 %v3076, %v3087
        %v3100 = vadd.f32 %v3077, %v3087
        %v3101 = vadd.f32 %v3078, %v3087
        %v3102 = vadd.f32 %v3079, %v3087
        %v3103 = vadd.f32 %v3080, %v3087
        %v3104 = vadd.f32 %v3081, %v3087
        %v3105 = vmax.f32 %v3089, 0.0
        %v3106 = vmax.f32 %v3090, 0.0
        %v3107 = vmax.f32 %v3091, 0.0
        %v3108 = vmax.f32 %v3092, 0.0
        %v3109 = vmax.f32 %v3093, 0.0
        %v3110 = vmax.f32 %v3094, 0.0
        %v3111 = vmax.f32 %v3095, 0.0
        %v3112 = vmax.f32 %v3096, 0.0
        %v3113 = vmax.f32 %v3097, 0.0
        %v3114 = vmax.f32 %v3098, 0.0
        %v3115 = vmax.f32 %v3099, 0.0
        %v3116 = vmax.f32 %v3100, 0.0
        %v3117 = vmax.f32 %v3101, 0.0
        %v3118 = vmax.f32 %v3102, 0.0
        %v3119 = vmax.f32 %v3103, 0.0
        %v3120 = vmax.f32 %v3104, 0.0
        %v3121 = vld [vmem:[%s7] sm:$0xf]
        %v3122 = vld [vmem:[%s8] sm:$0x1]
        %v3124 = vlaneseq
        %v3125 = vshrl.u32 %v3124, 7
        %v3126 = vsub.s32 0, %v3125
        %v3127 = vrot.slane %v3122, %v3126
        %v3130 = vsel %vm508, %v3105, 0
        %v3133 = vsel %vm508, %v3106, 0
        %v3136 = vsel %vm508, %v3107, 0
        %v3139 = vsel %vm508, %v3108, 0
        %v3142 = vsel %vm508, %v3109, 0
        %v3145 = vsel %vm508, %v3110, 0
        %v3148 = vsel %vm508, %v3111, 0
        %v3151 = vsel %vm508, %v3112, 0
        %v3154 = vsel %vm508, %v3113, 0
        %v3157 = vsel %vm508, %v3114, 0
        %v3160 = vsel %vm508, %v3115, 0
        %v3163 = vsel %vm508, %v3116, 0
        %v3166 = vsel %vm508, %v3117, 0
        %v3169 = vsel %vm508, %v3118, 0
        %v3172 = vsel %vm508, %v3119, 0
        %v3175 = vsel %vm508, %v3120, 0
        %v3178 = vsel %vm1126, %v3121, 0
        %3180 = vmatprep.subr.mxu0 0.0
        %3181 = vmatpush1.msra.mxu0 0.0
        %3182 = vmatprep.subr.mxu0 0.0
        %3183 = vmatpush1.msra.mxu0 0.0
        %3184 = vmatprep.subr.mxu0 0.0
        %3185 = vmatpush1.msra.mxu0 0.0
        %3186 = vmatprep.subr.mxu0 0.0
        %3187 = vmatpush1.msra.mxu0 0.0
        %3188 = vmatprep.subr.mxu0 0.0
        %3189 = vmatpush1.msra.mxu0 0.0
        %3190 = vmatprep.subr.mxu0 0.0
        %3191 = vmatpush1.msra.mxu0 0.0
        %3192 = vmatprep.subr.mxu0 0.0
        %3193 = vmatpush1.msra.mxu0 0.0
        %3194 = vmatprep.subr.mxu0 0.0
        %3195 = vmatpush1.msra.mxu0 0.0
        %3196 = vmatprep.subr.mxu0 0.0
        %3197 = vmatpush1.msra.mxu0 0.0
        %3198 = vmatprep.subr.mxu0 0.0
        %3199 = vmatpush1.msra.mxu0 0.0
        %3200 = vmatprep.subr.mxu0 0.0
        %3201 = vmatpush1.msra.mxu0 0.0
        %3202 = vmatprep.subr.mxu0 0.0
        %3203 = vmatpush1.msra.mxu0 0.0
        %3204 = vmatprep.subr.mxu0 0.0
        %3205 = vmatpush1.msra.mxu0 0.0
        %3206 = vmatprep.subr.mxu0 0.0
        %3207 = vmatpush1.msra.mxu0 0.0
        %3208 = vmatprep.subr.mxu0 0.0
        %3209 = vmatpush1.msra.mxu0 0.0
        %3210 = vmatprep.subr.mxu0 0.0
        %3211 = vmatpush1.msra.mxu0 %v3178
        %3212 = vmatprep.subr.mxu0 0.0
        %3213 = vmatpush2.msra.mxu0 0.0
        %3214 = vmatprep.subr.mxu0 0.0
        %3215 = vmatpush2.msra.mxu0 0.0
        %3216 = vmatprep.subr.mxu0 0.0
        %3217 = vmatpush2.msra.mxu0 0.0
        %3218 = vmatprep.subr.mxu0 0.0
        %3219 = vmatpush2.msra.mxu0 0.0
        %3220 = vmatprep.subr.mxu0 0.0
        %3221 = vmatpush2.msra.mxu0 0.0
        %3222 = vmatprep.subr.mxu0 0.0
        %3223 = vmatpush2.msra.mxu0 0.0
        %3224 = vmatprep.subr.mxu0 0.0
        %3225 = vmatpush2.msra.mxu0 0.0
        %3226 = vmatprep.subr.mxu0 0.0
        %3227 = vmatpush2.msra.mxu0 0.0
        %3228 = vmatprep.subr.mxu0 0.0
        %3229 = vmatpush2.msra.mxu0 0.0
        %3230 = vmatprep.subr.mxu0 0.0
        %3231 = vmatpush2.msra.mxu0 0.0
        %3232 = vmatprep.subr.mxu0 0.0
        %3233 = vmatpush2.msra.mxu0 0.0
        %3234 = vmatprep.subr.mxu0 0.0
        %3235 = vmatpush2.msra.mxu0 0.0
        %3236 = vmatprep.subr.mxu0 0.0
        %3237 = vmatpush2.msra.mxu0 0.0
        %3238 = vmatprep.subr.mxu0 0.0
        %3239 = vmatpush2.msra.mxu0 0.0
        %3240 = vmatprep.subr.mxu0 0.0
        %3241 = vmatpush2.msra.mxu0 0.0
        %3242 = vmatprep.subr.mxu0 0.0
        %3243 = vmatpush2.msra.mxu0 0.0
        %3244 = vmatprep.mubr.f32.mxu0 0.0
        %3245 = vmatmul.mubr.f32.gmra.mxu0 %v3130
        %v3246 = vpop.f32.mrf.mxu0
        %v3247 = vadd.f32 %v3127, %v3246
        %v3248 = vpop.f32.mrf.mxu0
        %3249 = vmatprep.mubr.f32.mxu0 0.0
        %3250 = vmatmul.mubr.f32.gmra.mxu0 %v3133
        %v3251 = vpop.f32.mrf.mxu0
        %v3252 = vadd.f32 %v3127, %v3251
        %v3253 = vpop.f32.mrf.mxu0
        %3254 = vmatprep.mubr.f32.mxu0 0.0
        %3255 = vmatmul.mubr.f32.gmra.mxu0 %v3136
        %v3256 = vpop.f32.mrf.mxu0
        %v3257 = vadd.f32 %v3127, %v3256
        %v3258 = vpop.f32.mrf.mxu0
        %3259 = vmatprep.mubr.f32.mxu0 0.0
        %3260 = vmatmul.mubr.f32.gmra.mxu0 %v3139
        %v3261 = vpop.f32.mrf.mxu0
        %v3262 = vadd.f32 %v3127, %v3261
        %v3263 = vpop.f32.mrf.mxu0
        %3264 = vmatprep.mubr.f32.mxu0 0.0
        %3265 = vmatmul.mubr.f32.gmra.mxu0 %v3142
        %v3266 = vpop.f32.mrf.mxu0
        %v3267 = vadd.f32 %v3127, %v3266
        %v3268 = vpop.f32.mrf.mxu0
        %3269 = vmatprep.mubr.f32.mxu0 0.0
        %3270 = vmatmul.mubr.f32.gmra.mxu0 %v3145
        %v3271 = vpop.f32.mrf.mxu0
        %v3272 = vadd.f32 %v3127, %v3271
        %v3273 = vpop.f32.mrf.mxu0
        %3274 = vmatprep.mubr.f32.mxu0 0.0
        %3275 = vmatmul.mubr.f32.gmra.mxu0 %v3148
        %v3276 = vpop.f32.mrf.mxu0
        %v3277 = vadd.f32 %v3127, %v3276
        %v3278 = vpop.f32.mrf.mxu0
        %3279 = vmatprep.mubr.f32.mxu0 0.0
        %3280 = vmatmul.mubr.f32.gmra.mxu0 %v3151
        %v3281 = vpop.f32.mrf.mxu0
        %v3282 = vadd.f32 %v3127, %v3281
        %v3283 = vpop.f32.mrf.mxu0
        %3284 = vmatprep.mubr.f32.mxu0 0.0
        %3285 = vmatmul.mubr.f32.gmra.mxu0 %v3154
        %v3286 = vpop.f32.mrf.mxu0
        %v3287 = vadd.f32 %v3127, %v3286
        %v3288 = vpop.f32.mrf.mxu0
        %3289 = vmatprep.mubr.f32.mxu0 0.0
        %3290 = vmatmul.mubr.f32.gmra.mxu0 %v3157
        %v3291 = vpop.f32.mrf.mxu0
        %v3292 = vadd.f32 %v3127, %v3291
        %v3293 = vpop.f32.mrf.mxu0
        %3294 = vmatprep.mubr.f32.mxu0 0.0
        %3295 = vmatmul.mubr.f32.gmra.mxu0 %v3160
        %v3296 = vpop.f32.mrf.mxu0
        %v3297 = vadd.f32 %v3127, %v3296
        %v3298 = vpop.f32.mrf.mxu0
        %3299 = vmatprep.mubr.f32.mxu0 0.0
        %3300 = vmatmul.mubr.f32.gmra.mxu0 %v3163
        %v3301 = vpop.f32.mrf.mxu0
        %v3302 = vadd.f32 %v3127, %v3301
        %v3303 = vpop.f32.mrf.mxu0
        %3304 = vmatprep.mubr.f32.mxu0 0.0
        %3305 = vmatmul.mubr.f32.gmra.mxu0 %v3166
        %v3306 = vpop.f32.mrf.mxu0
        %v3307 = vadd.f32 %v3127, %v3306
        %v3308 = vpop.f32.mrf.mxu0
        %3309 = vmatprep.mubr.f32.mxu0 0.0
        %3310 = vmatmul.mubr.f32.gmra.mxu0 %v3169
        %v3311 = vpop.f32.mrf.mxu0
        %v3312 = vadd.f32 %v3127, %v3311
        %v3313 = vpop.f32.mrf.mxu0
        %3314 = vmatprep.mubr.f32.mxu0 0.0
        %3315 = vmatmul.mubr.f32.gmra.mxu0 %v3172
        %v3316 = vpop.f32.mrf.mxu0
        %v3317 = vadd.f32 %v3127, %v3316
        %v3318 = vpop.f32.mrf.mxu0
        %3319 = vmatprep.mubr.f32.mxu0 0.0
        %3320 = vmatmul.mubr.f32.gmra.mxu0 %v3175
        %v3321 = vpop.f32.mrf.mxu0
        %v3322 = vadd.f32 %v3127, %v3321
        %v3323 = vpop.f32.mrf.mxu0
        %3324 = vdwg.mxu0
        %v3325 = vadd.f32 %v3247, %v546
        %v3326 = vadd.f32 %v3252, %v547
        %v3327 = vadd.f32 %v3257, %v548
        %v3328 = vadd.f32 %v3262, %v549
        %v3329 = vadd.f32 %v3267, %v550
        %v3330 = vadd.f32 %v3272, %v551
        %v3331 = vadd.f32 %v3277, %v552
        %v3332 = vadd.f32 %v3282, %v553
        %v3333 = vadd.f32 %v3287, %v554
        %v3334 = vadd.f32 %v3292, %v555
        %v3335 = vadd.f32 %v3297, %v556
        %v3336 = vadd.f32 %v3302, %v557
        %v3337 = vadd.f32 %v3307, %v558
        %v3338 = vadd.f32 %v3312, %v559
        %v3339 = vadd.f32 %v3317, %v560
        %v3340 = vadd.f32 %v3322, %v561
        %v3341 = vmax.f32 %v3325, 0.0
        %v3342 = vmax.f32 %v3326, 0.0
        %v3343 = vmax.f32 %v3327, 0.0
        %v3344 = vmax.f32 %v3328, 0.0
        %v3345 = vmax.f32 %v3329, 0.0
        %v3346 = vmax.f32 %v3330, 0.0
        %v3347 = vmax.f32 %v3331, 0.0
        %v3348 = vmax.f32 %v3332, 0.0
        %v3349 = vmax.f32 %v3333, 0.0
        %v3350 = vmax.f32 %v3334, 0.0
        %v3351 = vmax.f32 %v3335, 0.0
        %v3352 = vmax.f32 %v3336, 0.0
        %v3353 = vmax.f32 %v3337, 0.0
        %v3354 = vmax.f32 %v3338, 0.0
        %v3355 = vmax.f32 %v3339, 0.0
        %v3356 = vmax.f32 %v3340, 0.0
        %3357 = vst.msk [vmem:[%s495] sm:$0xff] %vm571, %v3341
        %3358 = vst.msk [vmem:[%s495 + $0x8] sm:$0xff] %vm571, %v3342
        %3359 = vst.msk [vmem:[%s495 + $0x10] sm:$0xff] %vm571, %v3343
        %3360 = vst.msk [vmem:[%s495 + $0x18] sm:$0xff] %vm571, %v3344
        %3361 = vst.msk [vmem:[%s495 + $0x20] sm:$0xff] %vm571, %v3345
        %3362 = vst.msk [vmem:[%s495 + $0x28] sm:$0xff] %vm571, %v3346
        %3363 = vst.msk [vmem:[%s495 + $0x30] sm:$0xff] %vm571, %v3347
        %3364 = vst.msk [vmem:[%s495 + $0x38] sm:$0xff] %vm571, %v3348
        %3365 = vst.msk [vmem:[%s495 + $0x40] sm:$0xff] %vm571, %v3349
        %3366 = vst.msk [vmem:[%s495 + $0x48] sm:$0xff] %vm571, %v3350
        %3367 = vst.msk [vmem:[%s495 + $0x50] sm:$0xff] %vm571, %v3351
        %3368 = vst.msk [vmem:[%s495 + $0x58] sm:$0xff] %vm571, %v3352
        %3369 = vst.msk [vmem:[%s495 + $0x60] sm:$0xff] %vm571, %v3353
        %3370 = vst.msk [vmem:[%s495 + $0x68] sm:$0xff] %vm571, %v3354
        %3371 = vst.msk [vmem:[%s495 + $0x70] sm:$0xff] %vm571, %v3355
        %3372 = vst.msk [vmem:[%s495 + $0x78] sm:$0xff] %vm571, %v3356
        %s3373 = sand.u32 %s278, 1
        %s3374 = scalar_lea.sflag [#allocation5], %s3373
        %s3375 = sand.u32 %s278, 1
        %s3376 = smul.addr %s3375, 128
        %s3377 = scalar_lea.vmem [#allocation11], %s3376
        // Predicated region
        $region81: #{tpu_custom_call.1} parent=55 // pred_check
          %p3378 = pneg %p288
        $region82: #{tpu_custom_call.1} parent=55 // pred_check_branch
          %3380 = sbr.rel (%p3378) target = $region84
        $region83: #{tpu_custom_call.1} parent=55 // pred_region
          %s3381 = smul.u32 8, %s35
          %s3383 = ssub.s32 2048, 2048
          %3384 = vsyncadd %s3374, %s3383
          %s3385 = smul.addr %s3381, 2
          %s3386 = smul.addr %s34, 32
          %s3387 = sadd.s32 %s3385, %s3386
          %s3388 = smul.addr %s3387, 128
          %s3389 = scalar_lea.hbm %s9, %s3388
          %s3390 = sshll.u32 %s3377, 4
          %s3391 = int_to_ptr.vmem [resolvable:$true] %s3390
          %3396 = dma.vmem_to_hbm [thread:$0]  %s3391, 2048, %s3389, %s3374, 128, 128, 8
        $region84: #{tpu_custom_call.1} parent=55 // pred_fallthru
          _
      $region56: #{tpu_custom_call.1} parent=5 // pred_fallthru
        _
      %p3397 = scmp.le.s32.totalorder 2, %s25
      // Predicated region
      $region85: #{tpu_custom_call.1} parent=5 // pred_check
        %p3398 = pneg %p3397
      $region86: #{tpu_custom_call.1} parent=5 // pred_check_branch
        %3400 = sbr.rel (%p3398) target = $region88
      $region87: #{tpu_custom_call.1} parent=5 // pred_region
        %s3401 = ssub.s32 %s25, 2
        // Predicated region
        $region89: #{tpu_custom_call.1} parent=87 // pred_check
          %p3402 = pneg %p294
        $region90: #{tpu_custom_call.1} parent=87 // pred_check_branch
          %3404 = sbr.rel (%p3402) target = $region92
        $region91: #{tpu_custom_call.1} parent=87 // pred_region
          %s3405 = sand.u32 %s279, 1
          %s3406 = scalar_lea.sflag [#allocation5], %s3405
          %s3407 = sand.u32 %s279, 1
          %s3408 = smul.addr %s3407, 128
          %s3409 = scalar_lea.vmem [#allocation11], %s3408
          %3410 = dma.done %s3406, 2048
        $region92: #{tpu_custom_call.1} parent=87 // pred_fallthru
          _
      $region88: #{tpu_custom_call.1} parent=5 // pred_fallthru
        _
    $region6: #{tpu_custom_call.1} parent=1 // loop_footer
      %s29 = sadd.s32 1, %s25
    $region7: #{tpu_custom_call.1} parent=1 // loop_footer_branch
      %24 = sbr.rel target = $region3
    $region8: #{tpu_custom_call.1} parent=1 // loop_exit
      _
    %3411 = vsyncpa [#allocation4], 1
    %s3412 = scalar_lea.sflag [#allocation4], 1
    %3413 = vsyncpa %s3412, 1
    %3414 = vsyncpa [#allocation7], 1
    %s3415 = scalar_lea.sflag [#allocation7], 1
    %3416 = vsyncpa %s3415, 1
    %3417 = vsyncpa [#allocation10], 1
    %3418 = vsyncpa [#allocation5], 1
    %s3419 = scalar_lea.sflag [#allocation5], 1
    %3420 = vsyncpa %s3419, 1

</llo_original>
